<compile_context>
chip_gen: v6e
topology: v6e:2x2x1
jax: 0.10.0
libtpu: 0.0.40
codegen_flags: <defaults>
</compile_context>

<pallas_src>
import functools

import jax
import jax.numpy as jnp
from jax.experimental import pallas as pl
from jax.experimental.pallas import tpu as pltpu

BN_EPS = 1e-3  # torchvision EfficientNetV2 uses BatchNorm2d(eps=1e-3)


def _default_pipeline_config():
    """Per-chip VMEM policy: exploit 128 MiB on v5e/v6e, stay safe on v7x."""
    try:
        vmem_cap = int(pltpu.get_tpu_info().vmem_capacity_bytes)
    except Exception:
        vmem_cap = 64 * 1024 * 1024
    if vmem_cap >= 128 * 1024 * 1024:        # v5e / v6e
        return 64 * 1024 * 1024, 2048
    return 32 * 1024 * 1024, 1024            # v7x (64 MiB per TC) / unknown


VMEM_LIMIT_BYTES, DEFAULT_TILE_G = _default_pipeline_config()


# ----------------------------- Pallas kernel ------------------------------ #
def _fused_conv_kernel(group, use_silu, use_residual, has_project, *refs):
    """One tile of a (group-wise lane-dense) fused conv block.

    For each of the `group` interleaved row splits j:
        expand=1 :  z_j = x_j @ W_wide[j]                 (W_wide[j] = W in lane block j)
        expand=4 :  e_j = SiLU_bf16(x_j @ W_exp + b_exp)
                    z_j = e_j @ W2_wide[j]
    y = sum_j z_j + b_wide  [SiLU]  [+ residual] ; store bf16, 128 lanes wide.
    """
    it = iter(refs)
    x_refs = [next(it) for _ in range(group)]
    if has_project:
        w_exp_ref = next(it)          # (K, C1)  expand 3x3 weights (BN folded), shared
        b_exp_ref = next(it)          # (1, C1)
    w_last_ref = next(it)             # (group, K_last, group*C_out) widened last matmul
    b_last_ref = next(it)             # (1, group*C_out)
    res_ref = next(it) if use_residual else None
    o_ref = next(it)                  # (tile_g, group*C_out)

    acc = None
    for j, x_ref in enumerate(x_refs):
        if has_project:
            e = jnp.dot(x_ref[...], w_exp_ref[...],
                        preferred_element_type=jnp.float32)
            e = e + b_exp_ref[...]                      # folded BN bias (f32)
            e = e.astype(jnp.bfloat16)
            if use_silu:
                e = e * jax.nn.sigmoid(e)               # bf16 SiLU (feeds bf16 matmul)
            lhs = e
        else:
            lhs = x_ref[...]
        z = jnp.dot(lhs, w_last_ref[j], preferred_element_type=jnp.float32)
        acc = z if acc is None else acc + z

    y = acc + b_last_ref[...]                           # folded BN bias (f32)
    if use_silu and not has_project:
        y = y * jax.nn.sigmoid(y)                       # f32 SiLU (expand=1 blocks)
    if use_residual:
        y = y + res_ref[...].astype(jnp.float32)        # FusedMBConv skip
    o_ref[...] = y.astype(o_ref.dtype)                  # bf16, 128-lane store


def fused_conv(x_splits, w1, b1, w2=None, b2=None, residual=None, use_silu=True):
    """Pallas wrapper.

    x_splits: list of `group` bf16 im2col matrices, each (M/group, K)
              (split j holds output positions with wo % group == j)
    w1, b1:   (K, C1) bf16 BN-folded weights / (1, C1) f32 bias
    w2, b2:   optional 1x1 projection (C1, C2) / (1, C2) -> fused MBConv block
    residual: optional (M/group, group*C_out) bf16 skip (lane-dense view)
    returns   (M/group, group*C_out) bf16 lane-dense output
    """
    group = len(x_splits)
    Mg, K = x_splits[0].shape
    K1, C1 = w1.shape
    assert K1 == K
    has_project = w2 is not None
    C_out = w2.shape[1] if has_project else C1
    lanes = group * C_out
    M = Mg * group

    # Keep the MXU contraction dim a multiple of 8 (only the stem's K=27 hits this).
    if K % 8:
        kpad = 8 - K % 8
        x_splits = [jnp.pad(xs, ((0, 0), (0, kpad))) for xs in x_splits]
        w1 = jnp.pad(w1, ((0, kpad), (0, 0)))
        K += kpad

    # Widen the LAST matmul's weights so split j lands in lane block j: the
    # lane-dense grouping is done by the MXU instead of an in-kernel relayout.
    w_last, b_last = (w2, b2) if has_project else (w1, b1)
    Kl = w_last.shape[0]
    w_wide = jnp.zeros((group, Kl, lanes), w_last.dtype)
    for j in range(group):
        w_wide = w_wide.at[j, :, j * C_out:(j + 1) * C_out].set(w_last)
    b_wide = jnp.tile(b_last, (1, group))                       # (1, lanes) f32

    tile_g = Mg if Mg <= DEFAULT_TILE_G else DEFAULT_TILE_G
    grid = (pl.cdiv(Mg, tile_g),)

    inputs = list(x_splits)
    in_specs = [pl.BlockSpec((tile_g, K), lambda i: (i, 0)) for _ in x_splits]
    if has_project:
        inputs += [w1, b1]
        in_specs += [pl.BlockSpec((K, C1), lambda i: (0, 0)),
                     pl.BlockSpec((1, C1), lambda i: (0, 0))]
    inputs += [w_wide, b_wide]
    in_specs += [pl.BlockSpec((group, Kl, lanes), lambda i: (0, 0, 0)),
                 pl.BlockSpec((1, lanes), lambda i: (0, 0))]
    if residual is not None:
        assert residual.shape == (Mg, lanes)
        inputs.append(residual)
        in_specs.append(pl.BlockSpec((tile_g, lanes), lambda i: (i, 0)))

    kernel = functools.partial(_fused_conv_kernel, group, use_silu,
                               residual is not None, has_project)

    if has_project:
        flops = 2 * M * K * C1 + 2 * M * C1 * lanes
        transcendentals = M * C1 if use_silu else 0
    else:
        flops = 2 * M * K * lanes
        transcendentals = M * C1 if use_silu else 0
    bytes_accessed = sum(int(a.size) * a.dtype.itemsize for a in inputs)
    bytes_accessed += Mg * lanes * 2                            # bf16 output

    return pl.pallas_call(
        kernel,
        out_shape=jax.ShapeDtypeStruct((Mg, lanes), jnp.bfloat16),
        grid=grid,
        in_specs=in_specs,
        out_specs=pl.BlockSpec((tile_g, lanes), lambda i: (i, 0)),
        compiler_params=pltpu.CompilerParams(
            dimension_semantics=("parallel",),      # megacore sharding on v7x
            vmem_limit_bytes=VMEM_LIMIT_BYTES,
        ),
        cost_estimate=pl.CostEstimate(flops=flops,
                                      transcendentals=transcendentals,
                                      bytes_accessed=bytes_accessed),
    )(*inputs)


# ------------------------------- JAX glue ---------------------------------- #
def im2col_splits(x, k, stride, pad, group):
    """NHWC x -> list of `group` bf16 matrices, each (N*Ho*Wo/group, k*k*C).

    Split j holds the im2col rows of output positions with wo % group == j, so
    placing split j's conv result in lane block j of a (M/group, group*C_out)
    output reproduces the row-major (M, C_out) result as a free reshape.
    """
    N, H, W, C = x.shape
    xp = jnp.pad(x.astype(jnp.bfloat16),
                 ((0, 0), (pad, pad), (pad, pad), (0, 0)))
    Ho = (H + 2 * pad - k) // stride + 1
    Wo = (W + 2 * pad - k) // stride + 1
    assert Wo % group == 0
    Wg = Wo // group
    splits = []
    for j in range(group):
        taps = []
        for ki in range(k):
            for kj in range(k):
                c0 = kj + stride * j
                taps.append(
                    xp[:, ki:ki + stride * (Ho - 1) + 1:stride,
                       c0:c0 + stride * group * (Wg - 1) + 1:stride * group, :])
        cols = jnp.concatenate(taps, axis=-1)       # (N, Ho, Wg, k*k*C)
        splits.append(cols.reshape(N * Ho * Wg, k * k * C))
    return splits


def conv_bn_act(x, p1, p2=None, *, k=3, stride=1, pad=1, use_silu=True,
                residual=None):
    """Fused conv(+BN+SiLU)[+1x1 project(+BN)][+residual].  NHWC in/out, bf16."""
    N, H, W, _ = x.shape
    C1 = p1["w"].shape[1]
    C_out = p2["w"].shape[1] if p2 is not None else C1
    Ho = (H + 2 * pad - k) // stride + 1
    Wo = (W + 2 * pad - k) // stride + 1
    group = 1
    if C_out < 128 and 128 % C_out == 0 and Wo % (128 // C_out) == 0:
        group = 128 // C_out                        # lane-dense output grouping

    splits = im2col_splits(x, k, stride, pad, group)
    res = None
    if residual is not None:
        # Free row-major regroup into the lane-dense (M/g, g*C_out) view.
        res = residual.reshape(N * Ho * Wo // group, group * C_out)
    out = fused_conv(splits, p1["w"], p1["b"],
                     w2=p2["w"] if p2 is not None else None,
                     b2=p2["b"] if p2 is not None else None,
                     residual=res, use_silu=use_silu)
    return out.reshape(N, Ho, Wo, C_out)            # free reshape back to NHWC


def make_conv_bn(key, cin, cout, k):
    """Deterministic synthetic Conv(no bias)+BatchNorm params; BN scale folded."""
    k1, k2, k3, k4, k5 = jax.random.split(key, 5)
    w = jax.random.normal(k1, (k, k, cin, cout), jnp.float32)
    w = w * (1.0 / (k * k * cin) ** 0.5)
    gamma = 1.0 + 0.1 * jax.random.normal(k2, (cout,), jnp.float32)
    beta = 0.1 * jax.random.normal(k3, (cout,), jnp.float32)
    mean = 0.1 * jax.random.normal(k4, (cout,), jnp.float32)
    var = 1.0 + 0.1 * jax.random.uniform(k5, (cout,), jnp.float32)
    scale = gamma / jnp.sqrt(var + BN_EPS)
    bias = beta - mean * scale
    w_folded = w.reshape(k * k * cin, cout) * scale[None, :]    # fold BN scale
    return {"w": w_folded.astype(jnp.bfloat16), "b": bias.reshape(1, cout)}


def init_params(key):
    keys = jax.random.split(key, 1 + 4 + 2 * 7)
    it = iter(keys)
    params = {"stem": make_conv_bn(next(it), 3, 32, 3)}
    params["stage1"] = [make_conv_bn(next(it), 32, 32, 3) for _ in range(4)]
    stage2 = []
    cin, cout = 32, 64
    for _ in range(7):
        expanded = cin * 4
        stage2.append({
            "expand": make_conv_bn(next(it), cin, expanded, 3),
            "project": make_conv_bn(next(it), expanded, cout, 1),
        })
        cin = cout
    params["stage2"] = stage2
    return params


def forward(params, x_nchw):
    """Returns {'features_1', 'features_2'} in NCHW f32, matching the PyTorch hooks."""
    x = jnp.transpose(x_nchw, (0, 2, 3, 1)).astype(jnp.float32)   # NCHW -> NHWC

    # features[0]: stem conv 3x3 stride 2 + BN + SiLU
    h = conv_bn_act(x, params["stem"], k=3, stride=2, use_silu=True)

    # features[1]: 4 x FusedMBConv(expand=1): x + SiLU(BN(conv3x3(x)))
    for p in params["stage1"]:
        h = conv_bn_act(h, p, k=3, stride=1, use_silu=True, residual=h)
    feat1 = h

    # features[2]: 7 x FusedMBConv(expand=4): BN(conv1x1(SiLU(BN(conv3x3)))) [+res]
    for bi, p in enumerate(params["stage2"]):
        stride = 2 if bi == 0 else 1
        res = None if bi == 0 else h
        h = conv_bn_act(h, p["expand"], p["project"], k=3, stride=stride,
                        use_silu=True, residual=res)
    feat2 = h

    return {
        "features_1": jnp.transpose(feat1, (0, 3, 1, 2)).astype(jnp.float32),
        "features_2": jnp.transpose(feat2, (0, 3, 1, 2)).astype(jnp.float32),
    }
    # TODO(synk): stages features[3:] of EfficientNetV2-L are omitted — they do
    # not influence the returned hooked features ('features_1'/'features_2').


if __name__ == "__main__":
    key = jax.random.PRNGKey(0)
    kx, kp = jax.random.split(key)
    x = jax.random.normal(kx, (2, 3, 16, 16), jnp.float32)   # small NCHW input
    params = init_params(kp)

    feats = jax.jit(forward)(params, x)
    feats = jax.block_until_ready(feats)

    assert feats["features_1"].shape == (2, 32, 8, 8), feats["features_1"].shape
    assert feats["features_2"].shape == (2, 64, 4, 4), feats["features_2"].shape
    assert feats["features_1"].dtype == jnp.float32
    assert feats["features_2"].dtype == jnp.float32
    assert bool(jnp.all(jnp.isfinite(feats["features_1"])))
    assert bool(jnp.all(jnp.isfinite(feats["features_2"])))
    print("KERNEL_OK")
</pallas_src>

<mosaic_0001>
module attributes {stable_mosaic.version = 11 : i64} {
  func.func @_fused_conv_kernel(%arg0: i32, %arg1: memref<32x32xbf16, #tpu.memory_space<vmem>>, %arg2: memref<32x32xbf16, #tpu.memory_space<vmem>>, %arg3: memref<32x32xbf16, #tpu.memory_space<vmem>>, %arg4: memref<32x32xbf16, #tpu.memory_space<vmem>>, %arg5: memref<4x32x128xbf16, #tpu.memory_space<vmem>>, %arg6: memref<1x128xf32, #tpu.memory_space<vmem>>, %arg7: memref<32x128xbf16, #tpu.memory_space<vmem>>) attributes {dimension_semantics = [#tpu.dimension_semantics<parallel>], iteration_bounds = array<i64: 1>, scalar_prefetch = 0 : i64, scratch_operands = 0 : i64, tpu.core_type = #tpu.core_type<tc>, window_params = [{transform_indices = @transform_0, window_bounds = array<i64: 32, 32>}, {transform_indices = @transform_1, window_bounds = array<i64: 32, 32>}, {transform_indices = @transform_2, window_bounds = array<i64: 32, 32>}, {transform_indices = @transform_3, window_bounds = array<i64: 32, 32>}, {pipeline_mode = #tpu.pipeline_mode<synchronous>, transform_indices = @transform_4, window_bounds = array<i64: 4, 32, 128>}, {pipeline_mode = #tpu.pipeline_mode<synchronous>, transform_indices = @transform_5, window_bounds = array<i64: 1, 128>}, {transform_indices = @transform_6, window_bounds = array<i64: 32, 128>}]} {
    %c0 = arith.constant 0 : index
    %c0_0 = arith.constant 0 : index
    %0 = vector.load %arg1[%c0, %c0_0] : memref<32x32xbf16, #tpu.memory_space<vmem>>, vector<32x32xbf16>
    %c0_1 = arith.constant 0 : index
    %c0_2 = arith.constant 0 : index
    %c0_3 = arith.constant 0 : index
    %1 = vector.load %arg5[%c0_1, %c0_2, %c0_3] : memref<4x32x128xbf16, #tpu.memory_space<vmem>>, vector<1x32x128xbf16>
    %2 = vector.shape_cast %1 : vector<1x32x128xbf16> to vector<32x128xbf16>
    %cst = arith.constant dense<0.000000e+00> : vector<32x128xf32>
    %3 = tpu.matmul %0, %2, %cst {dimension_numbers = #tpu.dot_dimension_numbers<[1], [0], [0], [1], [0, 0, 1, 1], [], []>} : vector<32x32xbf16>, vector<32x128xbf16>, vector<32x128xf32> -> vector<32x128xf32>
    %c0_4 = arith.constant 0 : index
    %c0_5 = arith.constant 0 : index
    %4 = vector.load %arg2[%c0_4, %c0_5] : memref<32x32xbf16, #tpu.memory_space<vmem>>, vector<32x32xbf16>
    %c1 = arith.constant 1 : index
    %c0_6 = arith.constant 0 : index
    %c0_7 = arith.constant 0 : index
    %5 = vector.load %arg5[%c1, %c0_6, %c0_7] : memref<4x32x128xbf16, #tpu.memory_space<vmem>>, vector<1x32x128xbf16>
    %6 = vector.shape_cast %5 : vector<1x32x128xbf16> to vector<32x128xbf16>
    %cst_8 = arith.constant dense<0.000000e+00> : vector<32x128xf32>
    %7 = tpu.matmul %4, %6, %cst_8 {dimension_numbers = #tpu.dot_dimension_numbers<[1], [0], [0], [1], [0, 0, 1, 1], [], []>} : vector<32x32xbf16>, vector<32x128xbf16>, vector<32x128xf32> -> vector<32x128xf32>
    %8 = arith.addf %3, %7 : vector<32x128xf32>
    %c0_9 = arith.constant 0 : index
    %c0_10 = arith.constant 0 : index
    %9 = vector.load %arg3[%c0_9, %c0_10] : memref<32x32xbf16, #tpu.memory_space<vmem>>, vector<32x32xbf16>
    %c2 = arith.constant 2 : index
    %c0_11 = arith.constant 0 : index
    %c0_12 = arith.constant 0 : index
    %10 = vector.load %arg5[%c2, %c0_11, %c0_12] : memref<4x32x128xbf16, #tpu.memory_space<vmem>>, vector<1x32x128xbf16>
    %11 = vector.shape_cast %10 : vector<1x32x128xbf16> to vector<32x128xbf16>
    %cst_13 = arith.constant dense<0.000000e+00> : vector<32x128xf32>
    %12 = tpu.matmul %9, %11, %cst_13 {dimension_numbers = #tpu.dot_dimension_numbers<[1], [0], [0], [1], [0, 0, 1, 1], [], []>} : vector<32x32xbf16>, vector<32x128xbf16>, vector<32x128xf32> -> vector<32x128xf32>
    %13 = arith.addf %8, %12 : vector<32x128xf32>
    %c0_14 = arith.constant 0 : index
    %c0_15 = arith.constant 0 : index
    %14 = vector.load %arg4[%c0_14, %c0_15] : memref<32x32xbf16, #tpu.memory_space<vmem>>, vector<32x32xbf16>
    %c3 = arith.constant 3 : index
    %c0_16 = arith.constant 0 : index
    %c0_17 = arith.constant 0 : index
    %15 = vector.load %arg5[%c3, %c0_16, %c0_17] : memref<4x32x128xbf16, #tpu.memory_space<vmem>>, vector<1x32x128xbf16>
    %16 = vector.shape_cast %15 : vector<1x32x128xbf16> to vector<32x128xbf16>
    %cst_18 = arith.constant dense<0.000000e+00> : vector<32x128xf32>
    %17 = tpu.matmul %14, %16, %cst_18 {dimension_numbers = #tpu.dot_dimension_numbers<[1], [0], [0], [1], [0, 0, 1, 1], [], []>} : vector<32x32xbf16>, vector<32x128xbf16>, vector<32x128xf32> -> vector<32x128xf32>
    %18 = arith.addf %13, %17 : vector<32x128xf32>
    %c0_19 = arith.constant 0 : index
    %c0_20 = arith.constant 0 : index
    %19 = vector.load %arg6[%c0_19, %c0_20] : memref<1x128xf32, #tpu.memory_space<vmem>>, vector<1x128xf32>
    %20 = vector.broadcast %19 : vector<1x128xf32> to vector<32x128xf32>
    %21 = arith.addf %18, %20 : vector<32x128xf32>
    %22 = arith.negf %21 : vector<32x128xf32>
    %23 = math.exp %22 : vector<32x128xf32>
    %cst_21 = arith.constant 1.000000e+00 : f32
    %24 = vector.broadcast %cst_21 : f32 to vector<32x128xf32>
    %25 = arith.addf %24, %23 : vector<32x128xf32>
    %26 = arith.divf %24, %25 : vector<32x128xf32>
    %27 = arith.mulf %21, %26 : vector<32x128xf32>
    %28 = arith.truncf %27 : vector<32x128xf32> to vector<32x128xbf16>
    %c0_22 = arith.constant 0 : index
    %c0_23 = arith.constant 0 : index
    %29 = vector.load %arg7[%c0_22, %c0_23] : memref<32x128xbf16, #tpu.memory_space<vmem>>, vector<32x128xbf16>
    tpu.vector_store %arg7[%c0_22, %c0_23], %28 {strides = array<i32>} : memref<32x128xbf16, #tpu.memory_space<vmem>>, vector<32x128xbf16>,
    return
  }
  func.func @transform_0(%arg0: i32) -> (i32, i32) {
    %c0_i32 = arith.constant 0 : i32
    %c0_i32_0 = arith.constant 0 : i32
    return %arg0, %c0_i32 : i32, i32
  }
  func.func @transform_1(%arg0: i32) -> (i32, i32) {
    %c0_i32 = arith.constant 0 : i32
    %c0_i32_0 = arith.constant 0 : i32
    return %arg0, %c0_i32 : i32, i32
  }
  func.func @transform_2(%arg0: i32) -> (i32, i32) {
    %c0_i32 = arith.constant 0 : i32
    %c0_i32_0 = arith.constant 0 : i32
    return %arg0, %c0_i32 : i32, i32
  }
  func.func @transform_3(%arg0: i32) -> (i32, i32) {
    %c0_i32 = arith.constant 0 : i32
    %c0_i32_0 = arith.constant 0 : i32
    return %arg0, %c0_i32 : i32, i32
  }
  func.func @transform_4(%arg0: i32) -> (i32, i32, i32) {
    %c0_i32 = arith.constant 0 : i32
    %c0_i32_0 = arith.constant 0 : i32
    %c0_i32_1 = arith.constant 0 : i32
    %c0_i32_2 = arith.constant 0 : i32
    return %c0_i32, %c0_i32_0, %c0_i32_1 : i32, i32, i32
  }
  func.func @transform_5(%arg0: i32) -> (i32, i32) {
    %c0_i32 = arith.constant 0 : i32
    %c0_i32_0 = arith.constant 0 : i32
    %c0_i32_1 = arith.constant 0 : i32
    return %c0_i32, %c0_i32_0 : i32, i32
  }
  func.func @transform_6(%arg0: i32) -> (i32, i32) {
    %c0_i32 = arith.constant 0 : i32
    %c0_i32_0 = arith.constant 0 : i32
    return %arg0, %c0_i32 : i32, i32
  }
}

module attributes {stable_mosaic.version = 11 : i64} {
  func.func @_fused_conv_kernel(%arg0: i32, %arg1: memref<32x288xbf16, #tpu.memory_space<vmem>>, %arg2: memref<32x288xbf16, #tpu.memory_space<vmem>>, %arg3: memref<32x288xbf16, #tpu.memory_space<vmem>>, %arg4: memref<32x288xbf16, #tpu.memory_space<vmem>>, %arg5: memref<4x288x128xbf16, #tpu.memory_space<vmem>>, %arg6: memref<1x128xf32, #tpu.memory_space<vmem>>, %arg7: memref<32x128xbf16, #tpu.memory_space<vmem>>, %arg8: memref<32x128xbf16, #tpu.memory_space<vmem>>) attributes {dimension_semantics = [#tpu.dimension_semantics<parallel>], iteration_bounds = array<i64: 1>, scalar_prefetch = 0 : i64, scratch_operands = 0 : i64, tpu.core_type = #tpu.core_type<tc>, window_params = [{transform_indices = @transform_0, window_bounds = array<i64: 32, 288>}, {transform_indices = @transform_1, window_bounds = array<i64: 32, 288>}, {transform_indices = @transform_2, window_bounds = array<i64: 32, 288>}, {transform_indices = @transform_3, window_bounds = array<i64: 32, 288>}, {pipeline_mode = #tpu.pipeline_mode<synchronous>, transform_indices = @transform_4, window_bounds = array<i64: 4, 288, 128>}, {pipeline_mode = #tpu.pipeline_mode<synchronous>, transform_indices = @transform_5, window_bounds = array<i64: 1, 128>}, {transform_indices = @transform_6, window_bounds = array<i64: 32, 128>}, {transform_indices = @transform_7, window_bounds = array<i64: 32, 128>}]} {
    %c0 = arith.constant 0 : index
    %c0_0 = arith.constant 0 : index
    %0 = vector.load %arg1[%c0, %c0_0] : memref<32x288xbf16, #tpu.memory_space<vmem>>, vector<32x288xbf16>
    %c0_1 = arith.constant 0 : index
    %c0_2 = arith.constant 0 : index
    %c0_3 = arith.constant 0 : index
    %1 = vector.load %arg5[%c0_1, %c0_2, %c0_3] : memref<4x288x128xbf16, #tpu.memory_space<vmem>>, vector<1x288x128xbf16>
    %2 = vector.shape_cast %1 : vector<1x288x128xbf16> to vector<288x128xbf16>
    %cst = arith.constant dense<0.000000e+00> : vector<32x128xf32>
    %3 = tpu.matmul %0, %2, %cst {dimension_numbers = #tpu.dot_dimension_numbers<[1], [0], [0], [1], [0, 0, 1, 1], [], []>} : vector<32x288xbf16>, vector<288x128xbf16>, vector<32x128xf32> -> vector<32x128xf32>
    %c0_4 = arith.constant 0 : index
    %c0_5 = arith.constant 0 : index
    %4 = vector.load %arg2[%c0_4, %c0_5] : memref<32x288xbf16, #tpu.memory_space<vmem>>, vector<32x288xbf16>
    %c1 = arith.constant 1 : index
    %c0_6 = arith.constant 0 : index
    %c0_7 = arith.constant 0 : index
    %5 = vector.load %arg5[%c1, %c0_6, %c0_7] : memref<4x288x128xbf16, #tpu.memory_space<vmem>>, vector<1x288x128xbf16>
    %6 = vector.shape_cast %5 : vector<1x288x128xbf16> to vector<288x128xbf16>
    %cst_8 = arith.constant dense<0.000000e+00> : vector<32x128xf32>
    %7 = tpu.matmul %4, %6, %cst_8 {dimension_numbers = #tpu.dot_dimension_numbers<[1], [0], [0], [1], [0, 0, 1, 1], [], []>} : vector<32x288xbf16>, vector<288x128xbf16>, vector<32x128xf32> -> vector<32x128xf32>
    %8 = arith.addf %3, %7 : vector<32x128xf32>
    %c0_9 = arith.constant 0 : index
    %c0_10 = arith.constant 0 : index
    %9 = vector.load %arg3[%c0_9, %c0_10] : memref<32x288xbf16, #tpu.memory_space<vmem>>, vector<32x288xbf16>
    %c2 = arith.constant 2 : index
    %c0_11 = arith.constant 0 : index
    %c0_12 = arith.constant 0 : index
    %10 = vector.load %arg5[%c2, %c0_11, %c0_12] : memref<4x288x128xbf16, #tpu.memory_space<vmem>>, vector<1x288x128xbf16>
    %11 = vector.shape_cast %10 : vector<1x288x128xbf16> to vector<288x128xbf16>
    %cst_13 = arith.constant dense<0.000000e+00> : vector<32x128xf32>
    %12 = tpu.matmul %9, %11, %cst_13 {dimension_numbers = #tpu.dot_dimension_numbers<[1], [0], [0], [1], [0, 0, 1, 1], [], []>} : vector<32x288xbf16>, vector<288x128xbf16>, vector<32x128xf32> -> vector<32x128xf32>
    %13 = arith.addf %8, %12 : vector<32x128xf32>
    %c0_14 = arith.constant 0 : index
    %c0_15 = arith.constant 0 : index
    %14 = vector.load %arg4[%c0_14, %c0_15] : memref<32x288xbf16, #tpu.memory_space<vmem>>, vector<32x288xbf16>
    %c3 = arith.constant 3 : index
    %c0_16 = arith.constant 0 : index
    %c0_17 = arith.constant 0 : index
    %15 = vector.load %arg5[%c3, %c0_16, %c0_17] : memref<4x288x128xbf16, #tpu.memory_space<vmem>>, vector<1x288x128xbf16>
    %16 = vector.shape_cast %15 : vector<1x288x128xbf16> to vector<288x128xbf16>
    %cst_18 = arith.constant dense<0.000000e+00> : vector<32x128xf32>
    %17 = tpu.matmul %14, %16, %cst_18 {dimension_numbers = #tpu.dot_dimension_numbers<[1], [0], [0], [1], [0, 0, 1, 1], [], []>} : vector<32x288xbf16>, vector<288x128xbf16>, vector<32x128xf32> -> vector<32x128xf32>
    %18 = arith.addf %13, %17 : vector<32x128xf32>
    %c0_19 = arith.constant 0 : index
    %c0_20 = arith.constant 0 : index
    %19 = vector.load %arg6[%c0_19, %c0_20] : memref<1x128xf32, #tpu.memory_space<vmem>>, vector<1x128xf32>
    %20 = vector.broadcast %19 : vector<1x128xf32> to vector<32x128xf32>
    %21 = arith.addf %18, %20 : vector<32x128xf32>
    %22 = arith.negf %21 : vector<32x128xf32>
    %23 = math.exp %22 : vector<32x128xf32>
    %cst_21 = arith.constant 1.000000e+00 : f32
    %24 = vector.broadcast %cst_21 : f32 to vector<32x128xf32>
    %25 = arith.addf %24, %23 : vector<32x128xf32>
    %26 = arith.divf %24, %25 : vector<32x128xf32>
    %27 = arith.mulf %21, %26 : vector<32x128xf32>
    %c0_22 = arith.constant 0 : index
    %c0_23 = arith.constant 0 : index
    %28 = vector.load %arg7[%c0_22, %c0_23] : memref<32x128xbf16, #tpu.memory_space<vmem>>, vector<32x128xbf16>
    %29 = arith.extf %28 : vector<32x128xbf16> to vector<32x128xf32>
    %30 = arith.addf %27, %29 : vector<32x128xf32>
    %31 = arith.truncf %30 : vector<32x128xf32> to vector<32x128xbf16>
    %c0_24 = arith.constant 0 : index
    %c0_25 = arith.constant 0 : index
    %32 = vector.load %arg8[%c0_24, %c0_25] : memref<32x128xbf16, #tpu.memory_space<vmem>>, vector<32x128xbf16>
    tpu.vector_store %arg8[%c0_24, %c0_25], %31 {strides = array<i32>} : memref<32x128xbf16, #tpu.memory_space<vmem>>, vector<32x128xbf16>,
    return
  }
  func.func @transform_0(%arg0: i32) -> (i32, i32) {
    %c0_i32 = arith.constant 0 : i32
    %c0_i32_0 = arith.constant 0 : i32
    return %arg0, %c0_i32 : i32, i32
  }
  func.func @transform_1(%arg0: i32) -> (i32, i32) {
    %c0_i32 = arith.constant 0 : i32
    %c0_i32_0 = arith.constant 0 : i32
    return %arg0, %c0_i32 : i32, i32
  }
  func.func @transform_2(%arg0: i32) -> (i32, i32) {
    %c0_i32 = arith.constant 0 : i32
    %c0_i32_0 = arith.constant 0 : i32
    return %arg0, %c0_i32 : i32, i32
  }
  func.func @transform_3(%arg0: i32) -> (i32, i32) {
    %c0_i32 = arith.constant 0 : i32
    %c0_i32_0 = arith.constant 0 : i32
    return %arg0, %c0_i32 : i32, i32
  }
  func.func @transform_4(%arg0: i32) -> (i32, i32, i32) {
    %c0_i32 = arith.constant 0 : i32
    %c0_i32_0 = arith.constant 0 : i32
    %c0_i32_1 = arith.constant 0 : i32
    %c0_i32_2 = arith.constant 0 : i32
    return %c0_i32, %c0_i32_0, %c0_i32_1 : i32, i32, i32
  }
  func.func @transform_5(%arg0: i32) -> (i32, i32) {
    %c0_i32 = arith.constant 0 : i32
    %c0_i32_0 = arith.constant 0 : i32
    %c0_i32_1 = arith.constant 0 : i32
    return %c0_i32, %c0_i32_0 : i32, i32
  }
  func.func @transform_6(%arg0: i32) -> (i32, i32) {
    %c0_i32 = arith.constant 0 : i32
    %c0_i32_0 = arith.constant 0 : i32
    return %arg0, %c0_i32 : i32, i32
  }
  func.func @transform_7(%arg0: i32) -> (i32, i32) {
    %c0_i32 = arith.constant 0 : i32
    %c0_i32_0 = arith.constant 0 : i32
    return %arg0, %c0_i32 : i32, i32
  }
}

module attributes {stable_mosaic.version = 11 : i64} {
  func.func @_fused_conv_kernel(%arg0: i32, %arg1: memref<16x288xbf16, #tpu.memory_space<vmem>>, %arg2: memref<16x288xbf16, #tpu.memory_space<vmem>>, %arg3: memref<288x128xbf16, #tpu.memory_space<vmem>>, %arg4: memref<1x128xf32, #tpu.memory_space<vmem>>, %arg5: memref<2x128x128xbf16, #tpu.memory_space<vmem>>, %arg6: memref<1x128xf32, #tpu.memory_space<vmem>>, %arg7: memref<16x128xbf16, #tpu.memory_space<vmem>>) attributes {dimension_semantics = [#tpu.dimension_semantics<parallel>], iteration_bounds = array<i64: 1>, scalar_prefetch = 0 : i64, scratch_operands = 0 : i64, tpu.core_type = #tpu.core_type<tc>, window_params = [{transform_indices = @transform_0, window_bounds = array<i64: 16, 288>}, {transform_indices = @transform_1, window_bounds = array<i64: 16, 288>}, {pipeline_mode = #tpu.pipeline_mode<synchronous>, transform_indices = @transform_2, window_bounds = array<i64: 288, 128>}, {pipeline_mode = #tpu.pipeline_mode<synchronous>, transform_indices = @transform_3, window_bounds = array<i64: 1, 128>}, {pipeline_mode = #tpu.pipeline_mode<synchronous>, transform_indices = @transform_4, window_bounds = array<i64: 2, 128, 128>}, {pipeline_mode = #tpu.pipeline_mode<synchronous>, transform_indices = @transform_5, window_bounds = array<i64: 1, 128>}, {transform_indices = @transform_6, window_bounds = array<i64: 16, 128>}]} {
    %c0 = arith.constant 0 : index
    %c0_0 = arith.constant 0 : index
    %0 = vector.load %arg1[%c0, %c0_0] : memref<16x288xbf16, #tpu.memory_space<vmem>>, vector<16x288xbf16>
    %c0_1 = arith.constant 0 : index
    %c0_2 = arith.constant 0 : index
    %1 = vector.load %arg3[%c0_1, %c0_2] : memref<288x128xbf16, #tpu.memory_space<vmem>>, vector<288x128xbf16>
    %cst = arith.constant dense<0.000000e+00> : vector<16x128xf32>
    %2 = tpu.matmul %0, %1, %cst {dimension_numbers = #tpu.dot_dimension_numbers<[1], [0], [0], [1], [0, 0, 1, 1], [], []>} : vector<16x288xbf16>, vector<288x128xbf16>, vector<16x128xf32> -> vector<16x128xf32>
    %c0_3 = arith.constant 0 : index
    %c0_4 = arith.constant 0 : index
    %3 = vector.load %arg4[%c0_3, %c0_4] : memref<1x128xf32, #tpu.memory_space<vmem>>, vector<1x128xf32>
    %4 = vector.broadcast %3 : vector<1x128xf32> to vector<16x128xf32>
    %5 = arith.addf %2, %4 : vector<16x128xf32>
    %6 = arith.truncf %5 : vector<16x128xf32> to vector<16x128xbf16>
    %7 = arith.negf %6 : vector<16x128xbf16>
    %8 = math.exp %7 : vector<16x128xbf16>
    %cst_5 = arith.constant 1.000000e+00 : bf16
    %9 = vector.broadcast %cst_5 : bf16 to vector<16x128xbf16>
    %10 = arith.addf %9, %8 : vector<16x128xbf16>
    %11 = arith.divf %9, %10 : vector<16x128xbf16>
    %12 = arith.mulf %6, %11 : vector<16x128xbf16>
    %c0_6 = arith.constant 0 : index
    %c0_7 = arith.constant 0 : index
    %c0_8 = arith.constant 0 : index
    %13 = vector.load %arg5[%c0_6, %c0_7, %c0_8] : memref<2x128x128xbf16, #tpu.memory_space<vmem>>, vector<1x128x128xbf16>
    %14 = vector.shape_cast %13 : vector<1x128x128xbf16> to vector<128x128xbf16>
    %cst_9 = arith.constant dense<0.000000e+00> : vector<16x128xf32>
    %15 = tpu.matmul %12, %14, %cst_9 {dimension_numbers = #tpu.dot_dimension_numbers<[1], [0], [0], [1], [0, 0, 1, 1], [], []>} : vector<16x128xbf16>, vector<128x128xbf16>, vector<16x128xf32> -> vector<16x128xf32>
    %c0_10 = arith.constant 0 : index
    %c0_11 = arith.constant 0 : index
    %16 = vector.load %arg2[%c0_10, %c0_11] : memref<16x288xbf16, #tpu.memory_space<vmem>>, vector<16x288xbf16>
    %c0_12 = arith.constant 0 : index
    %c0_13 = arith.constant 0 : index
    %17 = vector.load %arg3[%c0_12, %c0_13] : memref<288x128xbf16, #tpu.memory_space<vmem>>, vector<288x128xbf16>
    %cst_14 = arith.constant dense<0.000000e+00> : vector<16x128xf32>
    %18 = tpu.matmul %16, %17, %cst_14 {dimension_numbers = #tpu.dot_dimension_numbers<[1], [0], [0], [1], [0, 0, 1, 1], [], []>} : vector<16x288xbf16>, vector<288x128xbf16>, vector<16x128xf32> -> vector<16x128xf32>
    %c0_15 = arith.constant 0 : index
    %c0_16 = arith.constant 0 : index
    %19 = vector.load %arg4[%c0_15, %c0_16] : memref<1x128xf32, #tpu.memory_space<vmem>>, vector<1x128xf32>
    %20 = vector.broadcast %19 : vector<1x128xf32> to vector<16x128xf32>
    %21 = arith.addf %18, %20 : vector<16x128xf32>
    %22 = arith.truncf %21 : vector<16x128xf32> to vector<16x128xbf16>
    %23 = arith.negf %22 : vector<16x128xbf16>
    %24 = math.exp %23 : vector<16x128xbf16>
    %cst_17 = arith.constant 1.000000e+00 : bf16
    %25 = vector.broadcast %cst_17 : bf16 to vector<16x128xbf16>
    %26 = arith.addf %25, %24 : vector<16x128xbf16>
    %27 = arith.divf %25, %26 : vector<16x128xbf16>
    %28 = arith.mulf %22, %27 : vector<16x128xbf16>
    %c1 = arith.constant 1 : index
    %c0_18 = arith.constant 0 : index
    %c0_19 = arith.constant 0 : index
    %29 = vector.load %arg5[%c1, %c0_18, %c0_19] : memref<2x128x128xbf16, #tpu.memory_space<vmem>>, vector<1x128x128xbf16>
    %30 = vector.shape_cast %29 : vector<1x128x128xbf16> to vector<128x128xbf16>
    %cst_20 = arith.constant dense<0.000000e+00> : vector<16x128xf32>
    %31 = tpu.matmul %28, %30, %cst_20 {dimension_numbers = #tpu.dot_dimension_numbers<[1], [0], [0], [1], [0, 0, 1, 1], [], []>} : vector<16x128xbf16>, vector<128x128xbf16>, vector<16x128xf32> -> vector<16x128xf32>
    %32 = arith.addf %15, %31 : vector<16x128xf32>
    %c0_21 = arith.constant 0 : index
    %c0_22 = arith.constant 0 : index
    %33 = vector.load %arg6[%c0_21, %c0_22] : memref<1x128xf32, #tpu.memory_space<vmem>>, vector<1x128xf32>
    %34 = vector.broadcast %33 : vector<1x128xf32> to vector<16x128xf32>
    %35 = arith.addf %32, %34 : vector<16x128xf32>
    %36 = arith.truncf %35 : vector<16x128xf32> to vector<16x128xbf16>
    %c0_23 = arith.constant 0 : index
    %c0_24 = arith.constant 0 : index
    %37 = vector.load %arg7[%c0_23, %c0_24] : memref<16x128xbf16, #tpu.memory_space<vmem>>, vector<16x128xbf16>
    tpu.vector_store %arg7[%c0_23, %c0_24], %36 {strides = array<i32>} : memref<16x128xbf16, #tpu.memory_space<vmem>>, vector<16x128xbf16>,
    return
  }
  func.func @transform_0(%arg0: i32) -> (i32, i32) {
    %c0_i32 = arith.constant 0 : i32
    %c0_i32_0 = arith.constant 0 : i32
    return %arg0, %c0_i32 : i32, i32
  }
  func.func @transform_1(%arg0: i32) -> (i32, i32) {
    %c0_i32 = arith.constant 0 : i32
    %c0_i32_0 = arith.constant 0 : i32
    return %arg0, %c0_i32 : i32, i32
  }
  func.func @transform_2(%arg0: i32) -> (i32, i32) {
    %c0_i32 = arith.constant 0 : i32
    %c0_i32_0 = arith.constant 0 : i32
    %c0_i32_1 = arith.constant 0 : i32
    return %c0_i32, %c0_i32_0 : i32, i32
  }
  func.func @transform_3(%arg0: i32) -> (i32, i32) {
    %c0_i32 = arith.constant 0 : i32
    %c0_i32_0 = arith.constant 0 : i32
    %c0_i32_1 = arith.constant 0 : i32
    return %c0_i32, %c0_i32_0 : i32, i32
  }
  func.func @transform_4(%arg0: i32) -> (i32, i32, i32) {
    %c0_i32 = arith.constant 0 : i32
    %c0_i32_0 = arith.constant 0 : i32
    %c0_i32_1 = arith.constant 0 : i32
    %c0_i32_2 = arith.constant 0 : i32
    return %c0_i32, %c0_i32_0, %c0_i32_1 : i32, i32, i32
  }
  func.func @transform_5(%arg0: i32) -> (i32, i32) {
    %c0_i32 = arith.constant 0 : i32
    %c0_i32_0 = arith.constant 0 : i32
    %c0_i32_1 = arith.constant 0 : i32
    return %c0_i32, %c0_i32_0 : i32, i32
  }
  func.func @transform_6(%arg0: i32) -> (i32, i32) {
    %c0_i32 = arith.constant 0 : i32
    %c0_i32_0 = arith.constant 0 : i32
    return %arg0, %c0_i32 : i32, i32
  }
}

module attributes {stable_mosaic.version = 11 : i64} {
  func.func @_fused_conv_kernel(%arg0: i32, %arg1: memref<16x576xbf16, #tpu.memory_space<vmem>>, %arg2: memref<16x576xbf16, #tpu.memory_space<vmem>>, %arg3: memref<576x256xbf16, #tpu.memory_space<vmem>>, %arg4: memref<1x256xf32, #tpu.memory_space<vmem>>, %arg5: memref<2x256x128xbf16, #tpu.memory_space<vmem>>, %arg6: memref<1x128xf32, #tpu.memory_space<vmem>>, %arg7: memref<16x128xbf16, #tpu.memory_space<vmem>>, %arg8: memref<16x128xbf16, #tpu.memory_space<vmem>>) attributes {dimension_semantics = [#tpu.dimension_semantics<parallel>], iteration_bounds = array<i64: 1>, scalar_prefetch = 0 : i64, scratch_operands = 0 : i64, tpu.core_type = #tpu.core_type<tc>, window_params = [{transform_indices = @transform_0, window_bounds = array<i64: 16, 576>}, {transform_indices = @transform_1, window_bounds = array<i64: 16, 576>}, {pipeline_mode = #tpu.pipeline_mode<synchronous>, transform_indices = @transform_2, window_bounds = array<i64: 576, 256>}, {pipeline_mode = #tpu.pipeline_mode<synchronous>, transform_indices = @transform_3, window_bounds = array<i64: 1, 256>}, {pipeline_mode = #tpu.pipeline_mode<synchronous>, transform_indices = @transform_4, window_bounds = array<i64: 2, 256, 128>}, {pipeline_mode = #tpu.pipeline_mode<synchronous>, transform_indices = @transform_5, window_bounds = array<i64: 1, 128>}, {transform_indices = @transform_6, window_bounds = array<i64: 16, 128>}, {transform_indices = @transform_7, window_bounds = array<i64: 16, 128>}]} {
    %c0 = arith.constant 0 : index
    %c0_0 = arith.constant 0 : index
    %0 = vector.load %arg1[%c0, %c0_0] : memref<16x576xbf16, #tpu.memory_space<vmem>>, vector<16x576xbf16>
    %c0_1 = arith.constant 0 : index
    %c0_2 = arith.constant 0 : index
    %1 = vector.load %arg3[%c0_1, %c0_2] : memref<576x256xbf16, #tpu.memory_space<vmem>>, vector<576x256xbf16>
    %cst = arith.constant dense<0.000000e+00> : vector<16x256xf32>
    %2 = tpu.matmul %0, %1, %cst {dimension_numbers = #tpu.dot_dimension_numbers<[1], [0], [0], [1], [0, 0, 1, 1], [], []>} : vector<16x576xbf16>, vector<576x256xbf16>, vector<16x256xf32> -> vector<16x256xf32>
    %c0_3 = arith.constant 0 : index
    %c0_4 = arith.constant 0 : index
    %3 = vector.load %arg4[%c0_3, %c0_4] : memref<1x256xf32, #tpu.memory_space<vmem>>, vector<1x256xf32>
    %4 = vector.broadcast %3 : vector<1x256xf32> to vector<16x256xf32>
    %5 = arith.addf %2, %4 : vector<16x256xf32>
    %6 = arith.truncf %5 : vector<16x256xf32> to vector<16x256xbf16>
    %7 = arith.negf %6 : vector<16x256xbf16>
    %8 = math.exp %7 : vector<16x256xbf16>
    %cst_5 = arith.constant 1.000000e+00 : bf16
    %9 = vector.broadcast %cst_5 : bf16 to vector<16x256xbf16>
    %10 = arith.addf %9, %8 : vector<16x256xbf16>
    %11 = arith.divf %9, %10 : vector<16x256xbf16>
    %12 = arith.mulf %6, %11 : vector<16x256xbf16>
    %c0_6 = arith.constant 0 : index
    %c0_7 = arith.constant 0 : index
    %c0_8 = arith.constant 0 : index
    %13 = vector.load %arg5[%c0_6, %c0_7, %c0_8] : memref<2x256x128xbf16, #tpu.memory_space<vmem>>, vector<1x256x128xbf16>
    %14 = vector.shape_cast %13 : vector<1x256x128xbf16> to vector<256x128xbf16>
    %cst_9 = arith.constant dense<0.000000e+00> : vector<16x128xf32>
    %15 = tpu.matmul %12, %14, %cst_9 {dimension_numbers = #tpu.dot_dimension_numbers<[1], [0], [0], [1], [0, 0, 1, 1], [], []>} : vector<16x256xbf16>, vector<256x128xbf16>, vector<16x128xf32> -> vector<16x128xf32>
    %c0_10 = arith.constant 0 : index
    %c0_11 = arith.constant 0 : index
    %16 = vector.load %arg2[%c0_10, %c0_11] : memref<16x576xbf16, #tpu.memory_space<vmem>>, vector<16x576xbf16>
    %c0_12 = arith.constant 0 : index
    %c0_13 = arith.constant 0 : index
    %17 = vector.load %arg3[%c0_12, %c0_13] : memref<576x256xbf16, #tpu.memory_space<vmem>>, vector<576x256xbf16>
    %cst_14 = arith.constant dense<0.000000e+00> : vector<16x256xf32>
    %18 = tpu.matmul %16, %17, %cst_14 {dimension_numbers = #tpu.dot_dimension_numbers<[1], [0], [0], [1], [0, 0, 1, 1], [], []>} : vector<16x576xbf16>, vector<576x256xbf16>, vector<16x256xf32> -> vector<16x256xf32>
    %c0_15 = arith.constant 0 : index
    %c0_16 = arith.constant 0 : index
    %19 = vector.load %arg4[%c0_15, %c0_16] : memref<1x256xf32, #tpu.memory_space<vmem>>, vector<1x256xf32>
    %20 = vector.broadcast %19 : vector<1x256xf32> to vector<16x256xf32>
    %21 = arith.addf %18, %20 : vector<16x256xf32>
    %22 = arith.truncf %21 : vector<16x256xf32> to vector<16x256xbf16>
    %23 = arith.negf %22 : vector<16x256xbf16>
    %24 = math.exp %23 : vector<16x256xbf16>
    %cst_17 = arith.constant 1.000000e+00 : bf16
    %25 = vector.broadcast %cst_17 : bf16 to vector<16x256xbf16>
    %26 = arith.addf %25, %24 : vector<16x256xbf16>
    %27 = arith.divf %25, %26 : vector<16x256xbf16>
    %28 = arith.mulf %22, %27 : vector<16x256xbf16>
    %c1 = arith.constant 1 : index
    %c0_18 = arith.constant 0 : index
    %c0_19 = arith.constant 0 : index
    %29 = vector.load %arg5[%c1, %c0_18, %c0_19] : memref<2x256x128xbf16, #tpu.memory_space<vmem>>, vector<1x256x128xbf16>
    %30 = vector.shape_cast %29 : vector<1x256x128xbf16> to vector<256x128xbf16>
    %cst_20 = arith.constant dense<0.000000e+00> : vector<16x128xf32>
    %31 = tpu.matmul %28, %30, %cst_20 {dimension_numbers = #tpu.dot_dimension_numbers<[1], [0], [0], [1], [0, 0, 1, 1], [], []>} : vector<16x256xbf16>, vector<256x128xbf16>, vector<16x128xf32> -> vector<16x128xf32>
    %32 = arith.addf %15, %31 : vector<16x128xf32>
    %c0_21 = arith.constant 0 : index
    %c0_22 = arith.constant 0 : index
    %33 = vector.load %arg6[%c0_21, %c0_22] : memref<1x128xf32, #tpu.memory_space<vmem>>, vector<1x128xf32>
    %34 = vector.broadcast %33 : vector<1x128xf32> to vector<16x128xf32>
    %35 = arith.addf %32, %34 : vector<16x128xf32>
    %c0_23 = arith.constant 0 : index
    %c0_24 = arith.constant 0 : index
    %36 = vector.load %arg7[%c0_23, %c0_24] : memref<16x128xbf16, #tpu.memory_space<vmem>>, vector<16x128xbf16>
    %37 = arith.extf %36 : vector<16x128xbf16> to vector<16x128xf32>
    %38 = arith.addf %35, %37 : vector<16x128xf32>
    %39 = arith.truncf %38 : vector<16x128xf32> to vector<16x128xbf16>
    %c0_25 = arith.constant 0 : index
    %c0_26 = arith.constant 0 : index
    %40 = vector.load %arg8[%c0_25, %c0_26] : memref<16x128xbf16, #tpu.memory_space<vmem>>, vector<16x128xbf16>
    tpu.vector_store %arg8[%c0_25, %c0_26], %39 {strides = array<i32>} : memref<16x128xbf16, #tpu.memory_space<vmem>>, vector<16x128xbf16>,
    return
  }
  func.func @transform_0(%arg0: i32) -> (i32, i32) {
    %c0_i32 = arith.constant 0 : i32
    %c0_i32_0 = arith.constant 0 : i32
    return %arg0, %c0_i32 : i32, i32
  }
  func.func @transform_1(%arg0: i32) -> (i32, i32) {
    %c0_i32 = arith.constant 0 : i32
    %c0_i32_0 = arith.constant 0 : i32
    return %arg0, %c0_i32 : i32, i32
  }
  func.func @transform_2(%arg0: i32) -> (i32, i32) {
    %c0_i32 = arith.constant 0 : i32
    %c0_i32_0 = arith.constant 0 : i32
    %c0_i32_1 = arith.constant 0 : i32
    return %c0_i32, %c0_i32_0 : i32, i32
  }
  func.func @transform_3(%arg0: i32) -> (i32, i32) {
    %c0_i32 = arith.constant 0 : i32
    %c0_i32_0 = arith.constant 0 : i32
    %c0_i32_1 = arith.constant 0 : i32
    return %c0_i32, %c0_i32_0 : i32, i32
  }
  func.func @transform_4(%arg0: i32) -> (i32, i32, i32) {
    %c0_i32 = arith.constant 0 : i32
    %c0_i32_0 = arith.constant 0 : i32
    %c0_i32_1 = arith.constant 0 : i32
    %c0_i32_2 = arith.constant 0 : i32
    return %c0_i32, %c0_i32_0, %c0_i32_1 : i32, i32, i32
  }
  func.func @transform_5(%arg0: i32) -> (i32, i32) {
    %c0_i32 = arith.constant 0 : i32
    %c0_i32_0 = arith.constant 0 : i32
    %c0_i32_1 = arith.constant 0 : i32
    return %c0_i32, %c0_i32_0 : i32, i32
  }
  func.func @transform_6(%arg0: i32) -> (i32, i32) {
    %c0_i32 = arith.constant 0 : i32
    %c0_i32_0 = arith.constant 0 : i32
    return %arg0, %c0_i32 : i32, i32
  }
  func.func @transform_7(%arg0: i32) -> (i32, i32) {
    %c0_i32 = arith.constant 0 : i32
    %c0_i32_0 = arith.constant 0 : i32
    return %arg0, %c0_i32 : i32, i32
  }
}

</mosaic_0001>

<llo_original>
// kernel: forward.12
$region0: #{forward.12}
  #allocation0 [shape = 'u32[]', space=smem, size = 0x4, offset = 0x4, fixed_abs, tag = 'smem constant byte address 0x4 - core index']
  #allocation1 [shape = 'u32[144,128]{1,0:T(1,128)}', space=vmem, size = 0x12000, scoped, tag = 'internal scratch']
  %s0 = inlined_call_operand.vmem [shape: bf16[32,32], index: 0, kind: input, shape index: {}]
  %s1 = inlined_call_operand.vmem [shape: bf16[32,32], index: 1, kind: input, shape index: {}]
  %s2 = inlined_call_operand.vmem [shape: bf16[32,32], index: 2, kind: input, shape index: {}]
  %s3 = inlined_call_operand.vmem [shape: bf16[32,32], index: 3, kind: input, shape index: {}]
  %s4 = inlined_call_operand.vmem [shape: bf16[4,32,128], index: 4, kind: input, shape index: {}]
  %s5 = inlined_call_operand.vmem [shape: f32[1,128], index: 5, kind: input, shape index: {}]
  %s6 = inlined_call_operand.vmem [shape: bf16[32,128], index: 6, kind: output, shape index: {}]
  %s7 = sld [smem:[#allocation0]]
  $region34: #{forward.12} parent=0
    _
  %s9 = ssub.s32 1, %s7
  %s10 = scalar_select 0, %s9, %s7
  // Predicated region
  $region2: #{forward.12} parent=0 // pred_check
    _
  $region3: #{forward.12} parent=0 // pred_check_branch
    %12 = sbr.rel (0) target = $region5
  $region4: #{forward.12} parent=0 // pred_region
    _
  $region5: #{forward.12} parent=0 // pred_fallthru
    _
  // Predicated region
  $region6: #{forward.12} parent=0 // pred_check
    _
  $region7: #{forward.12} parent=0 // pred_check_branch
    %14 = sbr.rel (0) target = $region9
  $region8: #{forward.12} parent=0 // pred_region
    _
  $region9: #{forward.12} parent=0 // pred_fallthru
    _
  // Predicated region
  $region10: #{forward.12} parent=0 // pred_check
    _
  $region11: #{forward.12} parent=0 // pred_check_branch
    %16 = sbr.rel (0) target = $region13
  $region12: #{forward.12} parent=0 // pred_region
    _
  $region13: #{forward.12} parent=0 // pred_fallthru
    _
  // Predicated region
  $region14: #{forward.12} parent=0 // pred_check
    _
  $region15: #{forward.12} parent=0 // pred_check_branch
    %18 = sbr.rel (0) target = $region17
  $region16: #{forward.12} parent=0 // pred_region
    _
  $region17: #{forward.12} parent=0 // pred_fallthru
    _
  // Predicated region
  $region18: #{forward.12} parent=0 // pred_check
    _
  $region19: #{forward.12} parent=0 // pred_check_branch
    %20 = sbr.rel (0) target = $region21
  $region20: #{forward.12} parent=0 // pred_region
    _
  $region21: #{forward.12} parent=0 // pred_fallthru
    _
  // Predicated region
  $region22: #{forward.12} parent=0 // pred_check
    _
  $region23: #{forward.12} parent=0 // pred_check_branch
    %22 = sbr.rel (0) target = $region25
  $region24: #{forward.12} parent=0 // pred_region
    _
  $region25: #{forward.12} parent=0 // pred_fallthru
    _
  %v24 = vld [vmem:[%s0] sm:$0xf]
  %v25 = vld [vmem:[%s0 + $0x4] sm:$0xf]
  %v26 = vld [vmem:[%s0 + $0x8] sm:$0xf]
  %v27 = vld [vmem:[%s0 + $0xc] sm:$0xf]
  %v28 = vld [vmem:[%s4] sm:$0xf]
  %v29 = vld [vmem:[%s4 + $0x4] sm:$0xf]
  %v30 = vld [vmem:[%s4 + $0x8] sm:$0xf]
  %v31 = vld [vmem:[%s4 + $0xc] sm:$0xf]
  %v32 = vld [vmem:[%s1] sm:$0xf]
  %v33 = vld [vmem:[%s1 + $0x4] sm:$0xf]
  %v34 = vld [vmem:[%s1 + $0x8] sm:$0xf]
  %v35 = vld [vmem:[%s1 + $0xc] sm:$0xf]
  %s36 = scalar_lea.vmem %s4, 16
  %v37 = vld [vmem:[%s36] sm:$0xf]
  %v38 = vld [vmem:[%s36 + $0x4] sm:$0xf]
  %v39 = vld [vmem:[%s36 + $0x8] sm:$0xf]
  %v40 = vld [vmem:[%s36 + $0xc] sm:$0xf]
  %v45 = vunpack.c.l.b16 %v32
  %v46 = vunpack.c.l.b16 %v33
  %v47 = vunpack.c.l.b16 %v34
  %v48 = vunpack.c.l.b16 %v35
  %v49 = vpack.c.b16 %v46, %v45
  %v50 = vpack.c.b16 %v48, %v47
  %v55 = vunpack.c.l.b16 %v37
  %v56 = vunpack.c.l.b16 %v38
  %v57 = vunpack.c.l.b16 %v39
  %v58 = vunpack.c.l.b16 %v40
  %v59 = vpack.c.b16 %v56, %v55
  %v60 = vpack.c.b16 %v58, %v57
  %vm63 = vcmask 261120
  %v65 = vsel %vm63, %v49, 0
  %v68 = vsel %vm63, %v50, 0
  %70 = vmatprep.subr.bf16.mxu0 0
  %71 = vmatpush1.bf16.msra.mxu0 0
  %72 = vmatprep.subr.bf16.mxu0 0
  %73 = vmatpush1.bf16.msra.mxu0 0
  %74 = vmatprep.subr.bf16.mxu0 0
  %75 = vmatpush1.bf16.msra.mxu0 0
  %76 = vmatprep.subr.bf16.mxu0 0
  %77 = vmatpush1.bf16.msra.mxu0 0
  %78 = vmatprep.subr.bf16.mxu0 0
  %79 = vmatpush1.bf16.msra.mxu0 0
  %80 = vmatprep.subr.bf16.mxu0 0
  %81 = vmatpush1.bf16.msra.mxu0 0
  %82 = vmatprep.subr.bf16.mxu0 0
  %83 = vmatpush1.bf16.msra.mxu0 %v60
  %84 = vmatprep.subr.bf16.mxu0 0
  %85 = vmatpush1.bf16.msra.mxu0 %v59
  %86 = vmatprep.subr.bf16.mxu0 0
  %87 = vmatpush2.bf16.msra.mxu0 0
  %88 = vmatprep.subr.bf16.mxu0 0
  %89 = vmatpush2.bf16.msra.mxu0 0
  %90 = vmatprep.subr.bf16.mxu0 0
  %91 = vmatpush2.bf16.msra.mxu0 0
  %92 = vmatprep.subr.bf16.mxu0 0
  %93 = vmatpush2.bf16.msra.mxu0 0
  %94 = vmatprep.subr.bf16.mxu0 0
  %95 = vmatpush2.bf16.msra.mxu0 0
  %96 = vmatprep.subr.bf16.mxu0 0
  %97 = vmatpush2.bf16.msra.mxu0 0
  %98 = vmatprep.subr.bf16.mxu0 0
  %99 = vmatpush2.bf16.msra.mxu0 0
  %100 = vmatprep.subr.bf16.mxu0 0
  %101 = vmatpush2.bf16.msra.mxu0 0
  %102 = vmatprep.mubr.bf16.mxu0 0
  %103 = vmatmul.mubr.bf16.gmra.mxu0 %v65
  %v104 = vpop.f32.mrf.mxu0
  %v105 = vadd.f32 0.0, %v104
  %v106 = vpop.f32.mrf.mxu0
  %v107 = vpop.f32.mrf.mxu0
  %v108 = vadd.f32 0.0, %v107
  %v109 = vpop.f32.mrf.mxu0
  %110 = vmatprep.mubr.bf16.mxu0 0
  %111 = vmatmul.mubr.bf16.gmra.mxu0 %v68
  %v112 = vpop.f32.mrf.mxu0
  %v113 = vadd.f32 0.0, %v112
  %v114 = vpop.f32.mrf.mxu0
  %v115 = vpop.f32.mrf.mxu0
  %v116 = vadd.f32 0.0, %v115
  %v117 = vpop.f32.mrf.mxu0
  %118 = vdwg.mxu0
  %v123 = vunpack.c.l.b16 %v24
  %v124 = vunpack.c.l.b16 %v25
  %v125 = vunpack.c.l.b16 %v26
  %v126 = vunpack.c.l.b16 %v27
  %v127 = vpack.c.b16 %v124, %v123
  %v128 = vpack.c.b16 %v126, %v125
  %v133 = vunpack.c.l.b16 %v28
  %v134 = vunpack.c.l.b16 %v29
  %v135 = vunpack.c.l.b16 %v30
  %v136 = vunpack.c.l.b16 %v31
  %v137 = vpack.c.b16 %v134, %v133
  %v138 = vpack.c.b16 %v136, %v135
  %v142 = vsel %vm63, %v127, 0
  %v145 = vsel %vm63, %v128, 0
  %147 = vmatprep.subr.bf16.mxu0 0
  %148 = vmatpush1.bf16.msra.mxu0 0
  %149 = vmatprep.subr.bf16.mxu0 0
  %150 = vmatpush1.bf16.msra.mxu0 0
  %151 = vmatprep.subr.bf16.mxu0 0
  %152 = vmatpush1.bf16.msra.mxu0 0
  %153 = vmatprep.subr.bf16.mxu0 0
  %154 = vmatpush1.bf16.msra.mxu0 0
  %155 = vmatprep.subr.bf16.mxu0 0
  %156 = vmatpush1.bf16.msra.mxu0 0
  %157 = vmatprep.subr.bf16.mxu0 0
  %158 = vmatpush1.bf16.msra.mxu0 0
  %159 = vmatprep.subr.bf16.mxu0 0
  %160 = vmatpush1.bf16.msra.mxu0 %v138
  %161 = vmatprep.subr.bf16.mxu0 0
  %162 = vmatpush1.bf16.msra.mxu0 %v137
  %163 = vmatprep.subr.bf16.mxu0 0
  %164 = vmatpush2.bf16.msra.mxu0 0
  %165 = vmatprep.subr.bf16.mxu0 0
  %166 = vmatpush2.bf16.msra.mxu0 0
  %167 = vmatprep.subr.bf16.mxu0 0
  %168 = vmatpush2.bf16.msra.mxu0 0
  %169 = vmatprep.subr.bf16.mxu0 0
  %170 = vmatpush2.bf16.msra.mxu0 0
  %171 = vmatprep.subr.bf16.mxu0 0
  %172 = vmatpush2.bf16.msra.mxu0 0
  %173 = vmatprep.subr.bf16.mxu0 0
  %174 = vmatpush2.bf16.msra.mxu0 0
  %175 = vmatprep.subr.bf16.mxu0 0
  %176 = vmatpush2.bf16.msra.mxu0 0
  %177 = vmatprep.subr.bf16.mxu0 0
  %178 = vmatpush2.bf16.msra.mxu0 0
  %179 = vmatprep.mubr.bf16.mxu0 0
  %180 = vmatmul.mubr.bf16.gmra.mxu0 %v142
  %v181 = vpop.f32.mrf.mxu0
  %v182 = vadd.f32 %v105, %v181
  %v183 = vpop.f32.mrf.mxu0
  %v184 = vpop.f32.mrf.mxu0
  %v185 = vadd.f32 %v108, %v184
  %v186 = vpop.f32.mrf.mxu0
  %187 = vmatprep.mubr.bf16.mxu0 0
  %188 = vmatmul.mubr.bf16.gmra.mxu0 %v145
  %v189 = vpop.f32.mrf.mxu0
  %v190 = vadd.f32 %v113, %v189
  %v191 = vpop.f32.mrf.mxu0
  %v192 = vpop.f32.mrf.mxu0
  %v193 = vadd.f32 %v116, %v192
  %v194 = vpop.f32.mrf.mxu0
  %195 = vdwg.mxu0
  %v196 = vld [vmem:[%s2] sm:$0xf]
  %v197 = vld [vmem:[%s2 + $0x4] sm:$0xf]
  %v198 = vld [vmem:[%s2 + $0x8] sm:$0xf]
  %v199 = vld [vmem:[%s2 + $0xc] sm:$0xf]
  %s200 = scalar_lea.vmem %s4, 32
  %v201 = vld [vmem:[%s200] sm:$0xf]
  %v202 = vld [vmem:[%s200 + $0x4] sm:$0xf]
  %v203 = vld [vmem:[%s200 + $0x8] sm:$0xf]
  %v204 = vld [vmem:[%s200 + $0xc] sm:$0xf]
  %v209 = vunpack.c.l.b16 %v196
  %v210 = vunpack.c.l.b16 %v197
  %v211 = vunpack.c.l.b16 %v198
  %v212 = vunpack.c.l.b16 %v199
  %v213 = vpack.c.b16 %v210, %v209
  %v214 = vpack.c.b16 %v212, %v211
  %v219 = vunpack.c.l.b16 %v201
  %v220 = vunpack.c.l.b16 %v202
  %v221 = vunpack.c.l.b16 %v203
  %v222 = vunpack.c.l.b16 %v204
  %v223 = vpack.c.b16 %v220, %v219
  %v224 = vpack.c.b16 %v222, %v221
  %v228 = vsel %vm63, %v213, 0
  %v231 = vsel %vm63, %v214, 0
  %233 = vmatprep.subr.bf16.mxu0 0
  %234 = vmatpush1.bf16.msra.mxu0 0
  %235 = vmatprep.subr.bf16.mxu0 0
  %236 = vmatpush1.bf16.msra.mxu0 0
  %237 = vmatprep.subr.bf16.mxu0 0
  %238 = vmatpush1.bf16.msra.mxu0 0
  %239 = vmatprep.subr.bf16.mxu0 0
  %240 = vmatpush1.bf16.msra.mxu0 0
  %241 = vmatprep.subr.bf16.mxu0 0
  %242 = vmatpush1.bf16.msra.mxu0 0
  %243 = vmatprep.subr.bf16.mxu0 0
  %244 = vmatpush1.bf16.msra.mxu0 0
  %245 = vmatprep.subr.bf16.mxu0 0
  %246 = vmatpush1.bf16.msra.mxu0 %v224
  %247 = vmatprep.subr.bf16.mxu0 0
  %248 = vmatpush1.bf16.msra.mxu0 %v223
  %249 = vmatprep.subr.bf16.mxu0 0
  %250 = vmatpush2.bf16.msra.mxu0 0
  %251 = vmatprep.subr.bf16.mxu0 0
  %252 = vmatpush2.bf16.msra.mxu0 0
  %253 = vmatprep.subr.bf16.mxu0 0
  %254 = vmatpush2.bf16.msra.mxu0 0
  %255 = vmatprep.subr.bf16.mxu0 0
  %256 = vmatpush2.bf16.msra.mxu0 0
  %257 = vmatprep.subr.bf16.mxu0 0
  %258 = vmatpush2.bf16.msra.mxu0 0
  %259 = vmatprep.subr.bf16.mxu0 0
  %260 = vmatpush2.bf16.msra.mxu0 0
  %261 = vmatprep.subr.bf16.mxu0 0
  %262 = vmatpush2.bf16.msra.mxu0 0
  %263 = vmatprep.subr.bf16.mxu0 0
  %264 = vmatpush2.bf16.msra.mxu0 0
  %265 = vmatprep.mubr.bf16.mxu0 0
  %266 = vmatmul.mubr.bf16.gmra.mxu0 %v228
  %v267 = vpop.f32.mrf.mxu0
  %v268 = vadd.f32 0.0, %v267
  %v269 = vpop.f32.mrf.mxu0
  %v270 = vpop.f32.mrf.mxu0
  %v271 = vadd.f32 0.0, %v270
  %v272 = vpop.f32.mrf.mxu0
  %273 = vmatprep.mubr.bf16.mxu0 0
  %274 = vmatmul.mubr.bf16.gmra.mxu0 %v231
  %v275 = vpop.f32.mrf.mxu0
  %v276 = vadd.f32 0.0, %v275
  %v277 = vpop.f32.mrf.mxu0
  %v278 = vpop.f32.mrf.mxu0
  %v279 = vadd.f32 0.0, %v278
  %v280 = vpop.f32.mrf.mxu0
  %281 = vdwg.mxu0
  %v282 = vadd.f32 %v182, %v268
  %v283 = vadd.f32 %v185, %v271
  %v284 = vadd.f32 %v190, %v276
  %v285 = vadd.f32 %v193, %v279
  %v286 = vld [vmem:[%s3] sm:$0xf]
  %v287 = vld [vmem:[%s3 + $0x4] sm:$0xf]
  %v288 = vld [vmem:[%s3 + $0x8] sm:$0xf]
  %v289 = vld [vmem:[%s3 + $0xc] sm:$0xf]
  %s290 = scalar_lea.vmem %s4, 48
  %v291 = vld [vmem:[%s290] sm:$0xf]
  %v292 = vld [vmem:[%s290 + $0x4] sm:$0xf]
  %v293 = vld [vmem:[%s290 + $0x8] sm:$0xf]
  %v294 = vld [vmem:[%s290 + $0xc] sm:$0xf]
  %v299 = vunpack.c.l.b16 %v286
  %v300 = vunpack.c.l.b16 %v287
  %v301 = vunpack.c.l.b16 %v288
  %v302 = vunpack.c.l.b16 %v289
  %v303 = vpack.c.b16 %v300, %v299
  %v304 = vpack.c.b16 %v302, %v301
  %v309 = vunpack.c.l.b16 %v291
  %v310 = vunpack.c.l.b16 %v292
  %v311 = vunpack.c.l.b16 %v293
  %v312 = vunpack.c.l.b16 %v294
  %v313 = vpack.c.b16 %v310, %v309
  %v314 = vpack.c.b16 %v312, %v311
  %v318 = vsel %vm63, %v303, 0
  %v321 = vsel %vm63, %v304, 0
  %323 = vmatprep.subr.bf16.mxu0 0
  %324 = vmatpush1.bf16.msra.mxu0 0
  %325 = vmatprep.subr.bf16.mxu0 0
  %326 = vmatpush1.bf16.msra.mxu0 0
  %327 = vmatprep.subr.bf16.mxu0 0
  %328 = vmatpush1.bf16.msra.mxu0 0
  %329 = vmatprep.subr.bf16.mxu0 0
  %330 = vmatpush1.bf16.msra.mxu0 0
  %331 = vmatprep.subr.bf16.mxu0 0
  %332 = vmatpush1.bf16.msra.mxu0 0
  %333 = vmatprep.subr.bf16.mxu0 0
  %334 = vmatpush1.bf16.msra.mxu0 0
  %335 = vmatprep.subr.bf16.mxu0 0
  %336 = vmatpush1.bf16.msra.mxu0 %v314
  %337 = vmatprep.subr.bf16.mxu0 0
  %338 = vmatpush1.bf16.msra.mxu0 %v313
  %339 = vmatprep.subr.bf16.mxu0 0
  %340 = vmatpush2.bf16.msra.mxu0 0
  %341 = vmatprep.subr.bf16.mxu0 0
  %342 = vmatpush2.bf16.msra.mxu0 0
  %343 = vmatprep.subr.bf16.mxu0 0
  %344 = vmatpush2.bf16.msra.mxu0 0
  %345 = vmatprep.subr.bf16.mxu0 0
  %346 = vmatpush2.bf16.msra.mxu0 0
  %347 = vmatprep.subr.bf16.mxu0 0
  %348 = vmatpush2.bf16.msra.mxu0 0
  %349 = vmatprep.subr.bf16.mxu0 0
  %350 = vmatpush2.bf16.msra.mxu0 0
  %351 = vmatprep.subr.bf16.mxu0 0
  %352 = vmatpush2.bf16.msra.mxu0 0
  %353 = vmatprep.subr.bf16.mxu0 0
  %354 = vmatpush2.bf16.msra.mxu0 0
  %355 = vmatprep.mubr.bf16.mxu0 0
  %356 = vmatmul.mubr.bf16.gmra.mxu0 %v318
  %v357 = vpop.f32.mrf.mxu0
  %v358 = vadd.f32 0.0, %v357
  %v359 = vpop.f32.mrf.mxu0
  %v360 = vpop.f32.mrf.mxu0
  %v361 = vadd.f32 0.0, %v360
  %v362 = vpop.f32.mrf.mxu0
  %363 = vmatprep.mubr.bf16.mxu0 0
  %364 = vmatmul.mubr.bf16.gmra.mxu0 %v321
  %v365 = vpop.f32.mrf.mxu0
  %v366 = vadd.f32 0.0, %v365
  %v367 = vpop.f32.mrf.mxu0
  %v368 = vpop.f32.mrf.mxu0
  %v369 = vadd.f32 0.0, %v368
  %v370 = vpop.f32.mrf.mxu0
  %371 = vdwg.mxu0
  %v372 = vadd.f32 %v282, %v358
  %v373 = vadd.f32 %v283, %v361
  %v374 = vadd.f32 %v284, %v366
  %v375 = vadd.f32 %v285, %v369
  %v376 = vld [vmem:[%s5] sm:$0x1]
  %v378 = vlaneseq
  %v379 = vshrl.u32 %v378, 7
  %v380 = vsub.s32 0, %v379
  %v381 = vrot.slane %v376, %v380
  %v383 = vadd.f32 %v372, %v381
  %v384 = vadd.f32 %v373, %v381
  %v385 = vadd.f32 %v374, %v381
  %v386 = vadd.f32 %v375, %v381
  %v387 = vxor.u32 %v383, 2147483648
  %v388 = vxor.u32 %v384, 2147483648
  %v389 = vxor.u32 %v385, 2147483648
  %v390 = vxor.u32 %v386, 2147483648
  %v391 = vmul.f32 %v387, 1.442695
  %v392 = vpow.pop %v391
  %v393 = vmul.f32 %v388, 1.442695
  %v394 = vpow.pop %v393
  %v395 = vmul.f32 %v389, 1.442695
  %v396 = vpow.pop %v395
  %v397 = vmul.f32 %v390, 1.442695
  %v398 = vpow.pop %v397
  %v399 = vadd.f32 %v392, 1.0
  %v400 = vadd.f32 %v394, 1.0
  %v401 = vadd.f32 %v396, 1.0
  %v402 = vadd.f32 %v398, 1.0
  %v403 = vrcp.pop %v399
  %v404 = vmul.f32 1.0, %v403
  %v405 = vrcp.pop %v400
  %v406 = vmul.f32 1.0, %v405
  %v407 = vrcp.pop %v401
  %v408 = vmul.f32 1.0, %v407
  %v409 = vrcp.pop %v402
  %v410 = vmul.f32 1.0, %v409
  %v411 = vmul.f32 %v383, %v404
  %v412 = vmul.f32 %v384, %v406
  %v413 = vmul.f32 %v385, %v408
  %v414 = vmul.f32 %v386, %v410
  %v415 = vpack.c.bf16 %v412, %v411
  %v416 = vpack.c.bf16 %v414, %v413
  %v419 = vunpack.c.l.b16 %v415
  %v420 = vunpack.c.h.b16 %v415
  %v421 = vunpack.c.l.b16 %v416
  %v422 = vunpack.c.h.b16 %v416
  %v423 = vpack.c.b16 %v419, %v419
  %v424 = vpack.c.b16 %v420, %v420
  %v425 = vpack.c.b16 %v421, %v421
  %v426 = vpack.c.b16 %v422, %v422
  %431 = vst [vmem:[%s6] sm:$0xf] %v423
  %432 = vst [vmem:[%s6 + $0x4] sm:$0xf] %v424
  %433 = vst [vmem:[%s6 + $0x8] sm:$0xf] %v425
  %434 = vst [vmem:[%s6 + $0xc] sm:$0xf] %v426
  // Predicated region
  $region26: #{forward.12} parent=0 // pred_check
    _
  $region27: #{forward.12} parent=0 // pred_check_branch
    %436 = sbr.rel (0) target = $region29
  $region28: #{forward.12} parent=0 // pred_region
    _
  $region29: #{forward.12} parent=0 // pred_fallthru
    _
  // Predicated region
  $region30: #{forward.12} parent=0 // pred_check
    _
  $region31: #{forward.12} parent=0 // pred_check_branch
    %438 = sbr.rel (0) target = $region33
  $region32: #{forward.12} parent=0 // pred_region
    _
  $region33: #{forward.12} parent=0 // pred_fallthru
    _

// kernel: forward.13
$region0: #{forward.13}
  #allocation0 [shape = 'u32[]', space=smem, size = 0x4, offset = 0x4, fixed_abs, tag = 'smem constant byte address 0x4 - core index']
  #allocation1 [shape = 'u32[144,128]{1,0:T(1,128)}', space=vmem, size = 0x12000, scoped, tag = 'internal scratch']
  %s0 = inlined_call_operand.vmem [shape: bf16[32,288], index: 0, kind: input, shape index: {}]
  %s1 = inlined_call_operand.vmem [shape: bf16[32,288], index: 1, kind: input, shape index: {}]
  %s2 = inlined_call_operand.vmem [shape: bf16[32,288], index: 2, kind: input, shape index: {}]
  %s3 = inlined_call_operand.vmem [shape: bf16[32,288], index: 3, kind: input, shape index: {}]
  %s4 = inlined_call_operand.vmem [shape: bf16[4,288,128], index: 4, kind: input, shape index: {}]
  %s5 = inlined_call_operand.vmem [shape: f32[1,128], index: 5, kind: input, shape index: {}]
  %s6 = inlined_call_operand.vmem [shape: bf16[32,128], index: 6, kind: input, shape index: {}]
  %s7 = inlined_call_operand.vmem [shape: bf16[32,128], index: 7, kind: output, shape index: {}]
  %s8 = sld [smem:[#allocation0]]
  $region38: #{forward.13} parent=0
    _
  %s10 = ssub.s32 1, %s8
  %s11 = scalar_select 0, %s10, %s8
  // Predicated region
  $region2: #{forward.13} parent=0 // pred_check
    _
  $region3: #{forward.13} parent=0 // pred_check_branch
    %13 = sbr.rel (0) target = $region5
  $region4: #{forward.13} parent=0 // pred_region
    _
  $region5: #{forward.13} parent=0 // pred_fallthru
    _
  // Predicated region
  $region6: #{forward.13} parent=0 // pred_check
    _
  $region7: #{forward.13} parent=0 // pred_check_branch
    %15 = sbr.rel (0) target = $region9
  $region8: #{forward.13} parent=0 // pred_region
    _
  $region9: #{forward.13} parent=0 // pred_fallthru
    _
  // Predicated region
  $region10: #{forward.13} parent=0 // pred_check
    _
  $region11: #{forward.13} parent=0 // pred_check_branch
    %17 = sbr.rel (0) target = $region13
  $region12: #{forward.13} parent=0 // pred_region
    _
  $region13: #{forward.13} parent=0 // pred_fallthru
    _
  // Predicated region
  $region14: #{forward.13} parent=0 // pred_check
    _
  $region15: #{forward.13} parent=0 // pred_check_branch
    %19 = sbr.rel (0) target = $region17
  $region16: #{forward.13} parent=0 // pred_region
    _
  $region17: #{forward.13} parent=0 // pred_fallthru
    _
  // Predicated region
  $region18: #{forward.13} parent=0 // pred_check
    _
  $region19: #{forward.13} parent=0 // pred_check_branch
    %21 = sbr.rel (0) target = $region21
  $region20: #{forward.13} parent=0 // pred_region
    _
  $region21: #{forward.13} parent=0 // pred_fallthru
    _
  // Predicated region
  $region22: #{forward.13} parent=0 // pred_check
    _
  $region23: #{forward.13} parent=0 // pred_check_branch
    %23 = sbr.rel (0) target = $region25
  $region24: #{forward.13} parent=0 // pred_region
    _
  $region25: #{forward.13} parent=0 // pred_fallthru
    _
  // Predicated region
  $region26: #{forward.13} parent=0 // pred_check
    _
  $region27: #{forward.13} parent=0 // pred_check_branch
    %25 = sbr.rel (0) target = $region29
  $region28: #{forward.13} parent=0 // pred_region
    _
  $region29: #{forward.13} parent=0 // pred_fallthru
    _
  %v27 = vld [vmem:[%s0] sm:$0xff]
  %v28 = vld [vmem:[%s0 + $0x8] sm:$0xf]
  %v29 = vld [vmem:[%s0 + $0xc] sm:$0xff]
  %v30 = vld [vmem:[%s0 + $0x14] sm:$0xf]
  %v31 = vld [vmem:[%s0 + $0x18] sm:$0xff]
  %v32 = vld [vmem:[%s0 + $0x20] sm:$0xf]
  %v33 = vld [vmem:[%s0 + $0x24] sm:$0xff]
  %v34 = vld [vmem:[%s0 + $0x2c] sm:$0xf]
  %v35 = vld [vmem:[%s4] sm:$0xf]
  %v36 = vld [vmem:[%s4 + $0x4] sm:$0xf]
  %v37 = vld [vmem:[%s4 + $0x8] sm:$0xf]
  %v38 = vld [vmem:[%s4 + $0xc] sm:$0xf]
  %v39 = vld [vmem:[%s4 + $0x10] sm:$0xf]
  %v40 = vld [vmem:[%s4 + $0x14] sm:$0xf]
  %v41 = vld [vmem:[%s4 + $0x18] sm:$0xf]
  %v42 = vld [vmem:[%s4 + $0x1c] sm:$0xf]
  %v43 = vld [vmem:[%s4 + $0x20] sm:$0xf]
  %v44 = vld [vmem:[%s4 + $0x24] sm:$0xf]
  %v45 = vld [vmem:[%s4 + $0x28] sm:$0xf]
  %v46 = vld [vmem:[%s4 + $0x2c] sm:$0xf]
  %v47 = vld [vmem:[%s4 + $0x30] sm:$0xf]
  %v48 = vld [vmem:[%s4 + $0x34] sm:$0xf]
  %v49 = vld [vmem:[%s4 + $0x38] sm:$0xf]
  %v50 = vld [vmem:[%s4 + $0x3c] sm:$0xf]
  %v51 = vld [vmem:[%s4 + $0x40] sm:$0xf]
  %v52 = vld [vmem:[%s4 + $0x44] sm:$0xf]
  %v53 = vld [vmem:[%s4 + $0x48] sm:$0xf]
  %v54 = vld [vmem:[%s4 + $0x4c] sm:$0xf]
  %v55 = vld [vmem:[%s4 + $0x50] sm:$0xf]
  %v56 = vld [vmem:[%s4 + $0x54] sm:$0xf]
  %v57 = vld [vmem:[%s4 + $0x58] sm:$0xf]
  %v58 = vld [vmem:[%s4 + $0x5c] sm:$0xf]
  %v59 = vld [vmem:[%s4 + $0x60] sm:$0xf]
  %v60 = vld [vmem:[%s4 + $0x64] sm:$0xf]
  %v61 = vld [vmem:[%s4 + $0x68] sm:$0xf]
  %v62 = vld [vmem:[%s4 + $0x6c] sm:$0xf]
  %v63 = vld [vmem:[%s4 + $0x70] sm:$0xf]
  %v64 = vld [vmem:[%s4 + $0x74] sm:$0xf]
  %v65 = vld [vmem:[%s4 + $0x78] sm:$0xf]
  %v66 = vld [vmem:[%s4 + $0x7c] sm:$0xf]
  %v67 = vld [vmem:[%s4 + $0x80] sm:$0xf]
  %v68 = vld [vmem:[%s4 + $0x84] sm:$0xf]
  %v69 = vld [vmem:[%s4 + $0x88] sm:$0xf]
  %v70 = vld [vmem:[%s4 + $0x8c] sm:$0xf]
  %v71 = vld [vmem:[%s1] sm:$0xff]
  %v72 = vld [vmem:[%s1 + $0x8] sm:$0xf]
  %v73 = vld [vmem:[%s1 + $0xc] sm:$0xff]
  %v74 = vld [vmem:[%s1 + $0x14] sm:$0xf]
  %v75 = vld [vmem:[%s1 + $0x18] sm:$0xff]
  %v76 = vld [vmem:[%s1 + $0x20] sm:$0xf]
  %v77 = vld [vmem:[%s1 + $0x24] sm:$0xff]
  %v78 = vld [vmem:[%s1 + $0x2c] sm:$0xf]
  %s79 = scalar_lea.vmem %s4, 144
  %v80 = vld [vmem:[%s79] sm:$0xf]
  %v81 = vld [vmem:[%s79 + $0x4] sm:$0xf]
  %v82 = vld [vmem:[%s79 + $0x8] sm:$0xf]
  %v83 = vld [vmem:[%s79 + $0xc] sm:$0xf]
  %v84 = vld [vmem:[%s79 + $0x10] sm:$0xf]
  %v85 = vld [vmem:[%s79 + $0x14] sm:$0xf]
  %v86 = vld [vmem:[%s79 + $0x18] sm:$0xf]
  %v87 = vld [vmem:[%s79 + $0x1c] sm:$0xf]
  %v88 = vld [vmem:[%s79 + $0x20] sm:$0xf]
  %v89 = vld [vmem:[%s79 + $0x24] sm:$0xf]
  %v90 = vld [vmem:[%s79 + $0x28] sm:$0xf]
  %v91 = vld [vmem:[%s79 + $0x2c] sm:$0xf]
  %v92 = vld [vmem:[%s79 + $0x30] sm:$0xf]
  %v93 = vld [vmem:[%s79 + $0x34] sm:$0xf]
  %v94 = vld [vmem:[%s79 + $0x38] sm:$0xf]
  %v95 = vld [vmem:[%s79 + $0x3c] sm:$0xf]
  %v96 = vld [vmem:[%s79 + $0x40] sm:$0xf]
  %v97 = vld [vmem:[%s79 + $0x44] sm:$0xf]
  %v98 = vld [vmem:[%s79 + $0x48] sm:$0xf]
  %v99 = vld [vmem:[%s79 + $0x4c] sm:$0xf]
  %v100 = vld [vmem:[%s79 + $0x50] sm:$0xf]
  %v101 = vld [vmem:[%s79 + $0x54] sm:$0xf]
  %v102 = vld [vmem:[%s79 + $0x58] sm:$0xf]
  %v103 = vld [vmem:[%s79 + $0x5c] sm:$0xf]
  %v104 = vld [vmem:[%s79 + $0x60] sm:$0xf]
  %v105 = vld [vmem:[%s79 + $0x64] sm:$0xf]
  %v106 = vld [vmem:[%s79 + $0x68] sm:$0xf]
  %v107 = vld [vmem:[%s79 + $0x6c] sm:$0xf]
  %v108 = vld [vmem:[%s79 + $0x70] sm:$0xf]
  %v109 = vld [vmem:[%s79 + $0x74] sm:$0xf]
  %v110 = vld [vmem:[%s79 + $0x78] sm:$0xf]
  %v111 = vld [vmem:[%s79 + $0x7c] sm:$0xf]
  %v112 = vld [vmem:[%s79 + $0x80] sm:$0xf]
  %v113 = vld [vmem:[%s79 + $0x84] sm:$0xf]
  %v114 = vld [vmem:[%s79 + $0x88] sm:$0xf]
  %v115 = vld [vmem:[%s79 + $0x8c] sm:$0xf]
  %v124 = vunpack.c.l.b16 %v71
  %v125 = vunpack.c.h.b16 %v71
  %v126 = vunpack.c.l.b16 %v72
  %v127 = vunpack.c.l.b16 %v73
  %v128 = vunpack.c.h.b16 %v73
  %v129 = vunpack.c.l.b16 %v74
  %v130 = vunpack.c.l.b16 %v75
  %v131 = vunpack.c.h.b16 %v75
  %v132 = vunpack.c.l.b16 %v76
  %v133 = vunpack.c.l.b16 %v77
  %v134 = vunpack.c.h.b16 %v77
  %v135 = vunpack.c.l.b16 %v78
  %v136 = vpack.c.b16 %v127, %v124
  %v137 = vpack.c.b16 %v128, %v125
  %v138 = vpack.c.b16 %v129, %v126
  %v139 = vpack.c.b16 %v133, %v130
  %v140 = vpack.c.b16 %v134, %v131
  %v141 = vpack.c.b16 %v135, %v132
  %v182 = vunpack.c.l.b16 %v80
  %v183 = vunpack.c.l.b16 %v81
  %v184 = vunpack.c.l.b16 %v82
  %v185 = vunpack.c.l.b16 %v83
  %v186 = vunpack.c.l.b16 %v84
  %v187 = vunpack.c.l.b16 %v85
  %v188 = vunpack.c.l.b16 %v86
  %v189 = vunpack.c.l.b16 %v87
  %v190 = vunpack.c.l.b16 %v88
  %v191 = vunpack.c.l.b16 %v89
  %v192 = vunpack.c.l.b16 %v90
  %v193 = vunpack.c.l.b16 %v91
  %v194 = vunpack.c.l.b16 %v92
  %v195 = vunpack.c.l.b16 %v93
  %v196 = vunpack.c.l.b16 %v94
  %v197 = vunpack.c.l.b16 %v95
  %v198 = vunpack.c.l.b16 %v96
  %v199 = vunpack.c.l.b16 %v97
  %v200 = vunpack.c.l.b16 %v98
  %v201 = vunpack.c.l.b16 %v99
  %v202 = vunpack.c.l.b16 %v100
  %v203 = vunpack.c.l.b16 %v101
  %v204 = vunpack.c.l.b16 %v102
  %v205 = vunpack.c.l.b16 %v103
  %v206 = vunpack.c.l.b16 %v104
  %v207 = vunpack.c.l.b16 %v105
  %v208 = vunpack.c.l.b16 %v106
  %v209 = vunpack.c.l.b16 %v107
  %v210 = vunpack.c.l.b16 %v108
  %v211 = vunpack.c.l.b16 %v109
  %v212 = vunpack.c.l.b16 %v110
  %v213 = vunpack.c.l.b16 %v111
  %v214 = vunpack.c.l.b16 %v112
  %v215 = vunpack.c.l.b16 %v113
  %v216 = vunpack.c.l.b16 %v114
  %v217 = vunpack.c.l.b16 %v115
  %v218 = vpack.c.b16 %v183, %v182
  %v219 = vpack.c.b16 %v185, %v184
  %v220 = vpack.c.b16 %v187, %v186
  %v221 = vpack.c.b16 %v189, %v188
  %v222 = vpack.c.b16 %v191, %v190
  %v223 = vpack.c.b16 %v193, %v192
  %v224 = vpack.c.b16 %v195, %v194
  %v225 = vpack.c.b16 %v197, %v196
  %v226 = vpack.c.b16 %v199, %v198
  %v227 = vpack.c.b16 %v201, %v200
  %v228 = vpack.c.b16 %v203, %v202
  %v229 = vpack.c.b16 %v205, %v204
  %v230 = vpack.c.b16 %v207, %v206
  %v231 = vpack.c.b16 %v209, %v208
  %v232 = vpack.c.b16 %v211, %v210
  %v233 = vpack.c.b16 %v213, %v212
  %v234 = vpack.c.b16 %v215, %v214
  %v235 = vpack.c.b16 %v217, %v216
  %vm254 = vcmask 261120
  %v256 = vsel %vm254, %v138, 0
  %v259 = vsel %vm254, %v141, 0
  %261 = vmatprep.subr.bf16.mxu0 0
  %262 = vmatpush1.bf16.msra.mxu0 %v225
  %263 = vmatprep.subr.bf16.mxu0 0
  %264 = vmatpush1.bf16.msra.mxu0 %v224
  %265 = vmatprep.subr.bf16.mxu0 0
  %266 = vmatpush1.bf16.msra.mxu0 %v223
  %267 = vmatprep.subr.bf16.mxu0 0
  %268 = vmatpush1.bf16.msra.mxu0 %v222
  %269 = vmatprep.subr.bf16.mxu0 0
  %270 = vmatpush1.bf16.msra.mxu0 %v221
  %271 = vmatprep.subr.bf16.mxu0 0
  %272 = vmatpush1.bf16.msra.mxu0 %v220
  %273 = vmatprep.subr.bf16.mxu0 0
  %274 = vmatpush1.bf16.msra.mxu0 %v219
  %275 = vmatprep.subr.bf16.mxu0 0
  %276 = vmatpush1.bf16.msra.mxu0 %v218
  %277 = vmatprep.subr.bf16.mxu0 0
  %278 = vmatpush2.bf16.msra.mxu0 %v233
  %279 = vmatprep.subr.bf16.mxu0 0
  %280 = vmatpush2.bf16.msra.mxu0 %v232
  %281 = vmatprep.subr.bf16.mxu0 0
  %282 = vmatpush2.bf16.msra.mxu0 %v231
  %283 = vmatprep.subr.bf16.mxu0 0
  %284 = vmatpush2.bf16.msra.mxu0 %v230
  %285 = vmatprep.subr.bf16.mxu0 0
  %286 = vmatpush2.bf16.msra.mxu0 %v229
  %287 = vmatprep.subr.bf16.mxu0 0
  %288 = vmatpush2.bf16.msra.mxu0 %v228
  %289 = vmatprep.subr.bf16.mxu0 0
  %290 = vmatpush2.bf16.msra.mxu0 %v227
  %291 = vmatprep.subr.bf16.mxu0 0
  %292 = vmatpush2.bf16.msra.mxu0 %v226
  %293 = vmatprep.mubr.bf16.mxu0 %v137
  %294 = vmatmul.mubr.bf16.gmra.mxu0 %v136
  %v295 = vpop.f32.mrf.mxu0
  %v296 = vadd.f32 0.0, %v295
  %v297 = vpop.f32.mrf.mxu0
  %v298 = vpop.f32.mrf.mxu0
  %v299 = vadd.f32 0.0, %v298
  %v300 = vpop.f32.mrf.mxu0
  %301 = vmatprep.mubr.bf16.mxu0 %v140
  %302 = vmatmul.mubr.bf16.gmra.mxu0 %v139
  %v303 = vpop.f32.mrf.mxu0
  %v304 = vadd.f32 0.0, %v303
  %v305 = vpop.f32.mrf.mxu0
  %v306 = vpop.f32.mrf.mxu0
  %v307 = vadd.f32 0.0, %v306
  %v308 = vpop.f32.mrf.mxu0
  %309 = vdwg.mxu0
  %310 = vmatprep.subr.bf16.mxu0 0
  %311 = vmatpush1.bf16.msra.mxu0 0
  %312 = vmatprep.subr.bf16.mxu0 0
  %313 = vmatpush1.bf16.msra.mxu0 0
  %314 = vmatprep.subr.bf16.mxu0 0
  %315 = vmatpush1.bf16.msra.mxu0 0
  %316 = vmatprep.subr.bf16.mxu0 0
  %317 = vmatpush1.bf16.msra.mxu0 0
  %318 = vmatprep.subr.bf16.mxu0 0
  %319 = vmatpush1.bf16.msra.mxu0 0
  %320 = vmatprep.subr.bf16.mxu0 0
  %321 = vmatpush1.bf16.msra.mxu0 0
  %322 = vmatprep.subr.bf16.mxu0 0
  %323 = vmatpush1.bf16.msra.mxu0 %v235
  %324 = vmatprep.subr.bf16.mxu0 0
  %325 = vmatpush1.bf16.msra.mxu0 %v234
  %326 = vmatprep.subr.bf16.mxu0 0
  %327 = vmatpush2.bf16.msra.mxu0 0
  %328 = vmatprep.subr.bf16.mxu0 0
  %329 = vmatpush2.bf16.msra.mxu0 0
  %330 = vmatprep.subr.bf16.mxu0 0
  %331 = vmatpush2.bf16.msra.mxu0 0
  %332 = vmatprep.subr.bf16.mxu0 0
  %333 = vmatpush2.bf16.msra.mxu0 0
  %334 = vmatprep.subr.bf16.mxu0 0
  %335 = vmatpush2.bf16.msra.mxu0 0
  %336 = vmatprep.subr.bf16.mxu0 0
  %337 = vmatpush2.bf16.msra.mxu0 0
  %338 = vmatprep.subr.bf16.mxu0 0
  %339 = vmatpush2.bf16.msra.mxu0 0
  %340 = vmatprep.subr.bf16.mxu0 0
  %341 = vmatpush2.bf16.msra.mxu0 0
  %342 = vmatprep.mubr.bf16.mxu0 0
  %343 = vmatmul.mubr.bf16.gmra.mxu0 %v256
  %v344 = vpop.f32.mrf.mxu0
  %v345 = vadd.f32 %v296, %v344
  %v346 = vpop.f32.mrf.mxu0
  %v347 = vpop.f32.mrf.mxu0
  %v348 = vadd.f32 %v299, %v347
  %v349 = vpop.f32.mrf.mxu0
  %350 = vmatprep.mubr.bf16.mxu0 0
  %351 = vmatmul.mubr.bf16.gmra.mxu0 %v259
  %v352 = vpop.f32.mrf.mxu0
  %v353 = vadd.f32 %v304, %v352
  %v354 = vpop.f32.mrf.mxu0
  %v355 = vpop.f32.mrf.mxu0
  %v356 = vadd.f32 %v307, %v355
  %v357 = vpop.f32.mrf.mxu0
  %358 = vdwg.mxu0
  %v367 = vunpack.c.l.b16 %v27
  %v368 = vunpack.c.h.b16 %v27
  %v369 = vunpack.c.l.b16 %v28
  %v370 = vunpack.c.l.b16 %v29
  %v371 = vunpack.c.h.b16 %v29
  %v372 = vunpack.c.l.b16 %v30
  %v373 = vunpack.c.l.b16 %v31
  %v374 = vunpack.c.h.b16 %v31
  %v375 = vunpack.c.l.b16 %v32
  %v376 = vunpack.c.l.b16 %v33
  %v377 = vunpack.c.h.b16 %v33
  %v378 = vunpack.c.l.b16 %v34
  %v379 = vpack.c.b16 %v370, %v367
  %v380 = vpack.c.b16 %v371, %v368
  %v381 = vpack.c.b16 %v372, %v369
  %v382 = vpack.c.b16 %v376, %v373
  %v383 = vpack.c.b16 %v377, %v374
  %v384 = vpack.c.b16 %v378, %v375
  %v425 = vunpack.c.l.b16 %v35
  %v426 = vunpack.c.l.b16 %v36
  %v427 = vunpack.c.l.b16 %v37
  %v428 = vunpack.c.l.b16 %v38
  %v429 = vunpack.c.l.b16 %v39
  %v430 = vunpack.c.l.b16 %v40
  %v431 = vunpack.c.l.b16 %v41
  %v432 = vunpack.c.l.b16 %v42
  %v433 = vunpack.c.l.b16 %v43
  %v434 = vunpack.c.l.b16 %v44
  %v435 = vunpack.c.l.b16 %v45
  %v436 = vunpack.c.l.b16 %v46
  %v437 = vunpack.c.l.b16 %v47
  %v438 = vunpack.c.l.b16 %v48
  %v439 = vunpack.c.l.b16 %v49
  %v440 = vunpack.c.l.b16 %v50
  %v441 = vunpack.c.l.b16 %v51
  %v442 = vunpack.c.l.b16 %v52
  %v443 = vunpack.c.l.b16 %v53
  %v444 = vunpack.c.l.b16 %v54
  %v445 = vunpack.c.l.b16 %v55
  %v446 = vunpack.c.l.b16 %v56
  %v447 = vunpack.c.l.b16 %v57
  %v448 = vunpack.c.l.b16 %v58
  %v449 = vunpack.c.l.b16 %v59
  %v450 = vunpack.c.l.b16 %v60
  %v451 = vunpack.c.l.b16 %v61
  %v452 = vunpack.c.l.b16 %v62
  %v453 = vunpack.c.l.b16 %v63
  %v454 = vunpack.c.l.b16 %v64
  %v455 = vunpack.c.l.b16 %v65
  %v456 = vunpack.c.l.b16 %v66
  %v457 = vunpack.c.l.b16 %v67
  %v458 = vunpack.c.l.b16 %v68
  %v459 = vunpack.c.l.b16 %v69
  %v460 = vunpack.c.l.b16 %v70
  %v461 = vpack.c.b16 %v426, %v425
  %v462 = vpack.c.b16 %v428, %v427
  %v463 = vpack.c.b16 %v430, %v429
  %v464 = vpack.c.b16 %v432, %v431
  %v465 = vpack.c.b16 %v434, %v433
  %v466 = vpack.c.b16 %v436, %v435
  %v467 = vpack.c.b16 %v438, %v437
  %v468 = vpack.c.b16 %v440, %v439
  %v469 = vpack.c.b16 %v442, %v441
  %v470 = vpack.c.b16 %v444, %v443
  %v471 = vpack.c.b16 %v446, %v445
  %v472 = vpack.c.b16 %v448, %v447
  %v473 = vpack.c.b16 %v450, %v449
  %v474 = vpack.c.b16 %v452, %v451
  %v475 = vpack.c.b16 %v454, %v453
  %v476 = vpack.c.b16 %v456, %v455
  %v477 = vpack.c.b16 %v458, %v457
  %v478 = vpack.c.b16 %v460, %v459
  %v498 = vsel %vm254, %v381, 0
  %v501 = vsel %vm254, %v384, 0
  %503 = vmatprep.subr.bf16.mxu0 0
  %504 = vmatpush1.bf16.msra.mxu0 %v468
  %505 = vmatprep.subr.bf16.mxu0 0
  %506 = vmatpush1.bf16.msra.mxu0 %v467
  %507 = vmatprep.subr.bf16.mxu0 0
  %508 = vmatpush1.bf16.msra.mxu0 %v466
  %509 = vmatprep.subr.bf16.mxu0 0
  %510 = vmatpush1.bf16.msra.mxu0 %v465
  %511 = vmatprep.subr.bf16.mxu0 0
  %512 = vmatpush1.bf16.msra.mxu0 %v464
  %513 = vmatprep.subr.bf16.mxu0 0
  %514 = vmatpush1.bf16.msra.mxu0 %v463
  %515 = vmatprep.subr.bf16.mxu0 0
  %516 = vmatpush1.bf16.msra.mxu0 %v462
  %517 = vmatprep.subr.bf16.mxu0 0
  %518 = vmatpush1.bf16.msra.mxu0 %v461
  %519 = vmatprep.subr.bf16.mxu0 0
  %520 = vmatpush2.bf16.msra.mxu0 %v476
  %521 = vmatprep.subr.bf16.mxu0 0
  %522 = vmatpush2.bf16.msra.mxu0 %v475
  %523 = vmatprep.subr.bf16.mxu0 0
  %524 = vmatpush2.bf16.msra.mxu0 %v474
  %525 = vmatprep.subr.bf16.mxu0 0
  %526 = vmatpush2.bf16.msra.mxu0 %v473
  %527 = vmatprep.subr.bf16.mxu0 0
  %528 = vmatpush2.bf16.msra.mxu0 %v472
  %529 = vmatprep.subr.bf16.mxu0 0
  %530 = vmatpush2.bf16.msra.mxu0 %v471
  %531 = vmatprep.subr.bf16.mxu0 0
  %532 = vmatpush2.bf16.msra.mxu0 %v470
  %533 = vmatprep.subr.bf16.mxu0 0
  %534 = vmatpush2.bf16.msra.mxu0 %v469
  %535 = vmatprep.mubr.bf16.mxu0 %v380
  %536 = vmatmul.mubr.bf16.gmra.mxu0 %v379
  %v537 = vpop.f32.mrf.mxu0
  %v538 = vadd.f32 %v345, %v537
  %v539 = vpop.f32.mrf.mxu0
  %v540 = vpop.f32.mrf.mxu0
  %v541 = vadd.f32 %v348, %v540
  %v542 = vpop.f32.mrf.mxu0
  %543 = vmatprep.mubr.bf16.mxu0 %v383
  %544 = vmatmul.mubr.bf16.gmra.mxu0 %v382
  %v545 = vpop.f32.mrf.mxu0
  %v546 = vadd.f32 %v353, %v545
  %v547 = vpop.f32.mrf.mxu0
  %v548 = vpop.f32.mrf.mxu0
  %v549 = vadd.f32 %v356, %v548
  %v550 = vpop.f32.mrf.mxu0
  %551 = vdwg.mxu0
  %552 = vmatprep.subr.bf16.mxu0 0
  %553 = vmatpush1.bf16.msra.mxu0 0
  %554 = vmatprep.subr.bf16.mxu0 0
  %555 = vmatpush1.bf16.msra.mxu0 0
  %556 = vmatprep.subr.bf16.mxu0 0
  %557 = vmatpush1.bf16.msra.mxu0 0
  %558 = vmatprep.subr.bf16.mxu0 0
  %559 = vmatpush1.bf16.msra.mxu0 0
  %560 = vmatprep.subr.bf16.mxu0 0
  %561 = vmatpush1.bf16.msra.mxu0 0
  %562 = vmatprep.subr.bf16.mxu0 0
  %563 = vmatpush1.bf16.msra.mxu0 0
  %564 = vmatprep.subr.bf16.mxu0 0
  %565 = vmatpush1.bf16.msra.mxu0 %v478
  %566 = vmatprep.subr.bf16.mxu0 0
  %567 = vmatpush1.bf16.msra.mxu0 %v477
  %568 = vmatprep.subr.bf16.mxu0 0
  %569 = vmatpush2.bf16.msra.mxu0 0
  %570 = vmatprep.subr.bf16.mxu0 0
  %571 = vmatpush2.bf16.msra.mxu0 0
  %572 = vmatprep.subr.bf16.mxu0 0
  %573 = vmatpush2.bf16.msra.mxu0 0
  %574 = vmatprep.subr.bf16.mxu0 0
  %575 = vmatpush2.bf16.msra.mxu0 0
  %576 = vmatprep.subr.bf16.mxu0 0
  %577 = vmatpush2.bf16.msra.mxu0 0
  %578 = vmatprep.subr.bf16.mxu0 0
  %579 = vmatpush2.bf16.msra.mxu0 0
  %580 = vmatprep.subr.bf16.mxu0 0
  %581 = vmatpush2.bf16.msra.mxu0 0
  %582 = vmatprep.subr.bf16.mxu0 0
  %583 = vmatpush2.bf16.msra.mxu0 0
  %584 = vmatprep.mubr.bf16.mxu0 0
  %585 = vmatmul.mubr.bf16.gmra.mxu0 %v498
  %v586 = vpop.f32.mrf.mxu0
  %v587 = vadd.f32 %v538, %v586
  %v588 = vpop.f32.mrf.mxu0
  %v589 = vpop.f32.mrf.mxu0
  %v590 = vadd.f32 %v541, %v589
  %v591 = vpop.f32.mrf.mxu0
  %592 = vmatprep.mubr.bf16.mxu0 0
  %593 = vmatmul.mubr.bf16.gmra.mxu0 %v501
  %v594 = vpop.f32.mrf.mxu0
  %v595 = vadd.f32 %v546, %v594
  %v596 = vpop.f32.mrf.mxu0
  %v597 = vpop.f32.mrf.mxu0
  %v598 = vadd.f32 %v549, %v597
  %v599 = vpop.f32.mrf.mxu0
  %600 = vdwg.mxu0
  %v601 = vld [vmem:[%s2] sm:$0xff]
  %v602 = vld [vmem:[%s2 + $0x8] sm:$0xf]
  %v603 = vld [vmem:[%s2 + $0xc] sm:$0xff]
  %v604 = vld [vmem:[%s2 + $0x14] sm:$0xf]
  %v605 = vld [vmem:[%s2 + $0x18] sm:$0xff]
  %v606 = vld [vmem:[%s2 + $0x20] sm:$0xf]
  %v607 = vld [vmem:[%s2 + $0x24] sm:$0xff]
  %v608 = vld [vmem:[%s2 + $0x2c] sm:$0xf]
  %s609 = scalar_lea.vmem %s4, 288
  %v610 = vld [vmem:[%s609] sm:$0xf]
  %v611 = vld [vmem:[%s609 + $0x4] sm:$0xf]
  %v612 = vld [vmem:[%s609 + $0x8] sm:$0xf]
  %v613 = vld [vmem:[%s609 + $0xc] sm:$0xf]
  %v614 = vld [vmem:[%s609 + $0x10] sm:$0xf]
  %v615 = vld [vmem:[%s609 + $0x14] sm:$0xf]
  %v616 = vld [vmem:[%s609 + $0x18] sm:$0xf]
  %v617 = vld [vmem:[%s609 + $0x1c] sm:$0xf]
  %v618 = vld [vmem:[%s609 + $0x20] sm:$0xf]
  %v619 = vld [vmem:[%s609 + $0x24] sm:$0xf]
  %v620 = vld [vmem:[%s609 + $0x28] sm:$0xf]
  %v621 = vld [vmem:[%s609 + $0x2c] sm:$0xf]
  %v622 = vld [vmem:[%s609 + $0x30] sm:$0xf]
  %v623 = vld [vmem:[%s609 + $0x34] sm:$0xf]
  %v624 = vld [vmem:[%s609 + $0x38] sm:$0xf]
  %v625 = vld [vmem:[%s609 + $0x3c] sm:$0xf]
  %v626 = vld [vmem:[%s609 + $0x40] sm:$0xf]
  %v627 = vld [vmem:[%s609 + $0x44] sm:$0xf]
  %v628 = vld [vmem:[%s609 + $0x48] sm:$0xf]
  %v629 = vld [vmem:[%s609 + $0x4c] sm:$0xf]
  %v630 = vld [vmem:[%s609 + $0x50] sm:$0xf]
  %v631 = vld [vmem:[%s609 + $0x54] sm:$0xf]
  %v632 = vld [vmem:[%s609 + $0x58] sm:$0xf]
  %v633 = vld [vmem:[%s609 + $0x5c] sm:$0xf]
  %v634 = vld [vmem:[%s609 + $0x60] sm:$0xf]
  %v635 = vld [vmem:[%s609 + $0x64] sm:$0xf]
  %v636 = vld [vmem:[%s609 + $0x68] sm:$0xf]
  %v637 = vld [vmem:[%s609 + $0x6c] sm:$0xf]
  %v638 = vld [vmem:[%s609 + $0x70] sm:$0xf]
  %v639 = vld [vmem:[%s609 + $0x74] sm:$0xf]
  %v640 = vld [vmem:[%s609 + $0x78] sm:$0xf]
  %v641 = vld [vmem:[%s609 + $0x7c] sm:$0xf]
  %v642 = vld [vmem:[%s609 + $0x80] sm:$0xf]
  %v643 = vld [vmem:[%s609 + $0x84] sm:$0xf]
  %v644 = vld [vmem:[%s609 + $0x88] sm:$0xf]
  %v645 = vld [vmem:[%s609 + $0x8c] sm:$0xf]
  %v654 = vunpack.c.l.b16 %v601
  %v655 = vunpack.c.h.b16 %v601
  %v656 = vunpack.c.l.b16 %v602
  %v657 = vunpack.c.l.b16 %v603
  %v658 = vunpack.c.h.b16 %v603
  %v659 = vunpack.c.l.b16 %v604
  %v660 = vunpack.c.l.b16 %v605
  %v661 = vunpack.c.h.b16 %v605
  %v662 = vunpack.c.l.b16 %v606
  %v663 = vunpack.c.l.b16 %v607
  %v664 = vunpack.c.h.b16 %v607
  %v665 = vunpack.c.l.b16 %v608
  %v666 = vpack.c.b16 %v657, %v654
  %v667 = vpack.c.b16 %v658, %v655
  %v668 = vpack.c.b16 %v659, %v656
  %v669 = vpack.c.b16 %v663, %v660
  %v670 = vpack.c.b16 %v664, %v661
  %v671 = vpack.c.b16 %v665, %v662
  %v712 = vunpack.c.l.b16 %v610
  %v713 = vunpack.c.l.b16 %v611
  %v714 = vunpack.c.l.b16 %v612
  %v715 = vunpack.c.l.b16 %v613
  %v716 = vunpack.c.l.b16 %v614
  %v717 = vunpack.c.l.b16 %v615
  %v718 = vunpack.c.l.b16 %v616
  %v719 = vunpack.c.l.b16 %v617
  %v720 = vunpack.c.l.b16 %v618
  %v721 = vunpack.c.l.b16 %v619
  %v722 = vunpack.c.l.b16 %v620
  %v723 = vunpack.c.l.b16 %v621
  %v724 = vunpack.c.l.b16 %v622
  %v725 = vunpack.c.l.b16 %v623
  %v726 = vunpack.c.l.b16 %v624
  %v727 = vunpack.c.l.b16 %v625
  %v728 = vunpack.c.l.b16 %v626
  %v729 = vunpack.c.l.b16 %v627
  %v730 = vunpack.c.l.b16 %v628
  %v731 = vunpack.c.l.b16 %v629
  %v732 = vunpack.c.l.b16 %v630
  %v733 = vunpack.c.l.b16 %v631
  %v734 = vunpack.c.l.b16 %v632
  %v735 = vunpack.c.l.b16 %v633
  %v736 = vunpack.c.l.b16 %v634
  %v737 = vunpack.c.l.b16 %v635
  %v738 = vunpack.c.l.b16 %v636
  %v739 = vunpack.c.l.b16 %v637
  %v740 = vunpack.c.l.b16 %v638
  %v741 = vunpack.c.l.b16 %v639
  %v742 = vunpack.c.l.b16 %v640
  %v743 = vunpack.c.l.b16 %v641
  %v744 = vunpack.c.l.b16 %v642
  %v745 = vunpack.c.l.b16 %v643
  %v746 = vunpack.c.l.b16 %v644
  %v747 = vunpack.c.l.b16 %v645
  %v748 = vpack.c.b16 %v713, %v712
  %v749 = vpack.c.b16 %v715, %v714
  %v750 = vpack.c.b16 %v717, %v716
  %v751 = vpack.c.b16 %v719, %v718
  %v752 = vpack.c.b16 %v721, %v720
  %v753 = vpack.c.b16 %v723, %v722
  %v754 = vpack.c.b16 %v725, %v724
  %v755 = vpack.c.b16 %v727, %v726
  %v756 = vpack.c.b16 %v729, %v728
  %v757 = vpack.c.b16 %v731, %v730
  %v758 = vpack.c.b16 %v733, %v732
  %v759 = vpack.c.b16 %v735, %v734
  %v760 = vpack.c.b16 %v737, %v736
  %v761 = vpack.c.b16 %v739, %v738
  %v762 = vpack.c.b16 %v741, %v740
  %v763 = vpack.c.b16 %v743, %v742
  %v764 = vpack.c.b16 %v745, %v744
  %v765 = vpack.c.b16 %v747, %v746
  %v785 = vsel %vm254, %v668, 0
  %v788 = vsel %vm254, %v671, 0
  %790 = vmatprep.subr.bf16.mxu0 0
  %791 = vmatpush1.bf16.msra.mxu0 %v755
  %792 = vmatprep.subr.bf16.mxu0 0
  %793 = vmatpush1.bf16.msra.mxu0 %v754
  %794 = vmatprep.subr.bf16.mxu0 0
  %795 = vmatpush1.bf16.msra.mxu0 %v753
  %796 = vmatprep.subr.bf16.mxu0 0
  %797 = vmatpush1.bf16.msra.mxu0 %v752
  %798 = vmatprep.subr.bf16.mxu0 0
  %799 = vmatpush1.bf16.msra.mxu0 %v751
  %800 = vmatprep.subr.bf16.mxu0 0
  %801 = vmatpush1.bf16.msra.mxu0 %v750
  %802 = vmatprep.subr.bf16.mxu0 0
  %803 = vmatpush1.bf16.msra.mxu0 %v749
  %804 = vmatprep.subr.bf16.mxu0 0
  %805 = vmatpush1.bf16.msra.mxu0 %v748
  %806 = vmatprep.subr.bf16.mxu0 0
  %807 = vmatpush2.bf16.msra.mxu0 %v763
  %808 = vmatprep.subr.bf16.mxu0 0
  %809 = vmatpush2.bf16.msra.mxu0 %v762
  %810 = vmatprep.subr.bf16.mxu0 0
  %811 = vmatpush2.bf16.msra.mxu0 %v761
  %812 = vmatprep.subr.bf16.mxu0 0
  %813 = vmatpush2.bf16.msra.mxu0 %v760
  %814 = vmatprep.subr.bf16.mxu0 0
  %815 = vmatpush2.bf16.msra.mxu0 %v759
  %816 = vmatprep.subr.bf16.mxu0 0
  %817 = vmatpush2.bf16.msra.mxu0 %v758
  %818 = vmatprep.subr.bf16.mxu0 0
  %819 = vmatpush2.bf16.msra.mxu0 %v757
  %820 = vmatprep.subr.bf16.mxu0 0
  %821 = vmatpush2.bf16.msra.mxu0 %v756
  %822 = vmatprep.mubr.bf16.mxu0 %v667
  %823 = vmatmul.mubr.bf16.gmra.mxu0 %v666
  %v824 = vpop.f32.mrf.mxu0
  %v825 = vadd.f32 0.0, %v824
  %v826 = vpop.f32.mrf.mxu0
  %v827 = vpop.f32.mrf.mxu0
  %v828 = vadd.f32 0.0, %v827
  %v829 = vpop.f32.mrf.mxu0
  %830 = vmatprep.mubr.bf16.mxu0 %v670
  %831 = vmatmul.mubr.bf16.gmra.mxu0 %v669
  %v832 = vpop.f32.mrf.mxu0
  %v833 = vadd.f32 0.0, %v832
  %v834 = vpop.f32.mrf.mxu0
  %v835 = vpop.f32.mrf.mxu0
  %v836 = vadd.f32 0.0, %v835
  %v837 = vpop.f32.mrf.mxu0
  %838 = vdwg.mxu0
  %839 = vmatprep.subr.bf16.mxu0 0
  %840 = vmatpush1.bf16.msra.mxu0 0
  %841 = vmatprep.subr.bf16.mxu0 0
  %842 = vmatpush1.bf16.msra.mxu0 0
  %843 = vmatprep.subr.bf16.mxu0 0
  %844 = vmatpush1.bf16.msra.mxu0 0
  %845 = vmatprep.subr.bf16.mxu0 0
  %846 = vmatpush1.bf16.msra.mxu0 0
  %847 = vmatprep.subr.bf16.mxu0 0
  %848 = vmatpush1.bf16.msra.mxu0 0
  %849 = vmatprep.subr.bf16.mxu0 0
  %850 = vmatpush1.bf16.msra.mxu0 0
  %851 = vmatprep.subr.bf16.mxu0 0
  %852 = vmatpush1.bf16.msra.mxu0 %v765
  %853 = vmatprep.subr.bf16.mxu0 0
  %854 = vmatpush1.bf16.msra.mxu0 %v764
  %855 = vmatprep.subr.bf16.mxu0 0
  %856 = vmatpush2.bf16.msra.mxu0 0
  %857 = vmatprep.subr.bf16.mxu0 0
  %858 = vmatpush2.bf16.msra.mxu0 0
  %859 = vmatprep.subr.bf16.mxu0 0
  %860 = vmatpush2.bf16.msra.mxu0 0
  %861 = vmatprep.subr.bf16.mxu0 0
  %862 = vmatpush2.bf16.msra.mxu0 0
  %863 = vmatprep.subr.bf16.mxu0 0
  %864 = vmatpush2.bf16.msra.mxu0 0
  %865 = vmatprep.subr.bf16.mxu0 0
  %866 = vmatpush2.bf16.msra.mxu0 0
  %867 = vmatprep.subr.bf16.mxu0 0
  %868 = vmatpush2.bf16.msra.mxu0 0
  %869 = vmatprep.subr.bf16.mxu0 0
  %870 = vmatpush2.bf16.msra.mxu0 0
  %871 = vmatprep.mubr.bf16.mxu0 0
  %872 = vmatmul.mubr.bf16.gmra.mxu0 %v785
  %v873 = vpop.f32.mrf.mxu0
  %v874 = vadd.f32 %v825, %v873
  %v875 = vpop.f32.mrf.mxu0
  %v876 = vpop.f32.mrf.mxu0
  %v877 = vadd.f32 %v828, %v876
  %v878 = vpop.f32.mrf.mxu0
  %879 = vmatprep.mubr.bf16.mxu0 0
  %880 = vmatmul.mubr.bf16.gmra.mxu0 %v788
  %v881 = vpop.f32.mrf.mxu0
  %v882 = vadd.f32 %v833, %v881
  %v883 = vpop.f32.mrf.mxu0
  %v884 = vpop.f32.mrf.mxu0
  %v885 = vadd.f32 %v836, %v884
  %v886 = vpop.f32.mrf.mxu0
  %887 = vdwg.mxu0
  %v888 = vadd.f32 %v587, %v874
  %v889 = vadd.f32 %v590, %v877
  %v890 = vadd.f32 %v595, %v882
  %v891 = vadd.f32 %v598, %v885
  %v892 = vld [vmem:[%s3] sm:$0xff]
  %v893 = vld [vmem:[%s3 + $0x8] sm:$0xf]
  %v894 = vld [vmem:[%s3 + $0xc] sm:$0xff]
  %v895 = vld [vmem:[%s3 + $0x14] sm:$0xf]
  %v896 = vld [vmem:[%s3 + $0x18] sm:$0xff]
  %v897 = vld [vmem:[%s3 + $0x20] sm:$0xf]
  %v898 = vld [vmem:[%s3 + $0x24] sm:$0xff]
  %v899 = vld [vmem:[%s3 + $0x2c] sm:$0xf]
  %s900 = scalar_lea.vmem %s4, 432
  %v901 = vld [vmem:[%s900] sm:$0xf]
  %v902 = vld [vmem:[%s900 + $0x4] sm:$0xf]
  %v903 = vld [vmem:[%s900 + $0x8] sm:$0xf]
  %v904 = vld [vmem:[%s900 + $0xc] sm:$0xf]
  %v905 = vld [vmem:[%s900 + $0x10] sm:$0xf]
  %v906 = vld [vmem:[%s900 + $0x14] sm:$0xf]
  %v907 = vld [vmem:[%s900 + $0x18] sm:$0xf]
  %v908 = vld [vmem:[%s900 + $0x1c] sm:$0xf]
  %v909 = vld [vmem:[%s900 + $0x20] sm:$0xf]
  %v910 = vld [vmem:[%s900 + $0x24] sm:$0xf]
  %v911 = vld [vmem:[%s900 + $0x28] sm:$0xf]
  %v912 = vld [vmem:[%s900 + $0x2c] sm:$0xf]
  %v913 = vld [vmem:[%s900 + $0x30] sm:$0xf]
  %v914 = vld [vmem:[%s900 + $0x34] sm:$0xf]
  %v915 = vld [vmem:[%s900 + $0x38] sm:$0xf]
  %v916 = vld [vmem:[%s900 + $0x3c] sm:$0xf]
  %v917 = vld [vmem:[%s900 + $0x40] sm:$0xf]
  %v918 = vld [vmem:[%s900 + $0x44] sm:$0xf]
  %v919 = vld [vmem:[%s900 + $0x48] sm:$0xf]
  %v920 = vld [vmem:[%s900 + $0x4c] sm:$0xf]
  %v921 = vld [vmem:[%s900 + $0x50] sm:$0xf]
  %v922 = vld [vmem:[%s900 + $0x54] sm:$0xf]
  %v923 = vld [vmem:[%s900 + $0x58] sm:$0xf]
  %v924 = vld [vmem:[%s900 + $0x5c] sm:$0xf]
  %v925 = vld [vmem:[%s900 + $0x60] sm:$0xf]
  %v926 = vld [vmem:[%s900 + $0x64] sm:$0xf]
  %v927 = vld [vmem:[%s900 + $0x68] sm:$0xf]
  %v928 = vld [vmem:[%s900 + $0x6c] sm:$0xf]
  %v929 = vld [vmem:[%s900 + $0x70] sm:$0xf]
  %v930 = vld [vmem:[%s900 + $0x74] sm:$0xf]
  %v931 = vld [vmem:[%s900 + $0x78] sm:$0xf]
  %v932 = vld [vmem:[%s900 + $0x7c] sm:$0xf]
  %v933 = vld [vmem:[%s900 + $0x80] sm:$0xf]
  %v934 = vld [vmem:[%s900 + $0x84] sm:$0xf]
  %v935 = vld [vmem:[%s900 + $0x88] sm:$0xf]
  %v936 = vld [vmem:[%s900 + $0x8c] sm:$0xf]
  %v945 = vunpack.c.l.b16 %v892
  %v946 = vunpack.c.h.b16 %v892
  %v947 = vunpack.c.l.b16 %v893
  %v948 = vunpack.c.l.b16 %v894
  %v949 = vunpack.c.h.b16 %v894
  %v950 = vunpack.c.l.b16 %v895
  %v951 = vunpack.c.l.b16 %v896
  %v952 = vunpack.c.h.b16 %v896
  %v953 = vunpack.c.l.b16 %v897
  %v954 = vunpack.c.l.b16 %v898
  %v955 = vunpack.c.h.b16 %v898
  %v956 = vunpack.c.l.b16 %v899
  %v957 = vpack.c.b16 %v948, %v945
  %v958 = vpack.c.b16 %v949, %v946
  %v959 = vpack.c.b16 %v950, %v947
  %v960 = vpack.c.b16 %v954, %v951
  %v961 = vpack.c.b16 %v955, %v952
  %v962 = vpack.c.b16 %v956, %v953
  %v1003 = vunpack.c.l.b16 %v901
  %v1004 = vunpack.c.l.b16 %v902
  %v1005 = vunpack.c.l.b16 %v903
  %v1006 = vunpack.c.l.b16 %v904
  %v1007 = vunpack.c.l.b16 %v905
  %v1008 = vunpack.c.l.b16 %v906
  %v1009 = vunpack.c.l.b16 %v907
  %v1010 = vunpack.c.l.b16 %v908
  %v1011 = vunpack.c.l.b16 %v909
  %v1012 = vunpack.c.l.b16 %v910
  %v1013 = vunpack.c.l.b16 %v911
  %v1014 = vunpack.c.l.b16 %v912
  %v1015 = vunpack.c.l.b16 %v913
  %v1016 = vunpack.c.l.b16 %v914
  %v1017 = vunpack.c.l.b16 %v915
  %v1018 = vunpack.c.l.b16 %v916
  %v1019 = vunpack.c.l.b16 %v917
  %v1020 = vunpack.c.l.b16 %v918
  %v1021 = vunpack.c.l.b16 %v919
  %v1022 = vunpack.c.l.b16 %v920
  %v1023 = vunpack.c.l.b16 %v921
  %v1024 = vunpack.c.l.b16 %v922
  %v1025 = vunpack.c.l.b16 %v923
  %v1026 = vunpack.c.l.b16 %v924
  %v1027 = vunpack.c.l.b16 %v925
  %v1028 = vunpack.c.l.b16 %v926
  %v1029 = vunpack.c.l.b16 %v927
  %v1030 = vunpack.c.l.b16 %v928
  %v1031 = vunpack.c.l.b16 %v929
  %v1032 = vunpack.c.l.b16 %v930
  %v1033 = vunpack.c.l.b16 %v931
  %v1034 = vunpack.c.l.b16 %v932
  %v1035 = vunpack.c.l.b16 %v933
  %v1036 = vunpack.c.l.b16 %v934
  %v1037 = vunpack.c.l.b16 %v935
  %v1038 = vunpack.c.l.b16 %v936
  %v1039 = vpack.c.b16 %v1004, %v1003
  %v1040 = vpack.c.b16 %v1006, %v1005
  %v1041 = vpack.c.b16 %v1008, %v1007
  %v1042 = vpack.c.b16 %v1010, %v1009
  %v1043 = vpack.c.b16 %v1012, %v1011
  %v1044 = vpack.c.b16 %v1014, %v1013
  %v1045 = vpack.c.b16 %v1016, %v1015
  %v1046 = vpack.c.b16 %v1018, %v1017
  %v1047 = vpack.c.b16 %v1020, %v1019
  %v1048 = vpack.c.b16 %v1022, %v1021
  %v1049 = vpack.c.b16 %v1024, %v1023
  %v1050 = vpack.c.b16 %v1026, %v1025
  %v1051 = vpack.c.b16 %v1028, %v1027
  %v1052 = vpack.c.b16 %v1030, %v1029
  %v1053 = vpack.c.b16 %v1032, %v1031
  %v1054 = vpack.c.b16 %v1034, %v1033
  %v1055 = vpack.c.b16 %v1036, %v1035
  %v1056 = vpack.c.b16 %v1038, %v1037
  %v1076 = vsel %vm254, %v959, 0
  %v1079 = vsel %vm254, %v962, 0
  %1081 = vmatprep.subr.bf16.mxu0 0
  %1082 = vmatpush1.bf16.msra.mxu0 %v1046
  %1083 = vmatprep.subr.bf16.mxu0 0
  %1084 = vmatpush1.bf16.msra.mxu0 %v1045
  %1085 = vmatprep.subr.bf16.mxu0 0
  %1086 = vmatpush1.bf16.msra.mxu0 %v1044
  %1087 = vmatprep.subr.bf16.mxu0 0
  %1088 = vmatpush1.bf16.msra.mxu0 %v1043
  %1089 = vmatprep.subr.bf16.mxu0 0
  %1090 = vmatpush1.bf16.msra.mxu0 %v1042
  %1091 = vmatprep.subr.bf16.mxu0 0
  %1092 = vmatpush1.bf16.msra.mxu0 %v1041
  %1093 = vmatprep.subr.bf16.mxu0 0
  %1094 = vmatpush1.bf16.msra.mxu0 %v1040
  %1095 = vmatprep.subr.bf16.mxu0 0
  %1096 = vmatpush1.bf16.msra.mxu0 %v1039
  %1097 = vmatprep.subr.bf16.mxu0 0
  %1098 = vmatpush2.bf16.msra.mxu0 %v1054
  %1099 = vmatprep.subr.bf16.mxu0 0
  %1100 = vmatpush2.bf16.msra.mxu0 %v1053
  %1101 = vmatprep.subr.bf16.mxu0 0
  %1102 = vmatpush2.bf16.msra.mxu0 %v1052
  %1103 = vmatprep.subr.bf16.mxu0 0
  %1104 = vmatpush2.bf16.msra.mxu0 %v1051
  %1105 = vmatprep.subr.bf16.mxu0 0
  %1106 = vmatpush2.bf16.msra.mxu0 %v1050
  %1107 = vmatprep.subr.bf16.mxu0 0
  %1108 = vmatpush2.bf16.msra.mxu0 %v1049
  %1109 = vmatprep.subr.bf16.mxu0 0
  %1110 = vmatpush2.bf16.msra.mxu0 %v1048
  %1111 = vmatprep.subr.bf16.mxu0 0
  %1112 = vmatpush2.bf16.msra.mxu0 %v1047
  %1113 = vmatprep.mubr.bf16.mxu0 %v958
  %1114 = vmatmul.mubr.bf16.gmra.mxu0 %v957
  %v1115 = vpop.f32.mrf.mxu0
  %v1116 = vadd.f32 0.0, %v1115
  %v1117 = vpop.f32.mrf.mxu0
  %v1118 = vpop.f32.mrf.mxu0
  %v1119 = vadd.f32 0.0, %v1118
  %v1120 = vpop.f32.mrf.mxu0
  %1121 = vmatprep.mubr.bf16.mxu0 %v961
  %1122 = vmatmul.mubr.bf16.gmra.mxu0 %v960
  %v1123 = vpop.f32.mrf.mxu0
  %v1124 = vadd.f32 0.0, %v1123
  %v1125 = vpop.f32.mrf.mxu0
  %v1126 = vpop.f32.mrf.mxu0
  %v1127 = vadd.f32 0.0, %v1126
  %v1128 = vpop.f32.mrf.mxu0
  %1129 = vdwg.mxu0
  %1130 = vmatprep.subr.bf16.mxu0 0
  %1131 = vmatpush1.bf16.msra.mxu0 0
  %1132 = vmatprep.subr.bf16.mxu0 0
  %1133 = vmatpush1.bf16.msra.mxu0 0
  %1134 = vmatprep.subr.bf16.mxu0 0
  %1135 = vmatpush1.bf16.msra.mxu0 0
  %1136 = vmatprep.subr.bf16.mxu0 0
  %1137 = vmatpush1.bf16.msra.mxu0 0
  %1138 = vmatprep.subr.bf16.mxu0 0
  %1139 = vmatpush1.bf16.msra.mxu0 0
  %1140 = vmatprep.subr.bf16.mxu0 0
  %1141 = vmatpush1.bf16.msra.mxu0 0
  %1142 = vmatprep.subr.bf16.mxu0 0
  %1143 = vmatpush1.bf16.msra.mxu0 %v1056
  %1144 = vmatprep.subr.bf16.mxu0 0
  %1145 = vmatpush1.bf16.msra.mxu0 %v1055
  %1146 = vmatprep.subr.bf16.mxu0 0
  %1147 = vmatpush2.bf16.msra.mxu0 0
  %1148 = vmatprep.subr.bf16.mxu0 0
  %1149 = vmatpush2.bf16.msra.mxu0 0
  %1150 = vmatprep.subr.bf16.mxu0 0
  %1151 = vmatpush2.bf16.msra.mxu0 0
  %1152 = vmatprep.subr.bf16.mxu0 0
  %1153 = vmatpush2.bf16.msra.mxu0 0
  %1154 = vmatprep.subr.bf16.mxu0 0
  %1155 = vmatpush2.bf16.msra.mxu0 0
  %1156 = vmatprep.subr.bf16.mxu0 0
  %1157 = vmatpush2.bf16.msra.mxu0 0
  %1158 = vmatprep.subr.bf16.mxu0 0
  %1159 = vmatpush2.bf16.msra.mxu0 0
  %1160 = vmatprep.subr.bf16.mxu0 0
  %1161 = vmatpush2.bf16.msra.mxu0 0
  %1162 = vmatprep.mubr.bf16.mxu0 0
  %1163 = vmatmul.mubr.bf16.gmra.mxu0 %v1076
  %v1164 = vpop.f32.mrf.mxu0
  %v1165 = vadd.f32 %v1116, %v1164
  %v1166 = vpop.f32.mrf.mxu0
  %v1167 = vpop.f32.mrf.mxu0
  %v1168 = vadd.f32 %v1119, %v1167
  %v1169 = vpop.f32.mrf.mxu0
  %1170 = vmatprep.mubr.bf16.mxu0 0
  %1171 = vmatmul.mubr.bf16.gmra.mxu0 %v1079
  %v1172 = vpop.f32.mrf.mxu0
  %v1173 = vadd.f32 %v1124, %v1172
  %v1174 = vpop.f32.mrf.mxu0
  %v1175 = vpop.f32.mrf.mxu0
  %v1176 = vadd.f32 %v1127, %v1175
  %v1177 = vpop.f32.mrf.mxu0
  %1178 = vdwg.mxu0
  %v1179 = vadd.f32 %v888, %v1165
  %v1180 = vadd.f32 %v889, %v1168
  %v1181 = vadd.f32 %v890, %v1173
  %v1182 = vadd.f32 %v891, %v1176
  %v1183 = vld [vmem:[%s5] sm:$0x1]
  %v1185 = vlaneseq
  %v1186 = vshrl.u32 %v1185, 7
  %v1187 = vsub.s32 0, %v1186
  %v1188 = vrot.slane %v1183, %v1187
  %v1190 = vadd.f32 %v1179, %v1188
  %v1191 = vadd.f32 %v1180, %v1188
  %v1192 = vadd.f32 %v1181, %v1188
  %v1193 = vadd.f32 %v1182, %v1188
  %v1194 = vxor.u32 %v1190, 2147483648
  %v1195 = vxor.u32 %v1191, 2147483648
  %v1196 = vxor.u32 %v1192, 2147483648
  %v1197 = vxor.u32 %v1193, 2147483648
  %v1198 = vmul.f32 %v1194, 1.442695
  %v1199 = vpow.pop %v1198
  %v1200 = vmul.f32 %v1195, 1.442695
  %v1201 = vpow.pop %v1200
  %v1202 = vmul.f32 %v1196, 1.442695
  %v1203 = vpow.pop %v1202
  %v1204 = vmul.f32 %v1197, 1.442695
  %v1205 = vpow.pop %v1204
  %v1206 = vadd.f32 %v1199, 1.0
  %v1207 = vadd.f32 %v1201, 1.0
  %v1208 = vadd.f32 %v1203, 1.0
  %v1209 = vadd.f32 %v1205, 1.0
  %v1210 = vrcp.pop %v1206
  %v1211 = vmul.f32 1.0, %v1210
  %v1212 = vrcp.pop %v1207
  %v1213 = vmul.f32 1.0, %v1212
  %v1214 = vrcp.pop %v1208
  %v1215 = vmul.f32 1.0, %v1214
  %v1216 = vrcp.pop %v1209
  %v1217 = vmul.f32 1.0, %v1216
  %v1218 = vmul.f32 %v1190, %v1211
  %v1219 = vmul.f32 %v1191, %v1213
  %v1220 = vmul.f32 %v1192, %v1215
  %v1221 = vmul.f32 %v1193, %v1217
  %v1222 = vld [vmem:[%s6] sm:$0xf]
  %v1223 = vld [vmem:[%s6 + $0x4] sm:$0xf]
  %v1224 = vld [vmem:[%s6 + $0x8] sm:$0xf]
  %v1225 = vld [vmem:[%s6 + $0xc] sm:$0xf]
  %v1226 = vunpack.c.l.bf16 %v1222
  %v1227 = vunpack.c.l.bf16 %v1223
  %v1228 = vunpack.c.l.bf16 %v1224
  %v1229 = vunpack.c.l.bf16 %v1225
  %v1230 = vadd.f32 %v1218, %v1226
  %v1231 = vadd.f32 %v1219, %v1227
  %v1232 = vadd.f32 %v1220, %v1228
  %v1233 = vadd.f32 %v1221, %v1229
  %v1234 = vpack.c.bf16 %v1231, %v1230
  %v1235 = vpack.c.bf16 %v1233, %v1232
  %v1238 = vunpack.c.l.b16 %v1234
  %v1239 = vunpack.c.h.b16 %v1234
  %v1240 = vunpack.c.l.b16 %v1235
  %v1241 = vunpack.c.h.b16 %v1235
  %v1242 = vpack.c.b16 %v1238, %v1238
  %v1243 = vpack.c.b16 %v1239, %v1239
  %v1244 = vpack.c.b16 %v1240, %v1240
  %v1245 = vpack.c.b16 %v1241, %v1241
  %1250 = vst [vmem:[%s7] sm:$0xf] %v1242
  %1251 = vst [vmem:[%s7 + $0x4] sm:$0xf] %v1243
  %1252 = vst [vmem:[%s7 + $0x8] sm:$0xf] %v1244
  %1253 = vst [vmem:[%s7 + $0xc] sm:$0xf] %v1245
  // Predicated region
  $region30: #{forward.13} parent=0 // pred_check
    _
  $region31: #{forward.13} parent=0 // pred_check_branch
    %1255 = sbr.rel (0) target = $region33
  $region32: #{forward.13} parent=0 // pred_region
    _
  $region33: #{forward.13} parent=0 // pred_fallthru
    _
  // Predicated region
  $region34: #{forward.13} parent=0 // pred_check
    _
  $region35: #{forward.13} parent=0 // pred_check_branch
    %1257 = sbr.rel (0) target = $region37
  $region36: #{forward.13} parent=0 // pred_region
    _
  $region37: #{forward.13} parent=0 // pred_fallthru
    _

// kernel: forward.17
$region0: #{forward.17}
  #allocation0 [shape = 'u32[]', space=smem, size = 0x4, offset = 0x4, fixed_abs, tag = 'smem constant byte address 0x4 - core index']
  #allocation1 [shape = 'u32[144,128]{1,0:T(1,128)}', space=vmem, size = 0x12000, scoped, tag = 'internal scratch']
  %s0 = inlined_call_operand.vmem [shape: bf16[16,288], index: 0, kind: input, shape index: {}]
  %s1 = inlined_call_operand.vmem [shape: bf16[16,288], index: 1, kind: input, shape index: {}]
  %s2 = inlined_call_operand.vmem [shape: bf16[288,128], index: 2, kind: input, shape index: {}]
  %s3 = inlined_call_operand.vmem [shape: f32[1,128], index: 3, kind: input, shape index: {}]
  %s4 = inlined_call_operand.vmem [shape: bf16[2,128,128], index: 4, kind: input, shape index: {}]
  %s5 = inlined_call_operand.vmem [shape: f32[1,128], index: 5, kind: input, shape index: {}]
  %s6 = inlined_call_operand.vmem [shape: bf16[16,128], index: 6, kind: output, shape index: {}]
  %s7 = sld [smem:[#allocation0]]
  $region34: #{forward.17} parent=0
    _
  %s9 = ssub.s32 1, %s7
  %s10 = scalar_select 0, %s9, %s7
  // Predicated region
  $region2: #{forward.17} parent=0 // pred_check
    _
  $region3: #{forward.17} parent=0 // pred_check_branch
    %12 = sbr.rel (0) target = $region5
  $region4: #{forward.17} parent=0 // pred_region
    _
  $region5: #{forward.17} parent=0 // pred_fallthru
    _
  // Predicated region
  $region6: #{forward.17} parent=0 // pred_check
    _
  $region7: #{forward.17} parent=0 // pred_check_branch
    %14 = sbr.rel (0) target = $region9
  $region8: #{forward.17} parent=0 // pred_region
    _
  $region9: #{forward.17} parent=0 // pred_fallthru
    _
  // Predicated region
  $region10: #{forward.17} parent=0 // pred_check
    _
  $region11: #{forward.17} parent=0 // pred_check_branch
    %16 = sbr.rel (0) target = $region13
  $region12: #{forward.17} parent=0 // pred_region
    _
  $region13: #{forward.17} parent=0 // pred_fallthru
    _
  // Predicated region
  $region14: #{forward.17} parent=0 // pred_check
    _
  $region15: #{forward.17} parent=0 // pred_check_branch
    %18 = sbr.rel (0) target = $region17
  $region16: #{forward.17} parent=0 // pred_region
    _
  $region17: #{forward.17} parent=0 // pred_fallthru
    _
  // Predicated region
  $region18: #{forward.17} parent=0 // pred_check
    _
  $region19: #{forward.17} parent=0 // pred_check_branch
    %20 = sbr.rel (0) target = $region21
  $region20: #{forward.17} parent=0 // pred_region
    _
  $region21: #{forward.17} parent=0 // pred_fallthru
    _
  // Predicated region
  $region22: #{forward.17} parent=0 // pred_check
    _
  $region23: #{forward.17} parent=0 // pred_check_branch
    %22 = sbr.rel (0) target = $region25
  $region24: #{forward.17} parent=0 // pred_region
    _
  $region25: #{forward.17} parent=0 // pred_fallthru
    _
  %v25 = vld [vmem:[%s0] sm:$0xff]
  %v26 = vld [vmem:[%s0 + $0x8] sm:$0xf]
  %v27 = vld [vmem:[%s0 + $0xc] sm:$0xff]
  %v28 = vld [vmem:[%s0 + $0x14] sm:$0xf]
  %v29 = vld [vmem:[%s2] sm:$0xf]
  %v30 = vld [vmem:[%s2 + $0x4] sm:$0xf]
  %v31 = vld [vmem:[%s2 + $0x8] sm:$0xf]
  %v32 = vld [vmem:[%s2 + $0xc] sm:$0xf]
  %v33 = vld [vmem:[%s2 + $0x10] sm:$0xf]
  %v34 = vld [vmem:[%s2 + $0x14] sm:$0xf]
  %v35 = vld [vmem:[%s2 + $0x18] sm:$0xf]
  %v36 = vld [vmem:[%s2 + $0x1c] sm:$0xf]
  %v37 = vld [vmem:[%s2 + $0x20] sm:$0xf]
  %v38 = vld [vmem:[%s2 + $0x24] sm:$0xf]
  %v39 = vld [vmem:[%s2 + $0x28] sm:$0xf]
  %v40 = vld [vmem:[%s2 + $0x2c] sm:$0xf]
  %v41 = vld [vmem:[%s2 + $0x30] sm:$0xf]
  %v42 = vld [vmem:[%s2 + $0x34] sm:$0xf]
  %v43 = vld [vmem:[%s2 + $0x38] sm:$0xf]
  %v44 = vld [vmem:[%s2 + $0x3c] sm:$0xf]
  %v45 = vld [vmem:[%s2 + $0x40] sm:$0xf]
  %v46 = vld [vmem:[%s2 + $0x44] sm:$0xf]
  %v47 = vld [vmem:[%s2 + $0x48] sm:$0xf]
  %v48 = vld [vmem:[%s2 + $0x4c] sm:$0xf]
  %v49 = vld [vmem:[%s2 + $0x50] sm:$0xf]
  %v50 = vld [vmem:[%s2 + $0x54] sm:$0xf]
  %v51 = vld [vmem:[%s2 + $0x58] sm:$0xf]
  %v52 = vld [vmem:[%s2 + $0x5c] sm:$0xf]
  %v53 = vld [vmem:[%s2 + $0x60] sm:$0xf]
  %v54 = vld [vmem:[%s2 + $0x64] sm:$0xf]
  %v55 = vld [vmem:[%s2 + $0x68] sm:$0xf]
  %v56 = vld [vmem:[%s2 + $0x6c] sm:$0xf]
  %v57 = vld [vmem:[%s2 + $0x70] sm:$0xf]
  %v58 = vld [vmem:[%s2 + $0x74] sm:$0xf]
  %v59 = vld [vmem:[%s2 + $0x78] sm:$0xf]
  %v60 = vld [vmem:[%s2 + $0x7c] sm:$0xf]
  %v61 = vld [vmem:[%s2 + $0x80] sm:$0xf]
  %v62 = vld [vmem:[%s2 + $0x84] sm:$0xf]
  %v63 = vld [vmem:[%s2 + $0x88] sm:$0xf]
  %v64 = vld [vmem:[%s2 + $0x8c] sm:$0xf]
  %v65 = vld [vmem:[%s3] sm:$0x1]
  %v67 = vlaneseq
  %v68 = vshrl.u32 %v67, 7
  %v69 = vsub.s32 0, %v68
  %v70 = vrot.slane %v65, %v69
  %v76 = vunpack.c.l.b16 %v25
  %v77 = vunpack.c.h.b16 %v25
  %v78 = vunpack.c.l.b16 %v26
  %v79 = vunpack.c.l.b16 %v27
  %v80 = vunpack.c.h.b16 %v27
  %v81 = vunpack.c.l.b16 %v28
  %v82 = vpack.c.b16 %v79, %v76
  %v83 = vpack.c.b16 %v80, %v77
  %v84 = vpack.c.b16 %v81, %v78
  %v123 = vunpack.c.l.b16 %v29
  %v124 = vunpack.c.l.b16 %v30
  %v125 = vunpack.c.l.b16 %v31
  %v126 = vunpack.c.l.b16 %v32
  %v127 = vunpack.c.l.b16 %v33
  %v128 = vunpack.c.l.b16 %v34
  %v129 = vunpack.c.l.b16 %v35
  %v130 = vunpack.c.l.b16 %v36
  %v131 = vunpack.c.l.b16 %v37
  %v132 = vunpack.c.l.b16 %v38
  %v133 = vunpack.c.l.b16 %v39
  %v134 = vunpack.c.l.b16 %v40
  %v135 = vunpack.c.l.b16 %v41
  %v136 = vunpack.c.l.b16 %v42
  %v137 = vunpack.c.l.b16 %v43
  %v138 = vunpack.c.l.b16 %v44
  %v139 = vunpack.c.l.b16 %v45
  %v140 = vunpack.c.l.b16 %v46
  %v141 = vunpack.c.l.b16 %v47
  %v142 = vunpack.c.l.b16 %v48
  %v143 = vunpack.c.l.b16 %v49
  %v144 = vunpack.c.l.b16 %v50
  %v145 = vunpack.c.l.b16 %v51
  %v146 = vunpack.c.l.b16 %v52
  %v147 = vunpack.c.l.b16 %v53
  %v148 = vunpack.c.l.b16 %v54
  %v149 = vunpack.c.l.b16 %v55
  %v150 = vunpack.c.l.b16 %v56
  %v151 = vunpack.c.l.b16 %v57
  %v152 = vunpack.c.l.b16 %v58
  %v153 = vunpack.c.l.b16 %v59
  %v154 = vunpack.c.l.b16 %v60
  %v155 = vunpack.c.l.b16 %v61
  %v156 = vunpack.c.l.b16 %v62
  %v157 = vunpack.c.l.b16 %v63
  %v158 = vunpack.c.l.b16 %v64
  %v159 = vpack.c.b16 %v124, %v123
  %v160 = vpack.c.b16 %v126, %v125
  %v161 = vpack.c.b16 %v128, %v127
  %v162 = vpack.c.b16 %v130, %v129
  %v163 = vpack.c.b16 %v132, %v131
  %v164 = vpack.c.b16 %v134, %v133
  %v165 = vpack.c.b16 %v136, %v135
  %v166 = vpack.c.b16 %v138, %v137
  %v167 = vpack.c.b16 %v140, %v139
  %v168 = vpack.c.b16 %v142, %v141
  %v169 = vpack.c.b16 %v144, %v143
  %v170 = vpack.c.b16 %v146, %v145
  %v171 = vpack.c.b16 %v148, %v147
  %v172 = vpack.c.b16 %v150, %v149
  %v173 = vpack.c.b16 %v152, %v151
  %v174 = vpack.c.b16 %v154, %v153
  %v175 = vpack.c.b16 %v156, %v155
  %v176 = vpack.c.b16 %v158, %v157
  %vm195 = vcmask 261120
  %v197 = vsel %vm195, %v84, 0
  %199 = vmatprep.subr.bf16.mxu0 0
  %200 = vmatpush1.bf16.msra.mxu0 %v166
  %201 = vmatprep.subr.bf16.mxu0 0
  %202 = vmatpush1.bf16.msra.mxu0 %v165
  %203 = vmatprep.subr.bf16.mxu0 0
  %204 = vmatpush1.bf16.msra.mxu0 %v164
  %205 = vmatprep.subr.bf16.mxu0 0
  %206 = vmatpush1.bf16.msra.mxu0 %v163
  %207 = vmatprep.subr.bf16.mxu0 0
  %208 = vmatpush1.bf16.msra.mxu0 %v162
  %209 = vmatprep.subr.bf16.mxu0 0
  %210 = vmatpush1.bf16.msra.mxu0 %v161
  %211 = vmatprep.subr.bf16.mxu0 0
  %212 = vmatpush1.bf16.msra.mxu0 %v160
  %213 = vmatprep.subr.bf16.mxu0 0
  %214 = vmatpush1.bf16.msra.mxu0 %v159
  %215 = vmatprep.subr.bf16.mxu0 0
  %216 = vmatpush2.bf16.msra.mxu0 %v174
  %217 = vmatprep.subr.bf16.mxu0 0
  %218 = vmatpush2.bf16.msra.mxu0 %v173
  %219 = vmatprep.subr.bf16.mxu0 0
  %220 = vmatpush2.bf16.msra.mxu0 %v172
  %221 = vmatprep.subr.bf16.mxu0 0
  %222 = vmatpush2.bf16.msra.mxu0 %v171
  %223 = vmatprep.subr.bf16.mxu0 0
  %224 = vmatpush2.bf16.msra.mxu0 %v170
  %225 = vmatprep.subr.bf16.mxu0 0
  %226 = vmatpush2.bf16.msra.mxu0 %v169
  %227 = vmatprep.subr.bf16.mxu0 0
  %228 = vmatpush2.bf16.msra.mxu0 %v168
  %229 = vmatprep.subr.bf16.mxu0 0
  %230 = vmatpush2.bf16.msra.mxu0 %v167
  %231 = vmatprep.mubr.bf16.mxu0 %v83
  %232 = vmatmul.mubr.bf16.gmra.mxu0 %v82
  %v233 = vpop.f32.mrf.mxu0
  %v234 = vadd.f32 %v70, %v233
  %v235 = vpop.f32.mrf.mxu0
  %v236 = vpop.f32.mrf.mxu0
  %v237 = vadd.f32 %v70, %v236
  %v238 = vpop.f32.mrf.mxu0
  %239 = vdwg.mxu0
  %240 = vmatprep.subr.bf16.mxu0 0
  %241 = vmatpush1.bf16.msra.mxu0 0
  %242 = vmatprep.subr.bf16.mxu0 0
  %243 = vmatpush1.bf16.msra.mxu0 0
  %244 = vmatprep.subr.bf16.mxu0 0
  %245 = vmatpush1.bf16.msra.mxu0 0
  %246 = vmatprep.subr.bf16.mxu0 0
  %247 = vmatpush1.bf16.msra.mxu0 0
  %248 = vmatprep.subr.bf16.mxu0 0
  %249 = vmatpush1.bf16.msra.mxu0 0
  %250 = vmatprep.subr.bf16.mxu0 0
  %251 = vmatpush1.bf16.msra.mxu0 0
  %252 = vmatprep.subr.bf16.mxu0 0
  %253 = vmatpush1.bf16.msra.mxu0 %v176
  %254 = vmatprep.subr.bf16.mxu0 0
  %255 = vmatpush1.bf16.msra.mxu0 %v175
  %256 = vmatprep.subr.bf16.mxu0 0
  %257 = vmatpush2.bf16.msra.mxu0 0
  %258 = vmatprep.subr.bf16.mxu0 0
  %259 = vmatpush2.bf16.msra.mxu0 0
  %260 = vmatprep.subr.bf16.mxu0 0
  %261 = vmatpush2.bf16.msra.mxu0 0
  %262 = vmatprep.subr.bf16.mxu0 0
  %263 = vmatpush2.bf16.msra.mxu0 0
  %264 = vmatprep.subr.bf16.mxu0 0
  %265 = vmatpush2.bf16.msra.mxu0 0
  %266 = vmatprep.subr.bf16.mxu0 0
  %267 = vmatpush2.bf16.msra.mxu0 0
  %268 = vmatprep.subr.bf16.mxu0 0
  %269 = vmatpush2.bf16.msra.mxu0 0
  %270 = vmatprep.subr.bf16.mxu0 0
  %271 = vmatpush2.bf16.msra.mxu0 0
  %272 = vmatprep.mubr.bf16.mxu0 0
  %273 = vmatmul.mubr.bf16.gmra.mxu0 %v197
  %v274 = vpop.f32.mrf.mxu0
  %v275 = vadd.f32 %v234, %v274
  %v276 = vpop.f32.mrf.mxu0
  %v277 = vpop.f32.mrf.mxu0
  %v278 = vadd.f32 %v237, %v277
  %v279 = vpop.f32.mrf.mxu0
  %280 = vdwg.mxu0
  %v281 = vpack.c.bf16 %v278, %v275
  %v282 = vxor.u32 %v281, 2147516416
  %v284 = vmul.bf16 %v282, 1069105081
  %v285 = vpow.bf16.pop %v284
  %v286 = vadd.bf16 %v285, 1065369472
  %v287 = vrcp.bf16.pop %v286
  %v288 = vmul.bf16 1065369472, %v287
  %v289 = vmul.bf16 %v281, %v288
  %v290 = vld [vmem:[%s4] sm:$0xf]
  %v291 = vld [vmem:[%s4 + $0x4] sm:$0xf]
  %v292 = vld [vmem:[%s4 + $0x8] sm:$0xf]
  %v293 = vld [vmem:[%s4 + $0xc] sm:$0xf]
  %v294 = vld [vmem:[%s4 + $0x10] sm:$0xf]
  %v295 = vld [vmem:[%s4 + $0x14] sm:$0xf]
  %v296 = vld [vmem:[%s4 + $0x18] sm:$0xf]
  %v297 = vld [vmem:[%s4 + $0x1c] sm:$0xf]
  %v298 = vld [vmem:[%s4 + $0x20] sm:$0xf]
  %v299 = vld [vmem:[%s4 + $0x24] sm:$0xf]
  %v300 = vld [vmem:[%s4 + $0x28] sm:$0xf]
  %v301 = vld [vmem:[%s4 + $0x2c] sm:$0xf]
  %v302 = vld [vmem:[%s4 + $0x30] sm:$0xf]
  %v303 = vld [vmem:[%s4 + $0x34] sm:$0xf]
  %v304 = vld [vmem:[%s4 + $0x38] sm:$0xf]
  %v305 = vld [vmem:[%s4 + $0x3c] sm:$0xf]
  %v306 = vld [vmem:[%s1] sm:$0xff]
  %v307 = vld [vmem:[%s1 + $0x8] sm:$0xf]
  %v308 = vld [vmem:[%s1 + $0xc] sm:$0xff]
  %v309 = vld [vmem:[%s1 + $0x14] sm:$0xf]
  %v314 = vunpack.c.l.b16 %v306
  %v315 = vunpack.c.h.b16 %v306
  %v316 = vunpack.c.l.b16 %v307
  %v317 = vunpack.c.l.b16 %v308
  %v318 = vunpack.c.h.b16 %v308
  %v319 = vunpack.c.l.b16 %v309
  %v320 = vpack.c.b16 %v317, %v314
  %v321 = vpack.c.b16 %v318, %v315
  %v322 = vpack.c.b16 %v319, %v316
  %v326 = vsel %vm195, %v322, 0
  %328 = vmatprep.subr.bf16.mxu0 0
  %329 = vmatpush1.bf16.msra.mxu0 %v166
  %330 = vmatprep.subr.bf16.mxu0 0
  %331 = vmatpush1.bf16.msra.mxu0 %v165
  %332 = vmatprep.subr.bf16.mxu0 0
  %333 = vmatpush1.bf16.msra.mxu0 %v164
  %334 = vmatprep.subr.bf16.mxu0 0
  %335 = vmatpush1.bf16.msra.mxu0 %v163
  %336 = vmatprep.subr.bf16.mxu0 0
  %337 = vmatpush1.bf16.msra.mxu0 %v162
  %338 = vmatprep.subr.bf16.mxu0 0
  %339 = vmatpush1.bf16.msra.mxu0 %v161
  %340 = vmatprep.subr.bf16.mxu0 0
  %341 = vmatpush1.bf16.msra.mxu0 %v160
  %342 = vmatprep.subr.bf16.mxu0 0
  %343 = vmatpush1.bf16.msra.mxu0 %v159
  %344 = vmatprep.subr.bf16.mxu0 0
  %345 = vmatpush2.bf16.msra.mxu0 %v174
  %346 = vmatprep.subr.bf16.mxu0 0
  %347 = vmatpush2.bf16.msra.mxu0 %v173
  %348 = vmatprep.subr.bf16.mxu0 0
  %349 = vmatpush2.bf16.msra.mxu0 %v172
  %350 = vmatprep.subr.bf16.mxu0 0
  %351 = vmatpush2.bf16.msra.mxu0 %v171
  %352 = vmatprep.subr.bf16.mxu0 0
  %353 = vmatpush2.bf16.msra.mxu0 %v170
  %354 = vmatprep.subr.bf16.mxu0 0
  %355 = vmatpush2.bf16.msra.mxu0 %v169
  %356 = vmatprep.subr.bf16.mxu0 0
  %357 = vmatpush2.bf16.msra.mxu0 %v168
  %358 = vmatprep.subr.bf16.mxu0 0
  %359 = vmatpush2.bf16.msra.mxu0 %v167
  %360 = vmatprep.mubr.bf16.mxu0 %v321
  %361 = vmatmul.mubr.bf16.gmra.mxu0 %v320
  %v362 = vpop.f32.mrf.mxu0
  %v363 = vadd.f32 %v70, %v362
  %v364 = vpop.f32.mrf.mxu0
  %v365 = vpop.f32.mrf.mxu0
  %v366 = vadd.f32 %v70, %v365
  %v367 = vpop.f32.mrf.mxu0
  %368 = vdwg.mxu0
  %369 = vmatprep.subr.bf16.mxu0 0
  %370 = vmatpush1.bf16.msra.mxu0 0
  %371 = vmatprep.subr.bf16.mxu0 0
  %372 = vmatpush1.bf16.msra.mxu0 0
  %373 = vmatprep.subr.bf16.mxu0 0
  %374 = vmatpush1.bf16.msra.mxu0 0
  %375 = vmatprep.subr.bf16.mxu0 0
  %376 = vmatpush1.bf16.msra.mxu0 0
  %377 = vmatprep.subr.bf16.mxu0 0
  %378 = vmatpush1.bf16.msra.mxu0 0
  %379 = vmatprep.subr.bf16.mxu0 0
  %380 = vmatpush1.bf16.msra.mxu0 0
  %381 = vmatprep.subr.bf16.mxu0 0
  %382 = vmatpush1.bf16.msra.mxu0 %v176
  %383 = vmatprep.subr.bf16.mxu0 0
  %384 = vmatpush1.bf16.msra.mxu0 %v175
  %385 = vmatprep.subr.bf16.mxu0 0
  %386 = vmatpush2.bf16.msra.mxu0 0
  %387 = vmatprep.subr.bf16.mxu0 0
  %388 = vmatpush2.bf16.msra.mxu0 0
  %389 = vmatprep.subr.bf16.mxu0 0
  %390 = vmatpush2.bf16.msra.mxu0 0
  %391 = vmatprep.subr.bf16.mxu0 0
  %392 = vmatpush2.bf16.msra.mxu0 0
  %393 = vmatprep.subr.bf16.mxu0 0
  %394 = vmatpush2.bf16.msra.mxu0 0
  %395 = vmatprep.subr.bf16.mxu0 0
  %396 = vmatpush2.bf16.msra.mxu0 0
  %397 = vmatprep.subr.bf16.mxu0 0
  %398 = vmatpush2.bf16.msra.mxu0 0
  %399 = vmatprep.subr.bf16.mxu0 0
  %400 = vmatpush2.bf16.msra.mxu0 0
  %401 = vmatprep.mubr.bf16.mxu0 0
  %402 = vmatmul.mubr.bf16.gmra.mxu0 %v326
  %v403 = vpop.f32.mrf.mxu0
  %v404 = vadd.f32 %v363, %v403
  %v405 = vpop.f32.mrf.mxu0
  %v406 = vpop.f32.mrf.mxu0
  %v407 = vadd.f32 %v366, %v406
  %v408 = vpop.f32.mrf.mxu0
  %409 = vdwg.mxu0
  %v410 = vpack.c.bf16 %v407, %v404
  %v411 = vxor.u32 %v410, 2147516416
  %v413 = vmul.bf16 %v411, 1069105081
  %v414 = vpow.bf16.pop %v413
  %v415 = vadd.bf16 %v414, 1065369472
  %v416 = vrcp.bf16.pop %v415
  %v417 = vmul.bf16 1065369472, %v416
  %v418 = vmul.bf16 %v410, %v417
  %s419 = scalar_lea.vmem %s4, 64
  %v420 = vld [vmem:[%s419] sm:$0xf]
  %v421 = vld [vmem:[%s419 + $0x4] sm:$0xf]
  %v422 = vld [vmem:[%s419 + $0x8] sm:$0xf]
  %v423 = vld [vmem:[%s419 + $0xc] sm:$0xf]
  %v424 = vld [vmem:[%s419 + $0x10] sm:$0xf]
  %v425 = vld [vmem:[%s419 + $0x14] sm:$0xf]
  %v426 = vld [vmem:[%s419 + $0x18] sm:$0xf]
  %v427 = vld [vmem:[%s419 + $0x1c] sm:$0xf]
  %v428 = vld [vmem:[%s419 + $0x20] sm:$0xf]
  %v429 = vld [vmem:[%s419 + $0x24] sm:$0xf]
  %v430 = vld [vmem:[%s419 + $0x28] sm:$0xf]
  %v431 = vld [vmem:[%s419 + $0x2c] sm:$0xf]
  %v432 = vld [vmem:[%s419 + $0x30] sm:$0xf]
  %v433 = vld [vmem:[%s419 + $0x34] sm:$0xf]
  %v434 = vld [vmem:[%s419 + $0x38] sm:$0xf]
  %v435 = vld [vmem:[%s419 + $0x3c] sm:$0xf]
  %v452 = vunpack.c.l.b16 %v420
  %v453 = vunpack.c.l.b16 %v421
  %v454 = vunpack.c.l.b16 %v422
  %v455 = vunpack.c.l.b16 %v423
  %v456 = vunpack.c.l.b16 %v424
  %v457 = vunpack.c.l.b16 %v425
  %v458 = vunpack.c.l.b16 %v426
  %v459 = vunpack.c.l.b16 %v427
  %v460 = vunpack.c.l.b16 %v428
  %v461 = vunpack.c.l.b16 %v429
  %v462 = vunpack.c.l.b16 %v430
  %v463 = vunpack.c.l.b16 %v431
  %v464 = vunpack.c.l.b16 %v432
  %v465 = vunpack.c.l.b16 %v433
  %v466 = vunpack.c.l.b16 %v434
  %v467 = vunpack.c.l.b16 %v435
  %v468 = vpack.c.b16 %v453, %v452
  %v469 = vpack.c.b16 %v455, %v454
  %v470 = vpack.c.b16 %v457, %v456
  %v471 = vpack.c.b16 %v459, %v458
  %v472 = vpack.c.b16 %v461, %v460
  %v473 = vpack.c.b16 %v463, %v462
  %v474 = vpack.c.b16 %v465, %v464
  %v475 = vpack.c.b16 %v467, %v466
  %484 = vmatprep.subr.bf16.mxu0 0
  %485 = vmatpush1.bf16.msra.mxu0 %v475
  %486 = vmatprep.subr.bf16.mxu0 0
  %487 = vmatpush1.bf16.msra.mxu0 %v474
  %488 = vmatprep.subr.bf16.mxu0 0
  %489 = vmatpush1.bf16.msra.mxu0 %v473
  %490 = vmatprep.subr.bf16.mxu0 0
  %491 = vmatpush1.bf16.msra.mxu0 %v472
  %492 = vmatprep.subr.bf16.mxu0 0
  %493 = vmatpush1.bf16.msra.mxu0 %v471
  %494 = vmatprep.subr.bf16.mxu0 0
  %495 = vmatpush1.bf16.msra.mxu0 %v470
  %496 = vmatprep.subr.bf16.mxu0 0
  %497 = vmatpush1.bf16.msra.mxu0 %v469
  %498 = vmatprep.subr.bf16.mxu0 0
  %499 = vmatpush1.bf16.msra.mxu0 %v468
  %500 = vmatprep.subr.bf16.mxu0 0
  %501 = vmatpush2.bf16.msra.mxu0 0
  %502 = vmatprep.subr.bf16.mxu0 0
  %503 = vmatpush2.bf16.msra.mxu0 0
  %504 = vmatprep.subr.bf16.mxu0 0
  %505 = vmatpush2.bf16.msra.mxu0 0
  %506 = vmatprep.subr.bf16.mxu0 0
  %507 = vmatpush2.bf16.msra.mxu0 0
  %508 = vmatprep.subr.bf16.mxu0 0
  %509 = vmatpush2.bf16.msra.mxu0 0
  %510 = vmatprep.subr.bf16.mxu0 0
  %511 = vmatpush2.bf16.msra.mxu0 0
  %512 = vmatprep.subr.bf16.mxu0 0
  %513 = vmatpush2.bf16.msra.mxu0 0
  %514 = vmatprep.subr.bf16.mxu0 0
  %515 = vmatpush2.bf16.msra.mxu0 0
  %516 = vmatprep.mubr.bf16.mxu0 0
  %517 = vmatmul.mubr.bf16.gmra.mxu0 %v418
  %v518 = vpop.f32.mrf.mxu0
  %v519 = vadd.f32 0.0, %v518
  %v520 = vpop.f32.mrf.mxu0
  %v521 = vpop.f32.mrf.mxu0
  %v522 = vadd.f32 0.0, %v521
  %v523 = vpop.f32.mrf.mxu0
  %524 = vdwg.mxu0
  %v541 = vunpack.c.l.b16 %v290
  %v542 = vunpack.c.l.b16 %v291
  %v543 = vunpack.c.l.b16 %v292
  %v544 = vunpack.c.l.b16 %v293
  %v545 = vunpack.c.l.b16 %v294
  %v546 = vunpack.c.l.b16 %v295
  %v547 = vunpack.c.l.b16 %v296
  %v548 = vunpack.c.l.b16 %v297
  %v549 = vunpack.c.l.b16 %v298
  %v550 = vunpack.c.l.b16 %v299
  %v551 = vunpack.c.l.b16 %v300
  %v552 = vunpack.c.l.b16 %v301
  %v553 = vunpack.c.l.b16 %v302
  %v554 = vunpack.c.l.b16 %v303
  %v555 = vunpack.c.l.b16 %v304
  %v556 = vunpack.c.l.b16 %v305
  %v557 = vpack.c.b16 %v542, %v541
  %v558 = vpack.c.b16 %v544, %v543
  %v559 = vpack.c.b16 %v546, %v545
  %v560 = vpack.c.b16 %v548, %v547
  %v561 = vpack.c.b16 %v550, %v549
  %v562 = vpack.c.b16 %v552, %v551
  %v563 = vpack.c.b16 %v554, %v553
  %v564 = vpack.c.b16 %v556, %v555
  %573 = vmatprep.subr.bf16.mxu0 0
  %574 = vmatpush1.bf16.msra.mxu0 %v564
  %575 = vmatprep.subr.bf16.mxu0 0
  %576 = vmatpush1.bf16.msra.mxu0 %v563
  %577 = vmatprep.subr.bf16.mxu0 0
  %578 = vmatpush1.bf16.msra.mxu0 %v562
  %579 = vmatprep.subr.bf16.mxu0 0
  %580 = vmatpush1.bf16.msra.mxu0 %v561
  %581 = vmatprep.subr.bf16.mxu0 0
  %582 = vmatpush1.bf16.msra.mxu0 %v560
  %583 = vmatprep.subr.bf16.mxu0 0
  %584 = vmatpush1.bf16.msra.mxu0 %v559
  %585 = vmatprep.subr.bf16.mxu0 0
  %586 = vmatpush1.bf16.msra.mxu0 %v558
  %587 = vmatprep.subr.bf16.mxu0 0
  %588 = vmatpush1.bf16.msra.mxu0 %v557
  %589 = vmatprep.subr.bf16.mxu0 0
  %590 = vmatpush2.bf16.msra.mxu0 0
  %591 = vmatprep.subr.bf16.mxu0 0
  %592 = vmatpush2.bf16.msra.mxu0 0
  %593 = vmatprep.subr.bf16.mxu0 0
  %594 = vmatpush2.bf16.msra.mxu0 0
  %595 = vmatprep.subr.bf16.mxu0 0
  %596 = vmatpush2.bf16.msra.mxu0 0
  %597 = vmatprep.subr.bf16.mxu0 0
  %598 = vmatpush2.bf16.msra.mxu0 0
  %599 = vmatprep.subr.bf16.mxu0 0
  %600 = vmatpush2.bf16.msra.mxu0 0
  %601 = vmatprep.subr.bf16.mxu0 0
  %602 = vmatpush2.bf16.msra.mxu0 0
  %603 = vmatprep.subr.bf16.mxu0 0
  %604 = vmatpush2.bf16.msra.mxu0 0
  %605 = vmatprep.mubr.bf16.mxu0 0
  %606 = vmatmul.mubr.bf16.gmra.mxu0 %v289
  %v607 = vpop.f32.mrf.mxu0
  %v608 = vadd.f32 %v519, %v607
  %v609 = vpop.f32.mrf.mxu0
  %v610 = vpop.f32.mrf.mxu0
  %v611 = vadd.f32 %v522, %v610
  %v612 = vpop.f32.mrf.mxu0
  %613 = vdwg.mxu0
  %v614 = vld [vmem:[%s5] sm:$0x1]
  %v616 = vlaneseq
  %v617 = vshrl.u32 %v616, 7
  %v618 = vsub.s32 0, %v617
  %v619 = vrot.slane %v614, %v618
  %v621 = vadd.f32 %v608, %v619
  %v622 = vadd.f32 %v611, %v619
  %v623 = vpack.c.bf16 %v622, %v621
  %v625 = vunpack.c.l.b16 %v623
  %v626 = vunpack.c.h.b16 %v623
  %v627 = vpack.c.b16 %v625, %v625
  %v628 = vpack.c.b16 %v626, %v626
  %631 = vst [vmem:[%s6] sm:$0xf] %v627
  %632 = vst [vmem:[%s6 + $0x4] sm:$0xf] %v628
  // Predicated region
  $region26: #{forward.17} parent=0 // pred_check
    _
  $region27: #{forward.17} parent=0 // pred_check_branch
    %634 = sbr.rel (0) target = $region29
  $region28: #{forward.17} parent=0 // pred_region
    _
  $region29: #{forward.17} parent=0 // pred_fallthru
    _
  // Predicated region
  $region30: #{forward.17} parent=0 // pred_check
    _
  $region31: #{forward.17} parent=0 // pred_check_branch
    %636 = sbr.rel (0) target = $region33
  $region32: #{forward.17} parent=0 // pred_region
    _
  $region33: #{forward.17} parent=0 // pred_fallthru
    _

// kernel: forward.18
$region0: #{forward.18}
  #allocation0 [shape = 'u32[]', space=smem, size = 0x4, offset = 0x4, fixed_abs, tag = 'smem constant byte address 0x4 - core index']
  #allocation1 [shape = 'u32[144,128]{1,0:T(1,128)}', space=vmem, size = 0x12000, scoped, tag = 'internal scratch']
  %s0 = inlined_call_operand.vmem [shape: bf16[16,576], index: 0, kind: input, shape index: {}]
  %s1 = inlined_call_operand.vmem [shape: bf16[16,576], index: 1, kind: input, shape index: {}]
  %s2 = inlined_call_operand.vmem [shape: bf16[576,256], index: 2, kind: input, shape index: {}]
  %s3 = inlined_call_operand.vmem [shape: f32[1,256], index: 3, kind: input, shape index: {}]
  %s4 = inlined_call_operand.vmem [shape: bf16[2,256,128], index: 4, kind: input, shape index: {}]
  %s5 = inlined_call_operand.vmem [shape: f32[1,128], index: 5, kind: input, shape index: {}]
  %s6 = inlined_call_operand.vmem [shape: bf16[16,128], index: 6, kind: input, shape index: {}]
  %s7 = inlined_call_operand.vmem [shape: bf16[16,128], index: 7, kind: output, shape index: {}]
  %s8 = sld [smem:[#allocation0]]
  $region38: #{forward.18} parent=0
    _
  %s10 = ssub.s32 1, %s8
  %s11 = scalar_select 0, %s10, %s8
  // Predicated region
  $region2: #{forward.18} parent=0 // pred_check
    _
  $region3: #{forward.18} parent=0 // pred_check_branch
    %13 = sbr.rel (0) target = $region5
  $region4: #{forward.18} parent=0 // pred_region
    _
  $region5: #{forward.18} parent=0 // pred_fallthru
    _
  // Predicated region
  $region6: #{forward.18} parent=0 // pred_check
    _
  $region7: #{forward.18} parent=0 // pred_check_branch
    %15 = sbr.rel (0) target = $region9
  $region8: #{forward.18} parent=0 // pred_region
    _
  $region9: #{forward.18} parent=0 // pred_fallthru
    _
  // Predicated region
  $region10: #{forward.18} parent=0 // pred_check
    _
  $region11: #{forward.18} parent=0 // pred_check_branch
    %17 = sbr.rel (0) target = $region13
  $region12: #{forward.18} parent=0 // pred_region
    _
  $region13: #{forward.18} parent=0 // pred_fallthru
    _
  // Predicated region
  $region14: #{forward.18} parent=0 // pred_check
    _
  $region15: #{forward.18} parent=0 // pred_check_branch
    %19 = sbr.rel (0) target = $region17
  $region16: #{forward.18} parent=0 // pred_region
    _
  $region17: #{forward.18} parent=0 // pred_fallthru
    _
  // Predicated region
  $region18: #{forward.18} parent=0 // pred_check
    _
  $region19: #{forward.18} parent=0 // pred_check_branch
    %21 = sbr.rel (0) target = $region21
  $region20: #{forward.18} parent=0 // pred_region
    _
  $region21: #{forward.18} parent=0 // pred_fallthru
    _
  // Predicated region
  $region22: #{forward.18} parent=0 // pred_check
    _
  $region23: #{forward.18} parent=0 // pred_check_branch
    %23 = sbr.rel (0) target = $region25
  $region24: #{forward.18} parent=0 // pred_region
    _
  $region25: #{forward.18} parent=0 // pred_fallthru
    _
  // Predicated region
  $region26: #{forward.18} parent=0 // pred_check
    _
  $region27: #{forward.18} parent=0 // pred_check_branch
    %25 = sbr.rel (0) target = $region29
  $region28: #{forward.18} parent=0 // pred_region
    _
  $region29: #{forward.18} parent=0 // pred_fallthru
    _
  %v28 = vld [vmem:[%s0] sm:$0xff]
  %v29 = vld [vmem:[%s0 + $0x8] sm:$0xff]
  %v30 = vld [vmem:[%s0 + $0x10] sm:$0xf]
  %v31 = vld [vmem:[%s0 + $0x14] sm:$0xff]
  %v32 = vld [vmem:[%s0 + $0x1c] sm:$0xff]
  %v33 = vld [vmem:[%s0 + $0x24] sm:$0xf]
  %v34 = vld [vmem:[%s2] sm:$0xff]
  %v35 = vld [vmem:[%s2 + $0x8] sm:$0xff]
  %v36 = vld [vmem:[%s2 + $0x10] sm:$0xff]
  %v37 = vld [vmem:[%s2 + $0x18] sm:$0xff]
  %v38 = vld [vmem:[%s2 + $0x20] sm:$0xff]
  %v39 = vld [vmem:[%s2 + $0x28] sm:$0xff]
  %v40 = vld [vmem:[%s2 + $0x30] sm:$0xff]
  %v41 = vld [vmem:[%s2 + $0x38] sm:$0xff]
  %v42 = vld [vmem:[%s2 + $0x40] sm:$0xff]
  %v43 = vld [vmem:[%s2 + $0x48] sm:$0xff]
  %v44 = vld [vmem:[%s2 + $0x50] sm:$0xff]
  %v45 = vld [vmem:[%s2 + $0x58] sm:$0xff]
  %v46 = vld [vmem:[%s2 + $0x60] sm:$0xff]
  %v47 = vld [vmem:[%s2 + $0x68] sm:$0xff]
  %v48 = vld [vmem:[%s2 + $0x70] sm:$0xff]
  %v49 = vld [vmem:[%s2 + $0x78] sm:$0xff]
  %v50 = vld [vmem:[%s2 + $0x80] sm:$0xff]
  %v51 = vld [vmem:[%s2 + $0x88] sm:$0xff]
  %v52 = vld [vmem:[%s2 + $0x90] sm:$0xff]
  %v53 = vld [vmem:[%s2 + $0x98] sm:$0xff]
  %v54 = vld [vmem:[%s2 + $0xa0] sm:$0xff]
  %v55 = vld [vmem:[%s2 + $0xa8] sm:$0xff]
  %v56 = vld [vmem:[%s2 + $0xb0] sm:$0xff]
  %v57 = vld [vmem:[%s2 + $0xb8] sm:$0xff]
  %v58 = vld [vmem:[%s2 + $0xc0] sm:$0xff]
  %v59 = vld [vmem:[%s2 + $0xc8] sm:$0xff]
  %v60 = vld [vmem:[%s2 + $0xd0] sm:$0xff]
  %v61 = vld [vmem:[%s2 + $0xd8] sm:$0xff]
  %v62 = vld [vmem:[%s2 + $0xe0] sm:$0xff]
  %v63 = vld [vmem:[%s2 + $0xe8] sm:$0xff]
  %v64 = vld [vmem:[%s2 + $0xf0] sm:$0xff]
  %v65 = vld [vmem:[%s2 + $0xf8] sm:$0xff]
  %v66 = vld [vmem:[%s2 + $0x100] sm:$0xff]
  %v67 = vld [vmem:[%s2 + $0x108] sm:$0xff]
  %v68 = vld [vmem:[%s2 + $0x110] sm:$0xff]
  %v69 = vld [vmem:[%s2 + $0x118] sm:$0xff]
  %v70 = vld [vmem:[%s2 + $0x120] sm:$0xff]
  %v71 = vld [vmem:[%s2 + $0x128] sm:$0xff]
  %v72 = vld [vmem:[%s2 + $0x130] sm:$0xff]
  %v73 = vld [vmem:[%s2 + $0x138] sm:$0xff]
  %v74 = vld [vmem:[%s2 + $0x140] sm:$0xff]
  %v75 = vld [vmem:[%s2 + $0x148] sm:$0xff]
  %v76 = vld [vmem:[%s2 + $0x150] sm:$0xff]
  %v77 = vld [vmem:[%s2 + $0x158] sm:$0xff]
  %v78 = vld [vmem:[%s2 + $0x160] sm:$0xff]
  %v79 = vld [vmem:[%s2 + $0x168] sm:$0xff]
  %v80 = vld [vmem:[%s2 + $0x170] sm:$0xff]
  %v81 = vld [vmem:[%s2 + $0x178] sm:$0xff]
  %v82 = vld [vmem:[%s2 + $0x180] sm:$0xff]
  %v83 = vld [vmem:[%s2 + $0x188] sm:$0xff]
  %v84 = vld [vmem:[%s2 + $0x190] sm:$0xff]
  %v85 = vld [vmem:[%s2 + $0x198] sm:$0xff]
  %v86 = vld [vmem:[%s2 + $0x1a0] sm:$0xff]
  %v87 = vld [vmem:[%s2 + $0x1a8] sm:$0xff]
  %v88 = vld [vmem:[%s2 + $0x1b0] sm:$0xff]
  %v89 = vld [vmem:[%s2 + $0x1b8] sm:$0xff]
  %v90 = vld [vmem:[%s2 + $0x1c0] sm:$0xff]
  %v91 = vld [vmem:[%s2 + $0x1c8] sm:$0xff]
  %v92 = vld [vmem:[%s2 + $0x1d0] sm:$0xff]
  %v93 = vld [vmem:[%s2 + $0x1d8] sm:$0xff]
  %v94 = vld [vmem:[%s2 + $0x1e0] sm:$0xff]
  %v95 = vld [vmem:[%s2 + $0x1e8] sm:$0xff]
  %v96 = vld [vmem:[%s2 + $0x1f0] sm:$0xff]
  %v97 = vld [vmem:[%s2 + $0x1f8] sm:$0xff]
  %v98 = vld [vmem:[%s2 + $0x200] sm:$0xff]
  %v99 = vld [vmem:[%s2 + $0x208] sm:$0xff]
  %v100 = vld [vmem:[%s2 + $0x210] sm:$0xff]
  %v101 = vld [vmem:[%s2 + $0x218] sm:$0xff]
  %v102 = vld [vmem:[%s2 + $0x220] sm:$0xff]
  %v103 = vld [vmem:[%s2 + $0x228] sm:$0xff]
  %v104 = vld [vmem:[%s2 + $0x230] sm:$0xff]
  %v105 = vld [vmem:[%s2 + $0x238] sm:$0xff]
  %v106 = vld [vmem:[%s3] sm:$0x3]
  %v108 = vlaneseq
  %v109 = vshrl.u32 %v108, 7
  %v110 = vsub.s32 0, %v109
  %v111 = vrot.slane %v106, %v110
  %v112 = vlaneseq
  %v113 = vshrl.u32 %v112, 7
  %v114 = vsub.s32 1, %v113
  %v115 = vrot.slane %v106, %v114
  %v124 = vunpack.c.l.b16 %v28
  %v125 = vunpack.c.h.b16 %v28
  %v126 = vunpack.c.l.b16 %v29
  %v127 = vunpack.c.h.b16 %v29
  %v128 = vunpack.c.l.b16 %v30
  %v129 = vunpack.c.l.b16 %v31
  %v130 = vunpack.c.h.b16 %v31
  %v131 = vunpack.c.l.b16 %v32
  %v132 = vunpack.c.h.b16 %v32
  %v133 = vunpack.c.l.b16 %v33
  %v134 = vpack.c.b16 %v129, %v124
  %v135 = vpack.c.b16 %v130, %v125
  %v136 = vpack.c.b16 %v131, %v126
  %v137 = vpack.c.b16 %v132, %v127
  %v138 = vpack.c.b16 %v133, %v128
  %v215 = vunpack.c.l.b16 %v34
  %v216 = vunpack.c.h.b16 %v34
  %v217 = vunpack.c.l.b16 %v35
  %v218 = vunpack.c.h.b16 %v35
  %v219 = vunpack.c.l.b16 %v36
  %v220 = vunpack.c.h.b16 %v36
  %v221 = vunpack.c.l.b16 %v37
  %v222 = vunpack.c.h.b16 %v37
  %v223 = vunpack.c.l.b16 %v38
  %v224 = vunpack.c.h.b16 %v38
  %v225 = vunpack.c.l.b16 %v39
  %v226 = vunpack.c.h.b16 %v39
  %v227 = vunpack.c.l.b16 %v40
  %v228 = vunpack.c.h.b16 %v40
  %v229 = vunpack.c.l.b16 %v41
  %v230 = vunpack.c.h.b16 %v41
  %v231 = vunpack.c.l.b16 %v42
  %v232 = vunpack.c.h.b16 %v42
  %v233 = vunpack.c.l.b16 %v43
  %v234 = vunpack.c.h.b16 %v43
  %v235 = vunpack.c.l.b16 %v44
  %v236 = vunpack.c.h.b16 %v44
  %v237 = vunpack.c.l.b16 %v45
  %v238 = vunpack.c.h.b16 %v45
  %v239 = vunpack.c.l.b16 %v46
  %v240 = vunpack.c.h.b16 %v46
  %v241 = vunpack.c.l.b16 %v47
  %v242 = vunpack.c.h.b16 %v47
  %v243 = vunpack.c.l.b16 %v48
  %v244 = vunpack.c.h.b16 %v48
  %v245 = vunpack.c.l.b16 %v49
  %v246 = vunpack.c.h.b16 %v49
  %v247 = vunpack.c.l.b16 %v50
  %v248 = vunpack.c.h.b16 %v50
  %v249 = vunpack.c.l.b16 %v51
  %v250 = vunpack.c.h.b16 %v51
  %v251 = vunpack.c.l.b16 %v52
  %v252 = vunpack.c.h.b16 %v52
  %v253 = vunpack.c.l.b16 %v53
  %v254 = vunpack.c.h.b16 %v53
  %v255 = vunpack.c.l.b16 %v54
  %v256 = vunpack.c.h.b16 %v54
  %v257 = vunpack.c.l.b16 %v55
  %v258 = vunpack.c.h.b16 %v55
  %v259 = vunpack.c.l.b16 %v56
  %v260 = vunpack.c.h.b16 %v56
  %v261 = vunpack.c.l.b16 %v57
  %v262 = vunpack.c.h.b16 %v57
  %v263 = vunpack.c.l.b16 %v58
  %v264 = vunpack.c.h.b16 %v58
  %v265 = vunpack.c.l.b16 %v59
  %v266 = vunpack.c.h.b16 %v59
  %v267 = vunpack.c.l.b16 %v60
  %v268 = vunpack.c.h.b16 %v60
  %v269 = vunpack.c.l.b16 %v61
  %v270 = vunpack.c.h.b16 %v61
  %v271 = vunpack.c.l.b16 %v62
  %v272 = vunpack.c.h.b16 %v62
  %v273 = vunpack.c.l.b16 %v63
  %v274 = vunpack.c.h.b16 %v63
  %v275 = vunpack.c.l.b16 %v64
  %v276 = vunpack.c.h.b16 %v64
  %v277 = vunpack.c.l.b16 %v65
  %v278 = vunpack.c.h.b16 %v65
  %v279 = vunpack.c.l.b16 %v66
  %v280 = vunpack.c.h.b16 %v66
  %v281 = vunpack.c.l.b16 %v67
  %v282 = vunpack.c.h.b16 %v67
  %v283 = vunpack.c.l.b16 %v68
  %v284 = vunpack.c.h.b16 %v68
  %v285 = vunpack.c.l.b16 %v69
  %v286 = vunpack.c.h.b16 %v69
  %v287 = vunpack.c.l.b16 %v70
  %v288 = vunpack.c.h.b16 %v70
  %v289 = vunpack.c.l.b16 %v71
  %v290 = vunpack.c.h.b16 %v71
  %v291 = vunpack.c.l.b16 %v72
  %v292 = vunpack.c.h.b16 %v72
  %v293 = vunpack.c.l.b16 %v73
  %v294 = vunpack.c.h.b16 %v73
  %v295 = vunpack.c.l.b16 %v74
  %v296 = vunpack.c.h.b16 %v74
  %v297 = vunpack.c.l.b16 %v75
  %v298 = vunpack.c.h.b16 %v75
  %v299 = vunpack.c.l.b16 %v76
  %v300 = vunpack.c.h.b16 %v76
  %v301 = vunpack.c.l.b16 %v77
  %v302 = vunpack.c.h.b16 %v77
  %v303 = vunpack.c.l.b16 %v78
  %v304 = vunpack.c.h.b16 %v78
  %v305 = vunpack.c.l.b16 %v79
  %v306 = vunpack.c.h.b16 %v79
  %v307 = vunpack.c.l.b16 %v80
  %v308 = vunpack.c.h.b16 %v80
  %v309 = vunpack.c.l.b16 %v81
  %v310 = vunpack.c.h.b16 %v81
  %v311 = vunpack.c.l.b16 %v82
  %v312 = vunpack.c.h.b16 %v82
  %v313 = vunpack.c.l.b16 %v83
  %v314 = vunpack.c.h.b16 %v83
  %v315 = vunpack.c.l.b16 %v84
  %v316 = vunpack.c.h.b16 %v84
  %v317 = vunpack.c.l.b16 %v85
  %v318 = vunpack.c.h.b16 %v85
  %v319 = vunpack.c.l.b16 %v86
  %v320 = vunpack.c.h.b16 %v86
  %v321 = vunpack.c.l.b16 %v87
  %v322 = vunpack.c.h.b16 %v87
  %v323 = vunpack.c.l.b16 %v88
  %v324 = vunpack.c.h.b16 %v88
  %v325 = vunpack.c.l.b16 %v89
  %v326 = vunpack.c.h.b16 %v89
  %v327 = vunpack.c.l.b16 %v90
  %v328 = vunpack.c.h.b16 %v90
  %v329 = vunpack.c.l.b16 %v91
  %v330 = vunpack.c.h.b16 %v91
  %v331 = vunpack.c.l.b16 %v92
  %v332 = vunpack.c.h.b16 %v92
  %v333 = vunpack.c.l.b16 %v93
  %v334 = vunpack.c.h.b16 %v93
  %v335 = vunpack.c.l.b16 %v94
  %v336 = vunpack.c.h.b16 %v94
  %v337 = vunpack.c.l.b16 %v95
  %v338 = vunpack.c.h.b16 %v95
  %v339 = vunpack.c.l.b16 %v96
  %v340 = vunpack.c.h.b16 %v96
  %v341 = vunpack.c.l.b16 %v97
  %v342 = vunpack.c.h.b16 %v97
  %v343 = vunpack.c.l.b16 %v98
  %v344 = vunpack.c.h.b16 %v98
  %v345 = vunpack.c.l.b16 %v99
  %v346 = vunpack.c.h.b16 %v99
  %v347 = vunpack.c.l.b16 %v100
  %v348 = vunpack.c.h.b16 %v100
  %v349 = vunpack.c.l.b16 %v101
  %v350 = vunpack.c.h.b16 %v101
  %v351 = vunpack.c.l.b16 %v102
  %v352 = vunpack.c.h.b16 %v102
  %v353 = vunpack.c.l.b16 %v103
  %v354 = vunpack.c.h.b16 %v103
  %v355 = vunpack.c.l.b16 %v104
  %v356 = vunpack.c.h.b16 %v104
  %v357 = vunpack.c.l.b16 %v105
  %v358 = vunpack.c.h.b16 %v105
  %v359 = vpack.c.b16 %v217, %v215
  %v360 = vpack.c.b16 %v218, %v216
  %v361 = vpack.c.b16 %v221, %v219
  %v362 = vpack.c.b16 %v222, %v220
  %v363 = vpack.c.b16 %v225, %v223
  %v364 = vpack.c.b16 %v226, %v224
  %v365 = vpack.c.b16 %v229, %v227
  %v366 = vpack.c.b16 %v230, %v228
  %v367 = vpack.c.b16 %v233, %v231
  %v368 = vpack.c.b16 %v234, %v232
  %v369 = vpack.c.b16 %v237, %v235
  %v370 = vpack.c.b16 %v238, %v236
  %v371 = vpack.c.b16 %v241, %v239
  %v372 = vpack.c.b16 %v242, %v240
  %v373 = vpack.c.b16 %v245, %v243
  %v374 = vpack.c.b16 %v246, %v244
  %v375 = vpack.c.b16 %v249, %v247
  %v376 = vpack.c.b16 %v250, %v248
  %v377 = vpack.c.b16 %v253, %v251
  %v378 = vpack.c.b16 %v254, %v252
  %v379 = vpack.c.b16 %v257, %v255
  %v380 = vpack.c.b16 %v258, %v256
  %v381 = vpack.c.b16 %v261, %v259
  %v382 = vpack.c.b16 %v262, %v260
  %v383 = vpack.c.b16 %v265, %v263
  %v384 = vpack.c.b16 %v266, %v264
  %v385 = vpack.c.b16 %v269, %v267
  %v386 = vpack.c.b16 %v270, %v268
  %v387 = vpack.c.b16 %v273, %v271
  %v388 = vpack.c.b16 %v274, %v272
  %v389 = vpack.c.b16 %v277, %v275
  %v390 = vpack.c.b16 %v278, %v276
  %v391 = vpack.c.b16 %v281, %v279
  %v392 = vpack.c.b16 %v282, %v280
  %v393 = vpack.c.b16 %v285, %v283
  %v394 = vpack.c.b16 %v286, %v284
  %v395 = vpack.c.b16 %v289, %v287
  %v396 = vpack.c.b16 %v290, %v288
  %v397 = vpack.c.b16 %v293, %v291
  %v398 = vpack.c.b16 %v294, %v292
  %v399 = vpack.c.b16 %v297, %v295
  %v400 = vpack.c.b16 %v298, %v296
  %v401 = vpack.c.b16 %v301, %v299
  %v402 = vpack.c.b16 %v302, %v300
  %v403 = vpack.c.b16 %v305, %v303
  %v404 = vpack.c.b16 %v306, %v304
  %v405 = vpack.c.b16 %v309, %v307
  %v406 = vpack.c.b16 %v310, %v308
  %v407 = vpack.c.b16 %v313, %v311
  %v408 = vpack.c.b16 %v314, %v312
  %v409 = vpack.c.b16 %v317, %v315
  %v410 = vpack.c.b16 %v318, %v316
  %v411 = vpack.c.b16 %v321, %v319
  %v412 = vpack.c.b16 %v322, %v320
  %v413 = vpack.c.b16 %v325, %v323
  %v414 = vpack.c.b16 %v326, %v324
  %v415 = vpack.c.b16 %v329, %v327
  %v416 = vpack.c.b16 %v330, %v328
  %v417 = vpack.c.b16 %v333, %v331
  %v418 = vpack.c.b16 %v334, %v332
  %v419 = vpack.c.b16 %v337, %v335
  %v420 = vpack.c.b16 %v338, %v336
  %v421 = vpack.c.b16 %v341, %v339
  %v422 = vpack.c.b16 %v342, %v340
  %v423 = vpack.c.b16 %v345, %v343
  %v424 = vpack.c.b16 %v346, %v344
  %v425 = vpack.c.b16 %v349, %v347
  %v426 = vpack.c.b16 %v350, %v348
  %v427 = vpack.c.b16 %v353, %v351
  %v428 = vpack.c.b16 %v354, %v352
  %v429 = vpack.c.b16 %v357, %v355
  %v430 = vpack.c.b16 %v358, %v356
  %vm503 = vcmask 523264
  %v505 = vsel %vm503, %v138, 0
  %507 = vmatprep.subr.bf16.mxu0 %v374
  %508 = vmatpush1.bf16.msra.mxu0 %v373
  %509 = vmatprep.subr.bf16.mxu0 %v372
  %510 = vmatpush1.bf16.msra.mxu0 %v371
  %511 = vmatprep.subr.bf16.mxu0 %v370
  %512 = vmatpush1.bf16.msra.mxu0 %v369
  %513 = vmatprep.subr.bf16.mxu0 %v368
  %514 = vmatpush1.bf16.msra.mxu0 %v367
  %515 = vmatprep.subr.bf16.mxu0 %v366
  %516 = vmatpush1.bf16.msra.mxu0 %v365
  %517 = vmatprep.subr.bf16.mxu0 %v364
  %518 = vmatpush1.bf16.msra.mxu0 %v363
  %519 = vmatprep.subr.bf16.mxu0 %v362
  %520 = vmatpush1.bf16.msra.mxu0 %v361
  %521 = vmatprep.subr.bf16.mxu0 %v360
  %522 = vmatpush1.bf16.msra.mxu0 %v359
  %523 = vmatprep.subr.bf16.mxu0 %v390
  %524 = vmatpush2.bf16.msra.mxu0 %v389
  %525 = vmatprep.subr.bf16.mxu0 %v388
  %526 = vmatpush2.bf16.msra.mxu0 %v387
  %527 = vmatprep.subr.bf16.mxu0 %v386
  %528 = vmatpush2.bf16.msra.mxu0 %v385
  %529 = vmatprep.subr.bf16.mxu0 %v384
  %530 = vmatpush2.bf16.msra.mxu0 %v383
  %531 = vmatprep.subr.bf16.mxu0 %v382
  %532 = vmatpush2.bf16.msra.mxu0 %v381
  %533 = vmatprep.subr.bf16.mxu0 %v380
  %534 = vmatpush2.bf16.msra.mxu0 %v379
  %535 = vmatprep.subr.bf16.mxu0 %v378
  %536 = vmatpush2.bf16.msra.mxu0 %v377
  %537 = vmatprep.subr.bf16.mxu0 %v376
  %538 = vmatpush2.bf16.msra.mxu0 %v375
  %539 = vmatprep.mubr.bf16.mxu0 %v135
  %540 = vmatmul.mubr.bf16.gmra.mxu0 %v134
  %v541 = vpop.f32.mrf.mxu0
  %v542 = vadd.f32 %v111, %v541
  %v543 = vpop.f32.mrf.mxu0
  %v544 = vadd.f32 %v115, %v543
  %v545 = vpop.f32.mrf.mxu0
  %v546 = vadd.f32 %v111, %v545
  %v547 = vpop.f32.mrf.mxu0
  %v548 = vadd.f32 %v115, %v547
  %549 = vdwg.mxu0
  %550 = vmatprep.subr.bf16.mxu0 %v406
  %551 = vmatpush1.bf16.msra.mxu0 %v405
  %552 = vmatprep.subr.bf16.mxu0 %v404
  %553 = vmatpush1.bf16.msra.mxu0 %v403
  %554 = vmatprep.subr.bf16.mxu0 %v402
  %555 = vmatpush1.bf16.msra.mxu0 %v401
  %556 = vmatprep.subr.bf16.mxu0 %v400
  %557 = vmatpush1.bf16.msra.mxu0 %v399
  %558 = vmatprep.subr.bf16.mxu0 %v398
  %559 = vmatpush1.bf16.msra.mxu0 %v397
  %560 = vmatprep.subr.bf16.mxu0 %v396
  %561 = vmatpush1.bf16.msra.mxu0 %v395
  %562 = vmatprep.subr.bf16.mxu0 %v394
  %563 = vmatpush1.bf16.msra.mxu0 %v393
  %564 = vmatprep.subr.bf16.mxu0 %v392
  %565 = vmatpush1.bf16.msra.mxu0 %v391
  %566 = vmatprep.subr.bf16.mxu0 %v422
  %567 = vmatpush2.bf16.msra.mxu0 %v421
  %568 = vmatprep.subr.bf16.mxu0 %v420
  %569 = vmatpush2.bf16.msra.mxu0 %v419
  %570 = vmatprep.subr.bf16.mxu0 %v418
  %571 = vmatpush2.bf16.msra.mxu0 %v417
  %572 = vmatprep.subr.bf16.mxu0 %v416
  %573 = vmatpush2.bf16.msra.mxu0 %v415
  %574 = vmatprep.subr.bf16.mxu0 %v414
  %575 = vmatpush2.bf16.msra.mxu0 %v413
  %576 = vmatprep.subr.bf16.mxu0 %v412
  %577 = vmatpush2.bf16.msra.mxu0 %v411
  %578 = vmatprep.subr.bf16.mxu0 %v410
  %579 = vmatpush2.bf16.msra.mxu0 %v409
  %580 = vmatprep.subr.bf16.mxu0 %v408
  %581 = vmatpush2.bf16.msra.mxu0 %v407
  %582 = vmatprep.mubr.bf16.mxu0 %v137
  %583 = vmatmul.mubr.bf16.gmra.mxu0 %v136
  %v584 = vpop.f32.mrf.mxu0
  %v585 = vadd.f32 %v542, %v584
  %v586 = vpop.f32.mrf.mxu0
  %v587 = vadd.f32 %v544, %v586
  %v588 = vpop.f32.mrf.mxu0
  %v589 = vadd.f32 %v546, %v588
  %v590 = vpop.f32.mrf.mxu0
  %v591 = vadd.f32 %v548, %v590
  %592 = vdwg.mxu0
  %593 = vmatprep.subr.bf16.mxu0 0
  %594 = vmatpush1.bf16.msra.mxu0 0
  %595 = vmatprep.subr.bf16.mxu0 0
  %596 = vmatpush1.bf16.msra.mxu0 0
  %597 = vmatprep.subr.bf16.mxu0 0
  %598 = vmatpush1.bf16.msra.mxu0 0
  %599 = vmatprep.subr.bf16.mxu0 0
  %600 = vmatpush1.bf16.msra.mxu0 0
  %601 = vmatprep.subr.bf16.mxu0 %v430
  %602 = vmatpush1.bf16.msra.mxu0 %v429
  %603 = vmatprep.subr.bf16.mxu0 %v428
  %604 = vmatpush1.bf16.msra.mxu0 %v427
  %605 = vmatprep.subr.bf16.mxu0 %v426
  %606 = vmatpush1.bf16.msra.mxu0 %v425
  %607 = vmatprep.subr.bf16.mxu0 %v424
  %608 = vmatpush1.bf16.msra.mxu0 %v423
  %609 = vmatprep.subr.bf16.mxu0 0
  %610 = vmatpush2.bf16.msra.mxu0 0
  %611 = vmatprep.subr.bf16.mxu0 0
  %612 = vmatpush2.bf16.msra.mxu0 0
  %613 = vmatprep.subr.bf16.mxu0 0
  %614 = vmatpush2.bf16.msra.mxu0 0
  %615 = vmatprep.subr.bf16.mxu0 0
  %616 = vmatpush2.bf16.msra.mxu0 0
  %617 = vmatprep.subr.bf16.mxu0 0
  %618 = vmatpush2.bf16.msra.mxu0 0
  %619 = vmatprep.subr.bf16.mxu0 0
  %620 = vmatpush2.bf16.msra.mxu0 0
  %621 = vmatprep.subr.bf16.mxu0 0
  %622 = vmatpush2.bf16.msra.mxu0 0
  %623 = vmatprep.subr.bf16.mxu0 0
  %624 = vmatpush2.bf16.msra.mxu0 0
  %625 = vmatprep.mubr.bf16.mxu0 0
  %626 = vmatmul.mubr.bf16.gmra.mxu0 %v505
  %v627 = vpop.f32.mrf.mxu0
  %v628 = vadd.f32 %v585, %v627
  %v629 = vpop.f32.mrf.mxu0
  %v630 = vadd.f32 %v587, %v629
  %v631 = vpop.f32.mrf.mxu0
  %v632 = vadd.f32 %v589, %v631
  %v633 = vpop.f32.mrf.mxu0
  %v634 = vadd.f32 %v591, %v633
  %635 = vdwg.mxu0
  %v636 = vpack.c.bf16 %v632, %v628
  %v637 = vpack.c.bf16 %v634, %v630
  %v638 = vxor.u32 %v636, 2147516416
  %v639 = vxor.u32 %v637, 2147516416
  %v641 = vmul.bf16 %v638, 1069105081
  %v642 = vpow.bf16.pop %v641
  %v644 = vmul.bf16 %v639, 1069105081
  %v645 = vpow.bf16.pop %v644
  %v646 = vadd.bf16 %v642, 1065369472
  %v647 = vadd.bf16 %v645, 1065369472
  %v648 = vrcp.bf16.pop %v646
  %v649 = vmul.bf16 1065369472, %v648
  %v650 = vrcp.bf16.pop %v647
  %v651 = vmul.bf16 1065369472, %v650
  %v652 = vmul.bf16 %v636, %v649
  %v653 = vmul.bf16 %v637, %v651
  %v654 = vld [vmem:[%s4] sm:$0xf]
  %v655 = vld [vmem:[%s4 + $0x4] sm:$0xf]
  %v656 = vld [vmem:[%s4 + $0x8] sm:$0xf]
  %v657 = vld [vmem:[%s4 + $0xc] sm:$0xf]
  %v658 = vld [vmem:[%s4 + $0x10] sm:$0xf]
  %v659 = vld [vmem:[%s4 + $0x14] sm:$0xf]
  %v660 = vld [vmem:[%s4 + $0x18] sm:$0xf]
  %v661 = vld [vmem:[%s4 + $0x1c] sm:$0xf]
  %v662 = vld [vmem:[%s4 + $0x20] sm:$0xf]
  %v663 = vld [vmem:[%s4 + $0x24] sm:$0xf]
  %v664 = vld [vmem:[%s4 + $0x28] sm:$0xf]
  %v665 = vld [vmem:[%s4 + $0x2c] sm:$0xf]
  %v666 = vld [vmem:[%s4 + $0x30] sm:$0xf]
  %v667 = vld [vmem:[%s4 + $0x34] sm:$0xf]
  %v668 = vld [vmem:[%s4 + $0x38] sm:$0xf]
  %v669 = vld [vmem:[%s4 + $0x3c] sm:$0xf]
  %v670 = vld [vmem:[%s4 + $0x40] sm:$0xf]
  %v671 = vld [vmem:[%s4 + $0x44] sm:$0xf]
  %v672 = vld [vmem:[%s4 + $0x48] sm:$0xf]
  %v673 = vld [vmem:[%s4 + $0x4c] sm:$0xf]
  %v674 = vld [vmem:[%s4 + $0x50] sm:$0xf]
  %v675 = vld [vmem:[%s4 + $0x54] sm:$0xf]
  %v676 = vld [vmem:[%s4 + $0x58] sm:$0xf]
  %v677 = vld [vmem:[%s4 + $0x5c] sm:$0xf]
  %v678 = vld [vmem:[%s4 + $0x60] sm:$0xf]
  %v679 = vld [vmem:[%s4 + $0x64] sm:$0xf]
  %v680 = vld [vmem:[%s4 + $0x68] sm:$0xf]
  %v681 = vld [vmem:[%s4 + $0x6c] sm:$0xf]
  %v682 = vld [vmem:[%s4 + $0x70] sm:$0xf]
  %v683 = vld [vmem:[%s4 + $0x74] sm:$0xf]
  %v684 = vld [vmem:[%s4 + $0x78] sm:$0xf]
  %v685 = vld [vmem:[%s4 + $0x7c] sm:$0xf]
  %v686 = vld [vmem:[%s1] sm:$0xff]
  %v687 = vld [vmem:[%s1 + $0x8] sm:$0xff]
  %v688 = vld [vmem:[%s1 + $0x10] sm:$0xf]
  %v689 = vld [vmem:[%s1 + $0x14] sm:$0xff]
  %v690 = vld [vmem:[%s1 + $0x1c] sm:$0xff]
  %v691 = vld [vmem:[%s1 + $0x24] sm:$0xf]
  %v698 = vunpack.c.l.b16 %v686
  %v699 = vunpack.c.h.b16 %v686
  %v700 = vunpack.c.l.b16 %v687
  %v701 = vunpack.c.h.b16 %v687
  %v702 = vunpack.c.l.b16 %v688
  %v703 = vunpack.c.l.b16 %v689
  %v704 = vunpack.c.h.b16 %v689
  %v705 = vunpack.c.l.b16 %v690
  %v706 = vunpack.c.h.b16 %v690
  %v707 = vunpack.c.l.b16 %v691
  %v708 = vpack.c.b16 %v703, %v698
  %v709 = vpack.c.b16 %v704, %v699
  %v710 = vpack.c.b16 %v705, %v700
  %v711 = vpack.c.b16 %v706, %v701
  %v712 = vpack.c.b16 %v707, %v702
  %v718 = vsel %vm503, %v712, 0
  %720 = vmatprep.subr.bf16.mxu0 %v374
  %721 = vmatpush1.bf16.msra.mxu0 %v373
  %722 = vmatprep.subr.bf16.mxu0 %v372
  %723 = vmatpush1.bf16.msra.mxu0 %v371
  %724 = vmatprep.subr.bf16.mxu0 %v370
  %725 = vmatpush1.bf16.msra.mxu0 %v369
  %726 = vmatprep.subr.bf16.mxu0 %v368
  %727 = vmatpush1.bf16.msra.mxu0 %v367
  %728 = vmatprep.subr.bf16.mxu0 %v366
  %729 = vmatpush1.bf16.msra.mxu0 %v365
  %730 = vmatprep.subr.bf16.mxu0 %v364
  %731 = vmatpush1.bf16.msra.mxu0 %v363
  %732 = vmatprep.subr.bf16.mxu0 %v362
  %733 = vmatpush1.bf16.msra.mxu0 %v361
  %734 = vmatprep.subr.bf16.mxu0 %v360
  %735 = vmatpush1.bf16.msra.mxu0 %v359
  %736 = vmatprep.subr.bf16.mxu0 %v390
  %737 = vmatpush2.bf16.msra.mxu0 %v389
  %738 = vmatprep.subr.bf16.mxu0 %v388
  %739 = vmatpush2.bf16.msra.mxu0 %v387
  %740 = vmatprep.subr.bf16.mxu0 %v386
  %741 = vmatpush2.bf16.msra.mxu0 %v385
  %742 = vmatprep.subr.bf16.mxu0 %v384
  %743 = vmatpush2.bf16.msra.mxu0 %v383
  %744 = vmatprep.subr.bf16.mxu0 %v382
  %745 = vmatpush2.bf16.msra.mxu0 %v381
  %746 = vmatprep.subr.bf16.mxu0 %v380
  %747 = vmatpush2.bf16.msra.mxu0 %v379
  %748 = vmatprep.subr.bf16.mxu0 %v378
  %749 = vmatpush2.bf16.msra.mxu0 %v377
  %750 = vmatprep.subr.bf16.mxu0 %v376
  %751 = vmatpush2.bf16.msra.mxu0 %v375
  %752 = vmatprep.mubr.bf16.mxu0 %v709
  %753 = vmatmul.mubr.bf16.gmra.mxu0 %v708
  %v754 = vpop.f32.mrf.mxu0
  %v755 = vadd.f32 %v111, %v754
  %v756 = vpop.f32.mrf.mxu0
  %v757 = vadd.f32 %v115, %v756
  %v758 = vpop.f32.mrf.mxu0
  %v759 = vadd.f32 %v111, %v758
  %v760 = vpop.f32.mrf.mxu0
  %v761 = vadd.f32 %v115, %v760
  %762 = vdwg.mxu0
  %763 = vmatprep.subr.bf16.mxu0 %v406
  %764 = vmatpush1.bf16.msra.mxu0 %v405
  %765 = vmatprep.subr.bf16.mxu0 %v404
  %766 = vmatpush1.bf16.msra.mxu0 %v403
  %767 = vmatprep.subr.bf16.mxu0 %v402
  %768 = vmatpush1.bf16.msra.mxu0 %v401
  %769 = vmatprep.subr.bf16.mxu0 %v400
  %770 = vmatpush1.bf16.msra.mxu0 %v399
  %771 = vmatprep.subr.bf16.mxu0 %v398
  %772 = vmatpush1.bf16.msra.mxu0 %v397
  %773 = vmatprep.subr.bf16.mxu0 %v396
  %774 = vmatpush1.bf16.msra.mxu0 %v395
  %775 = vmatprep.subr.bf16.mxu0 %v394
  %776 = vmatpush1.bf16.msra.mxu0 %v393
  %777 = vmatprep.subr.bf16.mxu0 %v392
  %778 = vmatpush1.bf16.msra.mxu0 %v391
  %779 = vmatprep.subr.bf16.mxu0 %v422
  %780 = vmatpush2.bf16.msra.mxu0 %v421
  %781 = vmatprep.subr.bf16.mxu0 %v420
  %782 = vmatpush2.bf16.msra.mxu0 %v419
  %783 = vmatprep.subr.bf16.mxu0 %v418
  %784 = vmatpush2.bf16.msra.mxu0 %v417
  %785 = vmatprep.subr.bf16.mxu0 %v416
  %786 = vmatpush2.bf16.msra.mxu0 %v415
  %787 = vmatprep.subr.bf16.mxu0 %v414
  %788 = vmatpush2.bf16.msra.mxu0 %v413
  %789 = vmatprep.subr.bf16.mxu0 %v412
  %790 = vmatpush2.bf16.msra.mxu0 %v411
  %791 = vmatprep.subr.bf16.mxu0 %v410
  %792 = vmatpush2.bf16.msra.mxu0 %v409
  %793 = vmatprep.subr.bf16.mxu0 %v408
  %794 = vmatpush2.bf16.msra.mxu0 %v407
  %795 = vmatprep.mubr.bf16.mxu0 %v711
  %796 = vmatmul.mubr.bf16.gmra.mxu0 %v710
  %v797 = vpop.f32.mrf.mxu0
  %v798 = vadd.f32 %v755, %v797
  %v799 = vpop.f32.mrf.mxu0
  %v800 = vadd.f32 %v757, %v799
  %v801 = vpop.f32.mrf.mxu0
  %v802 = vadd.f32 %v759, %v801
  %v803 = vpop.f32.mrf.mxu0
  %v804 = vadd.f32 %v761, %v803
  %805 = vdwg.mxu0
  %806 = vmatprep.subr.bf16.mxu0 0
  %807 = vmatpush1.bf16.msra.mxu0 0
  %808 = vmatprep.subr.bf16.mxu0 0
  %809 = vmatpush1.bf16.msra.mxu0 0
  %810 = vmatprep.subr.bf16.mxu0 0
  %811 = vmatpush1.bf16.msra.mxu0 0
  %812 = vmatprep.subr.bf16.mxu0 0
  %813 = vmatpush1.bf16.msra.mxu0 0
  %814 = vmatprep.subr.bf16.mxu0 %v430
  %815 = vmatpush1.bf16.msra.mxu0 %v429
  %816 = vmatprep.subr.bf16.mxu0 %v428
  %817 = vmatpush1.bf16.msra.mxu0 %v427
  %818 = vmatprep.subr.bf16.mxu0 %v426
  %819 = vmatpush1.bf16.msra.mxu0 %v425
  %820 = vmatprep.subr.bf16.mxu0 %v424
  %821 = vmatpush1.bf16.msra.mxu0 %v423
  %822 = vmatprep.subr.bf16.mxu0 0
  %823 = vmatpush2.bf16.msra.mxu0 0
  %824 = vmatprep.subr.bf16.mxu0 0
  %825 = vmatpush2.bf16.msra.mxu0 0
  %826 = vmatprep.subr.bf16.mxu0 0
  %827 = vmatpush2.bf16.msra.mxu0 0
  %828 = vmatprep.subr.bf16.mxu0 0
  %829 = vmatpush2.bf16.msra.mxu0 0
  %830 = vmatprep.subr.bf16.mxu0 0
  %831 = vmatpush2.bf16.msra.mxu0 0
  %832 = vmatprep.subr.bf16.mxu0 0
  %833 = vmatpush2.bf16.msra.mxu0 0
  %834 = vmatprep.subr.bf16.mxu0 0
  %835 = vmatpush2.bf16.msra.mxu0 0
  %836 = vmatprep.subr.bf16.mxu0 0
  %837 = vmatpush2.bf16.msra.mxu0 0
  %838 = vmatprep.mubr.bf16.mxu0 0
  %839 = vmatmul.mubr.bf16.gmra.mxu0 %v718
  %v840 = vpop.f32.mrf.mxu0
  %v841 = vadd.f32 %v798, %v840
  %v842 = vpop.f32.mrf.mxu0
  %v843 = vadd.f32 %v800, %v842
  %v844 = vpop.f32.mrf.mxu0
  %v845 = vadd.f32 %v802, %v844
  %v846 = vpop.f32.mrf.mxu0
  %v847 = vadd.f32 %v804, %v846
  %848 = vdwg.mxu0
  %v849 = vpack.c.bf16 %v845, %v841
  %v850 = vpack.c.bf16 %v847, %v843
  %v851 = vxor.u32 %v849, 2147516416
  %v852 = vxor.u32 %v850, 2147516416
  %v854 = vmul.bf16 %v851, 1069105081
  %v855 = vpow.bf16.pop %v854
  %v857 = vmul.bf16 %v852, 1069105081
  %v858 = vpow.bf16.pop %v857
  %v859 = vadd.bf16 %v855, 1065369472
  %v860 = vadd.bf16 %v858, 1065369472
  %v861 = vrcp.bf16.pop %v859
  %v862 = vmul.bf16 1065369472, %v861
  %v863 = vrcp.bf16.pop %v860
  %v864 = vmul.bf16 1065369472, %v863
  %v865 = vmul.bf16 %v849, %v862
  %v866 = vmul.bf16 %v850, %v864
  %s867 = scalar_lea.vmem %s4, 128
  %v868 = vld [vmem:[%s867] sm:$0xf]
  %v869 = vld [vmem:[%s867 + $0x4] sm:$0xf]
  %v870 = vld [vmem:[%s867 + $0x8] sm:$0xf]
  %v871 = vld [vmem:[%s867 + $0xc] sm:$0xf]
  %v872 = vld [vmem:[%s867 + $0x10] sm:$0xf]
  %v873 = vld [vmem:[%s867 + $0x14] sm:$0xf]
  %v874 = vld [vmem:[%s867 + $0x18] sm:$0xf]
  %v875 = vld [vmem:[%s867 + $0x1c] sm:$0xf]
  %v876 = vld [vmem:[%s867 + $0x20] sm:$0xf]
  %v877 = vld [vmem:[%s867 + $0x24] sm:$0xf]
  %v878 = vld [vmem:[%s867 + $0x28] sm:$0xf]
  %v879 = vld [vmem:[%s867 + $0x2c] sm:$0xf]
  %v880 = vld [vmem:[%s867 + $0x30] sm:$0xf]
  %v881 = vld [vmem:[%s867 + $0x34] sm:$0xf]
  %v882 = vld [vmem:[%s867 + $0x38] sm:$0xf]
  %v883 = vld [vmem:[%s867 + $0x3c] sm:$0xf]
  %v884 = vld [vmem:[%s867 + $0x40] sm:$0xf]
  %v885 = vld [vmem:[%s867 + $0x44] sm:$0xf]
  %v886 = vld [vmem:[%s867 + $0x48] sm:$0xf]
  %v887 = vld [vmem:[%s867 + $0x4c] sm:$0xf]
  %v888 = vld [vmem:[%s867 + $0x50] sm:$0xf]
  %v889 = vld [vmem:[%s867 + $0x54] sm:$0xf]
  %v890 = vld [vmem:[%s867 + $0x58] sm:$0xf]
  %v891 = vld [vmem:[%s867 + $0x5c] sm:$0xf]
  %v892 = vld [vmem:[%s867 + $0x60] sm:$0xf]
  %v893 = vld [vmem:[%s867 + $0x64] sm:$0xf]
  %v894 = vld [vmem:[%s867 + $0x68] sm:$0xf]
  %v895 = vld [vmem:[%s867 + $0x6c] sm:$0xf]
  %v896 = vld [vmem:[%s867 + $0x70] sm:$0xf]
  %v897 = vld [vmem:[%s867 + $0x74] sm:$0xf]
  %v898 = vld [vmem:[%s867 + $0x78] sm:$0xf]
  %v899 = vld [vmem:[%s867 + $0x7c] sm:$0xf]
  %v932 = vunpack.c.l.b16 %v868
  %v933 = vunpack.c.l.b16 %v869
  %v934 = vunpack.c.l.b16 %v870
  %v935 = vunpack.c.l.b16 %v871
  %v936 = vunpack.c.l.b16 %v872
  %v937 = vunpack.c.l.b16 %v873
  %v938 = vunpack.c.l.b16 %v874
  %v939 = vunpack.c.l.b16 %v875
  %v940 = vunpack.c.l.b16 %v876
  %v941 = vunpack.c.l.b16 %v877
  %v942 = vunpack.c.l.b16 %v878
  %v943 = vunpack.c.l.b16 %v879
  %v944 = vunpack.c.l.b16 %v880
  %v945 = vunpack.c.l.b16 %v881
  %v946 = vunpack.c.l.b16 %v882
  %v947 = vunpack.c.l.b16 %v883
  %v948 = vunpack.c.l.b16 %v884
  %v949 = vunpack.c.l.b16 %v885
  %v950 = vunpack.c.l.b16 %v886
  %v951 = vunpack.c.l.b16 %v887
  %v952 = vunpack.c.l.b16 %v888
  %v953 = vunpack.c.l.b16 %v889
  %v954 = vunpack.c.l.b16 %v890
  %v955 = vunpack.c.l.b16 %v891
  %v956 = vunpack.c.l.b16 %v892
  %v957 = vunpack.c.l.b16 %v893
  %v958 = vunpack.c.l.b16 %v894
  %v959 = vunpack.c.l.b16 %v895
  %v960 = vunpack.c.l.b16 %v896
  %v961 = vunpack.c.l.b16 %v897
  %v962 = vunpack.c.l.b16 %v898
  %v963 = vunpack.c.l.b16 %v899
  %v964 = vpack.c.b16 %v933, %v932
  %v965 = vpack.c.b16 %v935, %v934
  %v966 = vpack.c.b16 %v937, %v936
  %v967 = vpack.c.b16 %v939, %v938
  %v968 = vpack.c.b16 %v941, %v940
  %v969 = vpack.c.b16 %v943, %v942
  %v970 = vpack.c.b16 %v945, %v944
  %v971 = vpack.c.b16 %v947, %v946
  %v972 = vpack.c.b16 %v949, %v948
  %v973 = vpack.c.b16 %v951, %v950
  %v974 = vpack.c.b16 %v953, %v952
  %v975 = vpack.c.b16 %v955, %v954
  %v976 = vpack.c.b16 %v957, %v956
  %v977 = vpack.c.b16 %v959, %v958
  %v978 = vpack.c.b16 %v961, %v960
  %v979 = vpack.c.b16 %v963, %v962
  %996 = vmatprep.subr.bf16.mxu0 0
  %997 = vmatpush1.bf16.msra.mxu0 %v971
  %998 = vmatprep.subr.bf16.mxu0 0
  %999 = vmatpush1.bf16.msra.mxu0 %v970
  %1000 = vmatprep.subr.bf16.mxu0 0
  %1001 = vmatpush1.bf16.msra.mxu0 %v969
  %1002 = vmatprep.subr.bf16.mxu0 0
  %1003 = vmatpush1.bf16.msra.mxu0 %v968
  %1004 = vmatprep.subr.bf16.mxu0 0
  %1005 = vmatpush1.bf16.msra.mxu0 %v967
  %1006 = vmatprep.subr.bf16.mxu0 0
  %1007 = vmatpush1.bf16.msra.mxu0 %v966
  %1008 = vmatprep.subr.bf16.mxu0 0
  %1009 = vmatpush1.bf16.msra.mxu0 %v965
  %1010 = vmatprep.subr.bf16.mxu0 0
  %1011 = vmatpush1.bf16.msra.mxu0 %v964
  %1012 = vmatprep.subr.bf16.mxu0 0
  %1013 = vmatpush2.bf16.msra.mxu0 %v979
  %1014 = vmatprep.subr.bf16.mxu0 0
  %1015 = vmatpush2.bf16.msra.mxu0 %v978
  %1016 = vmatprep.subr.bf16.mxu0 0
  %1017 = vmatpush2.bf16.msra.mxu0 %v977
  %1018 = vmatprep.subr.bf16.mxu0 0
  %1019 = vmatpush2.bf16.msra.mxu0 %v976
  %1020 = vmatprep.subr.bf16.mxu0 0
  %1021 = vmatpush2.bf16.msra.mxu0 %v975
  %1022 = vmatprep.subr.bf16.mxu0 0
  %1023 = vmatpush2.bf16.msra.mxu0 %v974
  %1024 = vmatprep.subr.bf16.mxu0 0
  %1025 = vmatpush2.bf16.msra.mxu0 %v973
  %1026 = vmatprep.subr.bf16.mxu0 0
  %1027 = vmatpush2.bf16.msra.mxu0 %v972
  %1028 = vmatprep.mubr.bf16.mxu0 %v866
  %1029 = vmatmul.mubr.bf16.gmra.mxu0 %v865
  %v1030 = vpop.f32.mrf.mxu0
  %v1031 = vadd.f32 0.0, %v1030
  %v1032 = vpop.f32.mrf.mxu0
  %v1033 = vpop.f32.mrf.mxu0
  %v1034 = vadd.f32 0.0, %v1033
  %v1035 = vpop.f32.mrf.mxu0
  %1036 = vdwg.mxu0
  %v1069 = vunpack.c.l.b16 %v654
  %v1070 = vunpack.c.l.b16 %v655
  %v1071 = vunpack.c.l.b16 %v656
  %v1072 = vunpack.c.l.b16 %v657
  %v1073 = vunpack.c.l.b16 %v658
  %v1074 = vunpack.c.l.b16 %v659
  %v1075 = vunpack.c.l.b16 %v660
  %v1076 = vunpack.c.l.b16 %v661
  %v1077 = vunpack.c.l.b16 %v662
  %v1078 = vunpack.c.l.b16 %v663
  %v1079 = vunpack.c.l.b16 %v664
  %v1080 = vunpack.c.l.b16 %v665
  %v1081 = vunpack.c.l.b16 %v666
  %v1082 = vunpack.c.l.b16 %v667
  %v1083 = vunpack.c.l.b16 %v668
  %v1084 = vunpack.c.l.b16 %v669
  %v1085 = vunpack.c.l.b16 %v670
  %v1086 = vunpack.c.l.b16 %v671
  %v1087 = vunpack.c.l.b16 %v672
  %v1088 = vunpack.c.l.b16 %v673
  %v1089 = vunpack.c.l.b16 %v674
  %v1090 = vunpack.c.l.b16 %v675
  %v1091 = vunpack.c.l.b16 %v676
  %v1092 = vunpack.c.l.b16 %v677
  %v1093 = vunpack.c.l.b16 %v678
  %v1094 = vunpack.c.l.b16 %v679
  %v1095 = vunpack.c.l.b16 %v680
  %v1096 = vunpack.c.l.b16 %v681
  %v1097 = vunpack.c.l.b16 %v682
  %v1098 = vunpack.c.l.b16 %v683
  %v1099 = vunpack.c.l.b16 %v684
  %v1100 = vunpack.c.l.b16 %v685
  %v1101 = vpack.c.b16 %v1070, %v1069
  %v1102 = vpack.c.b16 %v1072, %v1071
  %v1103 = vpack.c.b16 %v1074, %v1073
  %v1104 = vpack.c.b16 %v1076, %v1075
  %v1105 = vpack.c.b16 %v1078, %v1077
  %v1106 = vpack.c.b16 %v1080, %v1079
  %v1107 = vpack.c.b16 %v1082, %v1081
  %v1108 = vpack.c.b16 %v1084, %v1083
  %v1109 = vpack.c.b16 %v1086, %v1085
  %v1110 = vpack.c.b16 %v1088, %v1087
  %v1111 = vpack.c.b16 %v1090, %v1089
  %v1112 = vpack.c.b16 %v1092, %v1091
  %v1113 = vpack.c.b16 %v1094, %v1093
  %v1114 = vpack.c.b16 %v1096, %v1095
  %v1115 = vpack.c.b16 %v1098, %v1097
  %v1116 = vpack.c.b16 %v1100, %v1099
  %1133 = vmatprep.subr.bf16.mxu0 0
  %1134 = vmatpush1.bf16.msra.mxu0 %v1108
  %1135 = vmatprep.subr.bf16.mxu0 0
  %1136 = vmatpush1.bf16.msra.mxu0 %v1107
  %1137 = vmatprep.subr.bf16.mxu0 0
  %1138 = vmatpush1.bf16.msra.mxu0 %v1106
  %1139 = vmatprep.subr.bf16.mxu0 0
  %1140 = vmatpush1.bf16.msra.mxu0 %v1105
  %1141 = vmatprep.subr.bf16.mxu0 0
  %1142 = vmatpush1.bf16.msra.mxu0 %v1104
  %1143 = vmatprep.subr.bf16.mxu0 0
  %1144 = vmatpush1.bf16.msra.mxu0 %v1103
  %1145 = vmatprep.subr.bf16.mxu0 0
  %1146 = vmatpush1.bf16.msra.mxu0 %v1102
  %1147 = vmatprep.subr.bf16.mxu0 0
  %1148 = vmatpush1.bf16.msra.mxu0 %v1101
  %1149 = vmatprep.subr.bf16.mxu0 0
  %1150 = vmatpush2.bf16.msra.mxu0 %v1116
  %1151 = vmatprep.subr.bf16.mxu0 0
  %1152 = vmatpush2.bf16.msra.mxu0 %v1115
  %1153 = vmatprep.subr.bf16.mxu0 0
  %1154 = vmatpush2.bf16.msra.mxu0 %v1114
  %1155 = vmatprep.subr.bf16.mxu0 0
  %1156 = vmatpush2.bf16.msra.mxu0 %v1113
  %1157 = vmatprep.subr.bf16.mxu0 0
  %1158 = vmatpush2.bf16.msra.mxu0 %v1112
  %1159 = vmatprep.subr.bf16.mxu0 0
  %1160 = vmatpush2.bf16.msra.mxu0 %v1111
  %1161 = vmatprep.subr.bf16.mxu0 0
  %1162 = vmatpush2.bf16.msra.mxu0 %v1110
  %1163 = vmatprep.subr.bf16.mxu0 0
  %1164 = vmatpush2.bf16.msra.mxu0 %v1109
  %1165 = vmatprep.mubr.bf16.mxu0 %v653
  %1166 = vmatmul.mubr.bf16.gmra.mxu0 %v652
  %v1167 = vpop.f32.mrf.mxu0
  %v1168 = vadd.f32 %v1031, %v1167
  %v1169 = vpop.f32.mrf.mxu0
  %v1170 = vpop.f32.mrf.mxu0
  %v1171 = vadd.f32 %v1034, %v1170
  %v1172 = vpop.f32.mrf.mxu0
  %1173 = vdwg.mxu0
  %v1174 = vld [vmem:[%s5] sm:$0x1]
  %v1176 = vlaneseq
  %v1177 = vshrl.u32 %v1176, 7
  %v1178 = vsub.s32 0, %v1177
  %v1179 = vrot.slane %v1174, %v1178
  %v1181 = vadd.f32 %v1168, %v1179
  %v1182 = vadd.f32 %v1171, %v1179
  %v1183 = vld [vmem:[%s6] sm:$0xf]
  %v1184 = vld [vmem:[%s6 + $0x4] sm:$0xf]
  %v1185 = vunpack.c.l.bf16 %v1183
  %v1186 = vunpack.c.l.bf16 %v1184
  %v1187 = vadd.f32 %v1181, %v1185
  %v1188 = vadd.f32 %v1182, %v1186
  %v1189 = vpack.c.bf16 %v1188, %v1187
  %v1191 = vunpack.c.l.b16 %v1189
  %v1192 = vunpack.c.h.b16 %v1189
  %v1193 = vpack.c.b16 %v1191, %v1191
  %v1194 = vpack.c.b16 %v1192, %v1192
  %1197 = vst [vmem:[%s7] sm:$0xf] %v1193
  %1198 = vst [vmem:[%s7 + $0x4] sm:$0xf] %v1194
  // Predicated region
  $region30: #{forward.18} parent=0 // pred_check
    _
  $region31: #{forward.18} parent=0 // pred_check_branch
    %1200 = sbr.rel (0) target = $region33
  $region32: #{forward.18} parent=0 // pred_region
    _
  $region33: #{forward.18} parent=0 // pred_fallthru
    _
  // Predicated region
  $region34: #{forward.18} parent=0 // pred_check
    _
  $region35: #{forward.18} parent=0 // pred_check_branch
    %1202 = sbr.rel (0) target = $region37
  $region36: #{forward.18} parent=0 // pred_region
    _
  $region37: #{forward.18} parent=0 // pred_fallthru
    _

</llo_original>
